<compile_context>
chip_gen: v5e
topology: v5e:2x2
jax: 0.10.0
libtpu: 0.0.40
codegen_flags: <defaults>
</compile_context>

<pallas_src>
import jax
import jax.numpy as jnp
from jax.experimental import pallas as pl
from jax.experimental.pallas import tpu as pltpu

IN_DIM = 512
HIDDEN = 4096
OUT_DIM = 512
TH = 1024       # hidden (reduction) chunk size -> 4 pipeline steps
MAX_TB = 256    # max batch tile (keeps the (TB, TH) f32 intermediate ~1 MiB)


def _generator_kernel(x_ref, w1_ref, b1_ref, w2_ref, b2_ref, o_ref, acc_ref):
    # x:  (TB, 512) bf16       w1: (512, TH) bf16   b1: (1, TH) f32
    # w2: (TH, 512) bf16       b2: (1, 512)  f32
    # o:  (TB, 512) f32        acc: (TB, 512) f32 VMEM scratch
    k = pl.program_id(1)

    @pl.when(k == 0)
    def _():
        acc_ref[...] = jnp.zeros_like(acc_ref)

    # First Linear chunk + bias + ReLU (MXU matmul, f32 accumulation).
    h = jnp.dot(x_ref[...], w1_ref[...], preferred_element_type=jnp.float32)
    h = jnp.maximum(h + b1_ref[...], 0.0)

    # Second Linear chunk, accumulated over the hidden axis.
    acc_ref[...] += jnp.dot(h.astype(jnp.bfloat16), w2_ref[...],
                            preferred_element_type=jnp.float32)

    # Finalize: add b2 exactly once and write the resident output block.
    @pl.when(k == pl.num_programs(1) - 1)
    def _():
        o_ref[...] = (acc_ref[...] + b2_ref[...]).astype(o_ref.dtype)


def generator_forward(x, w1, b1, w2, b2):
    """x: (B, 512) float32 -> (B, 512) float32."""
    B = x.shape[0]
    out_dtype = x.dtype

    # Batch tile: multiple of 8 sublanes, capped at MAX_TB; pad B if needed.
    tb = min(MAX_TB, max(8, ((B + 7) // 8) * 8))
    B_pad = pl.cdiv(B, tb) * tb
    if B_pad != B:
        x = jnp.pad(x, ((0, B_pad - B), (0, 0)))

    # bf16 inputs for the MXU and to halve the HBM weight stream.
    x_bf = x.astype(jnp.bfloat16)
    w1_bf = w1.astype(jnp.bfloat16)
    w2_bf = w2.astype(jnp.bfloat16)
    b1_f = b1.reshape(1, HIDDEN).astype(jnp.float32)
    b2_f = b2.reshape(1, OUT_DIM).astype(jnp.float32)

    n_btiles = B_pad // tb
    grid = (n_btiles, HIDDEN // TH)

    # Advisory cost hint for the XLA scheduler around the custom call.
    flops = 2 * B_pad * IN_DIM * HIDDEN + 2 * B_pad * HIDDEN * OUT_DIM
    bytes_accessed = (
        x_bf.size * 2
        + n_btiles * (w1_bf.size + w2_bf.size) * 2   # weights re-stream per batch tile
        + b1_f.size * 4 + b2_f.size * 4
        + B_pad * OUT_DIM * 4)
    cost = pl.CostEstimate(flops=flops, transcendentals=0,
                           bytes_accessed=bytes_accessed)

    out = pl.pallas_call(
        _generator_kernel,
        out_shape=jax.ShapeDtypeStruct((B_pad, OUT_DIM), out_dtype),
        grid_spec=pltpu.PrefetchScalarGridSpec(
            num_scalar_prefetch=0,
            grid=grid,
            in_specs=[
                pl.BlockSpec((tb, IN_DIM), lambda i, k: (i, 0)),     # x (no refetch across k)
                pl.BlockSpec((IN_DIM, TH), lambda i, k: (0, k)),     # W1 chunk
                pl.BlockSpec((1, TH), lambda i, k: (0, k)),          # b1 chunk
                pl.BlockSpec((TH, OUT_DIM), lambda i, k: (k, 0)),    # W2 chunk
                pl.BlockSpec((1, OUT_DIM), lambda i, k: (0, 0)),     # b2 (stays resident)
            ],
            out_specs=pl.BlockSpec((tb, OUT_DIM), lambda i, k: (i, 0)),
            scratch_shapes=[pltpu.VMEM((tb, OUT_DIM), jnp.float32)],
        ),
        compiler_params=pltpu.CompilerParams(
            # batch axis parallel (2 TCs on v7x), reduction axis arbitrary+last
            dimension_semantics=("parallel", "arbitrary"),
            vmem_limit_bytes=32 << 20,
        ),
        cost_estimate=cost,
    )(x_bf, w1_bf, b1_f, w2_bf, b2_f)

    return out[:B]


def init_params(key):
    """Deterministic init mirroring `weights_init`: W ~ N(0, 0.02), b = 0."""
    k1, k2 = jax.random.split(key)
    w1 = 0.02 * jax.random.normal(k1, (IN_DIM, HIDDEN), dtype=jnp.float32)
    b1 = jnp.zeros((1, HIDDEN), dtype=jnp.float32)
    w2 = 0.02 * jax.random.normal(k2, (HIDDEN, OUT_DIM), dtype=jnp.float32)
    b2 = jnp.zeros((1, OUT_DIM), dtype=jnp.float32)
    return w1, b1, w2, b2


if __name__ == "__main__":
    key = jax.random.PRNGKey(0)
    k_x, k_p = jax.random.split(key)

    B = 8  # small batch (feature dims 512/4096 are fixed by the module)
    x = jax.random.normal(k_x, (B, IN_DIM), dtype=jnp.float32)
    w1, b1, w2, b2 = init_params(k_p)

    out = generator_forward(x, w1, b1, w2, b2)
    out = jax.block_until_ready(out)

    # Reference in plain JAX with the same bf16 weight/input cast, f32 math
    # (kernel additionally rounds h to bf16, hence the looser tolerance).
    xb = x.astype(jnp.bfloat16).astype(jnp.float32)
    w1b = w1.astype(jnp.bfloat16).astype(jnp.float32)
    w2b = w2.astype(jnp.bfloat16).astype(jnp.float32)
    ref = jnp.maximum(xb @ w1b + b1, 0.0) @ w2b + b2

    assert out.shape == (B, OUT_DIM)
    assert jnp.allclose(out, ref, atol=2e-2, rtol=2e-2), float(
        jnp.max(jnp.abs(out - ref)))

    print("KERNEL_OK")
</pallas_src>

<mosaic_0001>
module attributes {stable_mosaic.version = 11 : i64} {
  func.func @_generator_kernel(%arg0: i32, %arg1: i32, %arg2: memref<8x512xbf16, #tpu.memory_space<vmem>>, %arg3: memref<512x1024xbf16, #tpu.memory_space<vmem>>, %arg4: memref<1x1024xf32, #tpu.memory_space<vmem>>, %arg5: memref<1024x512xbf16, #tpu.memory_space<vmem>>, %arg6: memref<1x512xf32, #tpu.memory_space<vmem>>, %arg7: memref<8x512xf32, #tpu.memory_space<vmem>>, %arg8: memref<8x512xf32, #tpu.memory_space<vmem>>) attributes {dimension_semantics = [#tpu.dimension_semantics<parallel>, #tpu.dimension_semantics<arbitrary>], iteration_bounds = array<i64: 1, 4>, scalar_prefetch = 0 : i64, scratch_operands = 1 : i64, tpu.core_type = #tpu.core_type<tc>, window_params = [{transform_indices = @transform_0, window_bounds = array<i64: 8, 512>}, {transform_indices = @transform_1, window_bounds = array<i64: 512, 1024>}, {transform_indices = @transform_2, window_bounds = array<i64: 1, 1024>}, {transform_indices = @transform_3, window_bounds = array<i64: 1024, 512>}, {pipeline_mode = #tpu.pipeline_mode<synchronous>, transform_indices = @transform_4, window_bounds = array<i64: 1, 512>}, {transform_indices = @transform_5, window_bounds = array<i64: 8, 512>}]} {
    %c0_i32 = arith.constant 0 : i32
    %0 = arith.cmpi eq, %arg1, %c0_i32 : i32
    %1 = arith.extui %0 : i1 to i32
    %c0_i32_0 = arith.constant 0 : i32
    %2 = arith.cmpi ne, %1, %c0_i32_0 : i32
    scf.if %2 {
      %cst_15 = arith.constant 0.000000e+00 : f32
      %20 = vector.broadcast %cst_15 : f32 to vector<8x512xf32>
      %c0_16 = arith.constant 0 : index
      %c0_17 = arith.constant 0 : index
      %21 = vector.load %arg8[%c0_16, %c0_17] : memref<8x512xf32, #tpu.memory_space<vmem>>, vector<8x512xf32>
      tpu.vector_store %arg8[%c0_16, %c0_17], %20 {strides = array<i32>} : memref<8x512xf32, #tpu.memory_space<vmem>>, vector<8x512xf32>,
    } else {
    }
    %c0 = arith.constant 0 : index
    %c0_1 = arith.constant 0 : index
    %3 = vector.load %arg2[%c0, %c0_1] : memref<8x512xbf16, #tpu.memory_space<vmem>>, vector<8x512xbf16>
    %c0_2 = arith.constant 0 : index
    %c0_3 = arith.constant 0 : index
    %4 = vector.load %arg3[%c0_2, %c0_3] : memref<512x1024xbf16, #tpu.memory_space<vmem>>, vector<512x1024xbf16>
    %cst = arith.constant dense<0.000000e+00> : vector<8x1024xf32>
    %5 = tpu.matmul %3, %4, %cst {dimension_numbers = #tpu.dot_dimension_numbers<[1], [0], [0], [1], [0, 0, 1, 1], [], []>} : vector<8x512xbf16>, vector<512x1024xbf16>, vector<8x1024xf32> -> vector<8x1024xf32>
    %c0_4 = arith.constant 0 : index
    %c0_5 = arith.constant 0 : index
    %6 = vector.load %arg4[%c0_4, %c0_5] : memref<1x1024xf32, #tpu.memory_space<vmem>>, vector<1x1024xf32>
    %7 = vector.broadcast %6 : vector<1x1024xf32> to vector<8x1024xf32>
    %8 = arith.addf %5, %7 : vector<8x1024xf32>
    %cst_6 = arith.constant 0.000000e+00 : f32
    %9 = vector.broadcast %cst_6 : f32 to vector<8x1024xf32>
    %10 = arith.maximumf %8, %9 : vector<8x1024xf32>
    %c0_7 = arith.constant 0 : index
    %c0_8 = arith.constant 0 : index
    %11 = vector.load %arg8[%c0_7, %c0_8] : memref<8x512xf32, #tpu.memory_space<vmem>>, vector<8x512xf32>
    %12 = arith.truncf %10 : vector<8x1024xf32> to vector<8x1024xbf16>
    %c0_9 = arith.constant 0 : index
    %c0_10 = arith.constant 0 : index
    %13 = vector.load %arg5[%c0_9, %c0_10] : memref<1024x512xbf16, #tpu.memory_space<vmem>>, vector<1024x512xbf16>
    %cst_11 = arith.constant dense<0.000000e+00> : vector<8x512xf32>
    %14 = tpu.matmul %12, %13, %cst_11 {dimension_numbers = #tpu.dot_dimension_numbers<[1], [0], [0], [1], [0, 0, 1, 1], [], []>} : vector<8x1024xbf16>, vector<1024x512xbf16>, vector<8x512xf32> -> vector<8x512xf32>
    %15 = arith.addf %11, %14 : vector<8x512xf32>
    %c0_12 = arith.constant 0 : index
    %c0_13 = arith.constant 0 : index
    %16 = vector.load %arg8[%c0_12, %c0_13] : memref<8x512xf32, #tpu.memory_space<vmem>>, vector<8x512xf32>
    tpu.vector_store %arg8[%c0_12, %c0_13], %15 {strides = array<i32>} : memref<8x512xf32, #tpu.memory_space<vmem>>, vector<8x512xf32>,
    %c3_i32 = arith.constant 3 : i32
    %17 = arith.cmpi eq, %arg1, %c3_i32 : i32
    %18 = arith.extui %17 : i1 to i32
    %c0_i32_14 = arith.constant 0 : i32
    %19 = arith.cmpi ne, %18, %c0_i32_14 : i32
    scf.if %19 {
      %c0_15 = arith.constant 0 : index
      %c0_16 = arith.constant 0 : index
      %20 = vector.load %arg8[%c0_15, %c0_16] : memref<8x512xf32, #tpu.memory_space<vmem>>, vector<8x512xf32>
      %c0_17 = arith.constant 0 : index
      %c0_18 = arith.constant 0 : index
      %21 = vector.load %arg6[%c0_17, %c0_18] : memref<1x512xf32, #tpu.memory_space<vmem>>, vector<1x512xf32>
      %22 = vector.broadcast %21 : vector<1x512xf32> to vector<8x512xf32>
      %23 = arith.addf %20, %22 : vector<8x512xf32>
      %c0_19 = arith.constant 0 : index
      %c0_20 = arith.constant 0 : index
      %24 = vector.load %arg7[%c0_19, %c0_20] : memref<8x512xf32, #tpu.memory_space<vmem>>, vector<8x512xf32>
      tpu.vector_store %arg7[%c0_19, %c0_20], %23 {strides = array<i32>} : memref<8x512xf32, #tpu.memory_space<vmem>>, vector<8x512xf32>,
    } else {
    }
    return
  }
  func.func @transform_0(%arg0: i32, %arg1: i32) -> (i32, i32) {
    %c0_i32 = arith.constant 0 : i32
    %c0_i32_0 = arith.constant 0 : i32
    return %arg0, %c0_i32 : i32, i32
  }
  func.func @transform_1(%arg0: i32, %arg1: i32) -> (i32, i32) {
    %c0_i32 = arith.constant 0 : i32
    %c0_i32_0 = arith.constant 0 : i32
    return %c0_i32, %arg1 : i32, i32
  }
  func.func @transform_2(%arg0: i32, %arg1: i32) -> (i32, i32) {
    %c0_i32 = arith.constant 0 : i32
    %c0_i32_0 = arith.constant 0 : i32
    return %c0_i32, %arg1 : i32, i32
  }
  func.func @transform_3(%arg0: i32, %arg1: i32) -> (i32, i32) {
    %c0_i32 = arith.constant 0 : i32
    %c0_i32_0 = arith.constant 0 : i32
    return %arg1, %c0_i32 : i32, i32
  }
  func.func @transform_4(%arg0: i32, %arg1: i32) -> (i32, i32) {
    %c0_i32 = arith.constant 0 : i32
    %c0_i32_0 = arith.constant 0 : i32
    %c0_i32_1 = arith.constant 0 : i32
    return %c0_i32, %c0_i32_0 : i32, i32
  }
  func.func @transform_5(%arg0: i32, %arg1: i32) -> (i32, i32) {
    %c0_i32 = arith.constant 0 : i32
    %c0_i32_0 = arith.constant 0 : i32
    return %arg0, %c0_i32 : i32, i32
  }
}

</mosaic_0001>

<llo_original>
// kernel: tpu_custom_call.1
$region0: #{tpu_custom_call.1}
  #allocation0 [shape = 'u32[]', space=smem, size = 0x4, offset = 0x4, fixed_abs, tag = 'smem constant byte address 0x4 - core index']
  #allocation1 [shape = 'u32[72,128]{1,0:T(1,128)}', space=vmem, size = 0x9000, scoped, tag = 'internal scratch']
  #allocation2 [shape = 'f32[8,512]{1,0:T(8,128)}', space=vmem, size = 0x4000, scoped, tag = 'scratch operand']
  %s0 = inlined_call_operand.hbm [shape: bf16[8,512], index: 0, kind: input, shape index: {}]
  %s1 = inlined_call_operand.hbm [shape: bf16[512,4096], index: 1, kind: input, shape index: {}]
  %s2 = inlined_call_operand.hbm [shape: f32[1,4096], index: 2, kind: input, shape index: {}]
  %s3 = inlined_call_operand.hbm [shape: bf16[4096,512], index: 3, kind: input, shape index: {}]
  %s4 = inlined_call_operand.hbm [shape: f32[1,512], index: 4, kind: input, shape index: {}]
  %s5 = inlined_call_operand.hbm [shape: f32[8,512], index: 5, kind: output, shape index: {}]
  %s6 = sld [smem:[#allocation0]]
  $region81: #{tpu_custom_call.1} parent=0
    _
  %s8 = ssub.s32 1, %s6
  %s9 = scalar_select 0, %s8, %s6
  $region1: #{tpu_custom_call.1} parent=0
    #allocation3 [shape = 'u8[8192]{0}', space=vmem, size = 0x2000, scoped, tag = 'input window, operand 0, single buffered']
    #allocation4 [shape = 's32[2]{0}', space=sflag, size = 0x8, scoped, tag = 'scoped memory for tpu_custom_call.1']
    #allocation5 [shape = 's32[2]{0}', space=sflag, size = 0x8, scoped, tag = 'scoped memory for tpu_custom_call.1']
    #allocation6 [shape = 'u8[2097152]{0}', space=vmem, size = 0x200000, scoped, tag = 'input window, operand 1']
    #allocation7 [shape = 's32[2]{0}', space=sflag, size = 0x8, scoped, tag = 'scoped memory for tpu_custom_call.1']
    #allocation8 [shape = 'u8[8192]{0}', space=vmem, size = 0x2000, scoped, tag = 'input window, operand 2']
    #allocation9 [shape = 'u8[2097152]{0}', space=vmem, size = 0x200000, scoped, tag = 'input window, operand 3']
    #allocation10 [shape = 's32[2]{0}', space=sflag, size = 0x8, scoped, tag = 'scoped memory for tpu_custom_call.1']
    #allocation11 [shape = 'u8[2048]{0}', space=vmem, size = 0x800, scoped, tag = 'input window, operand 4, single buffered']
    #allocation12 [shape = 'u8[16384]{0}', space=vmem, size = 0x4000, scoped, tag = 'output window, operand 0, single buffered']
    %10 = vsyncpa [#allocation4], 0
    %11 = vsyncpa [#allocation7], 0
    %s12 = scalar_lea.sflag [#allocation7], 1
    %13 = vsyncpa %s12, 0
    %14 = vsyncpa [#allocation10], 0
    %s15 = scalar_lea.sflag [#allocation10], 1
    %16 = vsyncpa %s15, 0
    %17 = vsyncpa [#allocation5], 0
    loop: start=0, step=1, limit=6
    $region2: #{tpu_custom_call.1} parent=1 // loop_pre_header
      _
    $region3: #{tpu_custom_call.1} parent=1 // loop_header
      %s19 = sphi 0, %s23
      %p20 = scmp.ge.s32.totalorder %s19, 6
      %s26 = sphi 0, %s38
      %s27 = sphi 0, %s34
      %s28 = sphi 0, %s26
      %s29 = sphi 0, %s27
      %s30 = sphi 0, %s28
      %s31 = sphi 0, %s29
      %s41 = sphi 0, %s43
      %s44 = sphi 0, %s41
      %s45 = sphi 0, %s44
      %s61 = sphi 0, %s45
      %s67 = sphi 0, %s69
      %s70 = sphi 0, %s67
      %s71 = sphi 0, %s70
      %s87 = sphi 0, %s71
      %s93 = sphi 0, %s95
      %s96 = sphi 0, %s93
      %s97 = sphi 0, %s96
      %s113 = sphi 0, %s97
      %s119 = sphi 0, %s121
      %s122 = sphi 0, %s119
      %s123 = sphi 0, %s122
      %s139 = sphi 0, %s123
      %s143 = sphi 0, %s143
      %s145 = sphi 0, %s143
      %s146 = sphi 0, %s145
      %s160 = sphi 0, %s146
      %s166 = sphi 0, %s168
      %s169 = sphi 0, %s166
      %s170 = sphi 0, %s169
      %s186 = sphi 0, %s170
    $region4: #{tpu_custom_call.1} parent=1 // loop_header_branch
      %22 = sbr.rel (%p20) target = $region8
    $region5: #{tpu_custom_call.1} parent=1 // loop_body
      %s24 = ssub.s32 %s19, 1
      %s25 = ssub.s32 %s19, 2
      %s32 = sadd.s32 1, %s27
      %p33 = scmp.ge.s32.totalorder %s32, 4
      %s34 = scalar_select %p33, 0, %s32
      %s35 = sadd.s32 1, %s26
      %s36 = scalar_select %p33, %s35, %s26
      %p37 = scmp.ge.s32.totalorder %s36, 1
      %s38 = scalar_select %p37, 0, %s36
      %s39 = ssub.s32 %s26, %s38
      %p40 = scmp.eq.s32.totalorder %s39, 0
      %s42 = sadd.s32 %s41, 1
      %s43 = scalar_select %p40, %s41, %s42
      %p46 = pneg %p40
      %p47 = scmp.eq.s32.totalorder %s19, 3
      %p48 = por %p46, %p47
      %p49 = scmp.ne.s32.totalorder %s41, %s44
      %p50 = scmp.eq.s32.totalorder %s19, 0
      %p51 = por %p49, %p50
      %p52 = scmp.ne.s32.totalorder %s41, %s44
      %p53 = scmp.eq.s32.totalorder %s24, 3
      %p54 = por %p52, %p53
      %p55 = scmp.ne.s32.totalorder %s44, %s45
      %p56 = scmp.eq.s32.totalorder %s24, 0
      %p57 = por %p55, %p56
      %p58 = scmp.ne.s32.totalorder %s44, %s45
      %p59 = scmp.eq.s32.totalorder %s25, 3
      %p60 = por %p58, %p59
      %p62 = scmp.ne.s32.totalorder %s45, %s61
      %p63 = scmp.eq.s32.totalorder %s25, 0
      %p64 = por %p62, %p63
      %s65 = ssub.s32 %s27, %s34
      %p66 = scmp.eq.s32.totalorder %s65, 0
      %s68 = sadd.s32 %s67, 1
      %s69 = scalar_select %p66, %s67, %s68
      %p72 = pneg %p66
      %p73 = scmp.eq.s32.totalorder %s19, 3
      %p74 = por %p72, %p73
      %p75 = scmp.ne.s32.totalorder %s67, %s70
      %p76 = scmp.eq.s32.totalorder %s19, 0
      %p77 = por %p75, %p76
      %p78 = scmp.ne.s32.totalorder %s67, %s70
      %p79 = scmp.eq.s32.totalorder %s24, 3
      %p80 = por %p78, %p79
      %p81 = scmp.ne.s32.totalorder %s70, %s71
      %p82 = scmp.eq.s32.totalorder %s24, 0
      %p83 = por %p81, %p82
      %p84 = scmp.ne.s32.totalorder %s70, %s71
      %p85 = scmp.eq.s32.totalorder %s25, 3
      %p86 = por %p84, %p85
      %p88 = scmp.ne.s32.totalorder %s71, %s87
      %p89 = scmp.eq.s32.totalorder %s25, 0
      %p90 = por %p88, %p89
      %s91 = ssub.s32 %s27, %s34
      %p92 = scmp.eq.s32.totalorder %s91, 0
      %s94 = sadd.s32 %s93, 1
      %s95 = scalar_select %p92, %s93, %s94
      %p98 = pneg %p92
      %p99 = scmp.eq.s32.totalorder %s19, 3
      %p100 = por %p98, %p99
      %p101 = scmp.ne.s32.totalorder %s93, %s96
      %p102 = scmp.eq.s32.totalorder %s19, 0
      %p103 = por %p101, %p102
      %p104 = scmp.ne.s32.totalorder %s93, %s96
      %p105 = scmp.eq.s32.totalorder %s24, 3
      %p106 = por %p104, %p105
      %p107 = scmp.ne.s32.totalorder %s96, %s97
      %p108 = scmp.eq.s32.totalorder %s24, 0
      %p109 = por %p107, %p108
      %p110 = scmp.ne.s32.totalorder %s96, %s97
      %p111 = scmp.eq.s32.totalorder %s25, 3
      %p112 = por %p110, %p111
      %p114 = scmp.ne.s32.totalorder %s97, %s113
      %p115 = scmp.eq.s32.totalorder %s25, 0
      %p116 = por %p114, %p115
      %s117 = ssub.s32 %s27, %s34
      %p118 = scmp.eq.s32.totalorder %s117, 0
      %s120 = sadd.s32 %s119, 1
      %s121 = scalar_select %p118, %s119, %s120
      %p124 = pneg %p118
      %p125 = scmp.eq.s32.totalorder %s19, 3
      %p126 = por %p124, %p125
      %p127 = scmp.ne.s32.totalorder %s119, %s122
      %p128 = scmp.eq.s32.totalorder %s19, 0
      %p129 = por %p127, %p128
      %p130 = scmp.ne.s32.totalorder %s119, %s122
      %p131 = scmp.eq.s32.totalorder %s24, 3
      %p132 = por %p130, %p131
      %p133 = scmp.ne.s32.totalorder %s122, %s123
      %p134 = scmp.eq.s32.totalorder %s24, 0
      %p135 = por %p133, %p134
      %p136 = scmp.ne.s32.totalorder %s122, %s123
      %p137 = scmp.eq.s32.totalorder %s25, 3
      %p138 = por %p136, %p137
      %p140 = scmp.ne.s32.totalorder %s123, %s139
      %p141 = scmp.eq.s32.totalorder %s25, 0
      %p142 = por %p140, %p141
      %s144 = sadd.s32 %s143, 1
      %p147 = scmp.eq.s32.totalorder %s19, 3
      %p148 = scmp.ne.s32.totalorder %s143, %s145
      %p149 = scmp.eq.s32.totalorder %s19, 0
      %p150 = por %p148, %p149
      %p151 = scmp.ne.s32.totalorder %s143, %s145
      %p152 = scmp.eq.s32.totalorder %s24, 3
      %p153 = por %p151, %p152
      %p154 = scmp.ne.s32.totalorder %s145, %s146
      %p155 = scmp.eq.s32.totalorder %s24, 0
      %p156 = por %p154, %p155
      %p157 = scmp.ne.s32.totalorder %s145, %s146
      %p158 = scmp.eq.s32.totalorder %s25, 3
      %p159 = por %p157, %p158
      %p161 = scmp.ne.s32.totalorder %s146, %s160
      %p162 = scmp.eq.s32.totalorder %s25, 0
      %p163 = por %p161, %p162
      %s164 = ssub.s32 %s26, %s38
      %p165 = scmp.eq.s32.totalorder %s164, 0
      %s167 = sadd.s32 %s166, 1
      %s168 = scalar_select %p165, %s166, %s167
      %p171 = pneg %p165
      %p172 = scmp.eq.s32.totalorder %s19, 3
      %p173 = por %p171, %p172
      %p174 = scmp.ne.s32.totalorder %s166, %s169
      %p175 = scmp.eq.s32.totalorder %s19, 0
      %p176 = por %p174, %p175
      %p177 = scmp.ne.s32.totalorder %s166, %s169
      %p178 = scmp.eq.s32.totalorder %s24, 3
      %p179 = por %p177, %p178
      %p180 = scmp.ne.s32.totalorder %s169, %s170
      %p181 = scmp.eq.s32.totalorder %s24, 0
      %p182 = por %p180, %p181
      %p183 = scmp.ne.s32.totalorder %s169, %s170
      %p184 = scmp.eq.s32.totalorder %s25, 3
      %p185 = por %p183, %p184
      %p187 = scmp.ne.s32.totalorder %s170, %s186
      %p188 = scmp.eq.s32.totalorder %s25, 0
      %p189 = por %p187, %p188
      %p190 = scmp.le.s32.totalorder 1, %s19
      %p191 = scmp.lt.s32.totalorder %s19, 5
      %p192 = pnand %p190, %p191
      %p193 = pneg %p192
      // Predicated region
      $region9: #{tpu_custom_call.1} parent=5 // pred_check
        _
      $region10: #{tpu_custom_call.1} parent=5 // pred_check_branch
        %195 = sbr.rel (%p192) target = $region12
      $region11: #{tpu_custom_call.1} parent=5 // pred_region
        %s196 = ssub.s32 %s19, 1
        // Predicated region
        $region13: #{tpu_custom_call.1} parent=11 // pred_check
          %p197 = pneg %p57
        $region14: #{tpu_custom_call.1} parent=11 // pred_check_branch
          %199 = sbr.rel (%p197) target = $region16
        $region15: #{tpu_custom_call.1} parent=11 // pred_region
          %201 = vsyncadd [#allocation4], 0
          %s202 = smul.addr %s28, 4
          %s203 = smul.addr %s202, 4
          %s204 = scalar_lea.hbm %s0, %s203
          %s206 = sshll.u32 %s204, 4
          %s207 = int_to_ptr.hbm [resolvable:$true] %s206
          %s208 = sshll.u32 [#allocation3], 4
          %s209 = int_to_ptr.vmem [resolvable:$true] %s208
          %211 = dma.hbm_to_vmem [thread:$0]  %s207, 256, %s209, [#allocation4]
        $region16: #{tpu_custom_call.1} parent=11 // pred_fallthru
          _
        // Predicated region
        $region17: #{tpu_custom_call.1} parent=11 // pred_check
          %p212 = pneg %p156
        $region18: #{tpu_custom_call.1} parent=11 // pred_check_branch
          %214 = sbr.rel (%p212) target = $region20
        $region19: #{tpu_custom_call.1} parent=11 // pred_region
          %216 = vsyncadd [#allocation10], 0
          %s218 = sshll.u32 %s4, 4
          %s219 = int_to_ptr.hbm [resolvable:$true] %s218
          %s220 = sshll.u32 [#allocation11], 4
          %s221 = int_to_ptr.vmem [resolvable:$true] %s220
          %223 = dma.hbm_to_vmem [thread:$0]  %s219, 64, %s221, [#allocation10]
        $region20: #{tpu_custom_call.1} parent=11 // pred_fallthru
          _
      $region12: #{tpu_custom_call.1} parent=5 // pred_fallthru
        _
      %p224 = scmp.lt.s32.totalorder %s19, 4
      // Predicated region
      $region21: #{tpu_custom_call.1} parent=5 // pred_check
        %p225 = pneg %p224
      $region22: #{tpu_custom_call.1} parent=5 // pred_check_branch
        %227 = sbr.rel (%p225) target = $region24
      $region23: #{tpu_custom_call.1} parent=5 // pred_region
        // Predicated region
        $region25: #{tpu_custom_call.1} parent=23 // pred_check
          %p228 = pneg %p77
        $region26: #{tpu_custom_call.1} parent=23 // pred_check_branch
          %230 = sbr.rel (%p228) target = $region28
        $region27: #{tpu_custom_call.1} parent=23 // pred_region
          %s231 = sand.u32 %s19, 1
          %s232 = scalar_lea.sflag [#allocation7], %s231
          %s233 = sand.u32 %s67, 1
          %s234 = smul.addr %s233, 2048
          %s235 = scalar_lea.vmem [#allocation6], %s234
          %s236 = smul.u32 8, %s27
          %238 = vsyncadd %s232, 0
          %s239 = smul.addr %s236, 4
          %s240 = scalar_lea.hbm %s1, %s239
          %s241 = sshll.u32 %s240, 4
          %s242 = int_to_ptr.hbm [resolvable:$true] %s241
          %s243 = sshll.u32 %s235, 4
          %s244 = int_to_ptr.vmem [resolvable:$true] %s243
          %249 = dma.hbm_to_vmem [thread:$0]  %s242, 32768, %s244, %s232, 2048, 512, 32
        $region28: #{tpu_custom_call.1} parent=23 // pred_fallthru
          _
        // Predicated region
        $region29: #{tpu_custom_call.1} parent=23 // pred_check
          %p250 = pneg %p103
        $region30: #{tpu_custom_call.1} parent=23 // pred_check_branch
          %252 = sbr.rel (%p250) target = $region32
        $region31: #{tpu_custom_call.1} parent=23 // pred_region
          %s253 = sand.u32 %s19, 1
          %s254 = scalar_lea.sflag [#allocation7], %s253
          %s255 = sand.u32 %s93, 1
          %s256 = smul.addr %s255, 8
          %s257 = scalar_lea.vmem [#allocation8], %s256
          %s258 = smul.u32 8, %s27
          %260 = vsyncadd %s254, 0
          %s261 = scalar_lea.hbm %s2, %s258
          %s263 = sshll.u32 %s261, 4
          %s264 = int_to_ptr.hbm [resolvable:$true] %s263
          %s265 = sshll.u32 %s257, 4
          %s266 = int_to_ptr.vmem [resolvable:$true] %s265
          %268 = dma.hbm_to_vmem [thread:$0]  %s264, 128, %s266, %s254
        $region32: #{tpu_custom_call.1} parent=23 // pred_fallthru
          _
        // Predicated region
        $region33: #{tpu_custom_call.1} parent=23 // pred_check
          %p269 = pneg %p129
        $region34: #{tpu_custom_call.1} parent=23 // pred_check_branch
          %271 = sbr.rel (%p269) target = $region36
        $region35: #{tpu_custom_call.1} parent=23 // pred_region
          %s272 = sand.u32 %s19, 1
          %s273 = scalar_lea.sflag [#allocation10], %s272
          %s274 = sand.u32 %s119, 1
          %s275 = smul.addr %s274, 2048
          %s276 = scalar_lea.vmem [#allocation9], %s275
          %s277 = smul.u32 128, %s27
          %279 = vsyncadd %s273, 0
          %s280 = smul.addr %s277, 4
          %s281 = smul.addr %s280, 4
          %s282 = scalar_lea.hbm %s3, %s281
          %s283 = sshll.u32 %s282, 4
          %s284 = int_to_ptr.hbm [resolvable:$true] %s283
          %s285 = sshll.u32 %s276, 4
          %s286 = int_to_ptr.vmem [resolvable:$true] %s285
          %291 = dma.hbm_to_vmem [thread:$0]  %s284, 32768, %s286, %s273, 256, 256, 16
        $region36: #{tpu_custom_call.1} parent=23 // pred_fallthru
          _
      $region24: #{tpu_custom_call.1} parent=5 // pred_fallthru
        _
      %p292 = scmp.le.s32.totalorder 1, %s19
      %p293 = scmp.lt.s32.totalorder %s19, 5
      %p294 = pnand %p292, %p293
      %p295 = pneg %p294
      // Predicated region
      $region37: #{tpu_custom_call.1} parent=5 // pred_check
        _
      $region38: #{tpu_custom_call.1} parent=5 // pred_check_branch
        %297 = sbr.rel (%p294) target = $region40
      $region39: #{tpu_custom_call.1} parent=5 // pred_region
        %s298 = ssub.s32 %s19, 1
        // Predicated region
        $region41: #{tpu_custom_call.1} parent=39 // pred_check
          %p299 = pneg %p57
        $region42: #{tpu_custom_call.1} parent=39 // pred_check_branch
          %301 = sbr.rel (%p299) target = $region44
        $region43: #{tpu_custom_call.1} parent=39 // pred_region
          %303 = dma.done [#allocation4], 256
        $region44: #{tpu_custom_call.1} parent=39 // pred_fallthru
          _
        %s304 = sand.u32 %s24, 1
        %s305 = scalar_lea.sflag [#allocation7], %s304
        %s306 = sand.u32 %s70, 1
        %s307 = smul.addr %s306, 2048
        %s308 = scalar_lea.vmem [#allocation6], %s307
        // Predicated region
        $region45: #{tpu_custom_call.1} parent=39 // pred_check
          %p309 = pneg %p83
        $region46: #{tpu_custom_call.1} parent=39 // pred_check_branch
          %311 = sbr.rel (%p309) target = $region48
        $region47: #{tpu_custom_call.1} parent=39 // pred_region
          %313 = dma.done %s305, 32768
        $region48: #{tpu_custom_call.1} parent=39 // pred_fallthru
          _
        %s314 = sand.u32 %s24, 1
        %s315 = scalar_lea.sflag [#allocation7], %s314
        %s316 = sand.u32 %s96, 1
        %s317 = smul.addr %s316, 8
        %s318 = scalar_lea.vmem [#allocation8], %s317
        // Predicated region
        $region49: #{tpu_custom_call.1} parent=39 // pred_check
          %p319 = pneg %p109
        $region50: #{tpu_custom_call.1} parent=39 // pred_check_branch
          %321 = sbr.rel (%p319) target = $region52
        $region51: #{tpu_custom_call.1} parent=39 // pred_region
          %323 = dma.done %s315, 128
        $region52: #{tpu_custom_call.1} parent=39 // pred_fallthru
          _
        %s324 = sand.u32 %s24, 1
        %s325 = scalar_lea.sflag [#allocation10], %s324
        %s326 = sand.u32 %s122, 1
        %s327 = smul.addr %s326, 2048
        %s328 = scalar_lea.vmem [#allocation9], %s327
        // Predicated region
        $region53: #{tpu_custom_call.1} parent=39 // pred_check
          %p329 = pneg %p135
        $region54: #{tpu_custom_call.1} parent=39 // pred_check_branch
          %331 = sbr.rel (%p329) target = $region56
        $region55: #{tpu_custom_call.1} parent=39 // pred_region
          %333 = dma.done %s325, 32768
        $region56: #{tpu_custom_call.1} parent=39 // pred_fallthru
          _
        // Predicated region
        $region57: #{tpu_custom_call.1} parent=39 // pred_check
          %p334 = pneg %p156
        $region58: #{tpu_custom_call.1} parent=39 // pred_check_branch
          %336 = sbr.rel (%p334) target = $region60
        $region59: #{tpu_custom_call.1} parent=39 // pred_region
          %338 = dma.done [#allocation10], 64
        $region60: #{tpu_custom_call.1} parent=39 // pred_fallthru
          _
        %p339 = pneg %p57
        %p340 = pneg %p54
        %s341 = sand.u32 %s24, 1
        %s342 = scalar_lea.sflag [#allocation7], %s341
        %s343 = sand.u32 %s70, 1
        %s344 = smul.addr %s343, 2048
        %s345 = scalar_lea.vmem [#allocation6], %s344
        %p346 = pneg %p83
        %p347 = pneg %p80
        %s348 = sand.u32 %s24, 1
        %s349 = scalar_lea.sflag [#allocation7], %s348
        %s350 = sand.u32 %s96, 1
        %s351 = smul.addr %s350, 8
        %s352 = scalar_lea.vmem [#allocation8], %s351
        %p353 = pneg %p109
        %p354 = pneg %p106
        %s355 = sand.u32 %s24, 1
        %s356 = scalar_lea.sflag [#allocation10], %s355
        %s357 = sand.u32 %s122, 1
        %s358 = smul.addr %s357, 2048
        %s359 = scalar_lea.vmem [#allocation9], %s358
        %p360 = pneg %p135
        %p361 = pneg %p132
        %p362 = pneg %p156
        %p363 = pneg %p153
        %p364 = pneg %p182
        %p365 = pneg %p179
        %s366 = smul.u32 8, %s29
        %s367 = smul.u32 8, %s29
        %s368 = smul.u32 128, %s29
        %p369 = scmp.eq.s32.totalorder %s29, 0
        // Predicated region
        $region61: #{tpu_custom_call.1} parent=39 // pred_check
          %p370 = pneg %p369
        $region62: #{tpu_custom_call.1} parent=39 // pred_check_branch
          %372 = sbr.rel (%p370) target = $region64
        $region63: #{tpu_custom_call.1} parent=39 // pred_region
          %373 = vst [vmem:[#allocation2] sm:$0xff] 0.0
          %374 = vst [vmem:[#allocation2 + $0x8] sm:$0xff] 0.0
          %375 = vst [vmem:[#allocation2 + $0x10] sm:$0xff] 0.0
          %376 = vst [vmem:[#allocation2 + $0x18] sm:$0xff] 0.0
        $region64: #{tpu_custom_call.1} parent=39 // pred_fallthru
          _
        %v377 = vld [vmem:[#allocation3] sm:$0xff]
        %v378 = vld [vmem:[#allocation3 + $0x8] sm:$0xff]
        %v379 = vld [vmem:[%s308] sm:$0xff]
        %v380 = vld [vmem:[%s308 + $0x8] sm:$0xff]
        %v381 = vld [vmem:[%s308 + $0x10] sm:$0xff]
        %v382 = vld [vmem:[%s308 + $0x18] sm:$0xff]
        %v383 = vld [vmem:[%s308 + $0x20] sm:$0xff]
        %v384 = vld [vmem:[%s308 + $0x28] sm:$0xff]
        %v385 = vld [vmem:[%s308 + $0x30] sm:$0xff]
        %v386 = vld [vmem:[%s308 + $0x38] sm:$0xff]
        %v387 = vld [vmem:[%s308 + $0x40] sm:$0xff]
        %v388 = vld [vmem:[%s308 + $0x48] sm:$0xff]
        %v389 = vld [vmem:[%s308 + $0x50] sm:$0xff]
        %v390 = vld [vmem:[%s308 + $0x58] sm:$0xff]
        %v391 = vld [vmem:[%s308 + $0x60] sm:$0xff]
        %v392 = vld [vmem:[%s308 + $0x68] sm:$0xff]
        %v393 = vld [vmem:[%s308 + $0x70] sm:$0xff]
        %v394 = vld [vmem:[%s308 + $0x78] sm:$0xff]
        %v395 = vld [vmem:[%s308 + $0x80] sm:$0xff]
        %v396 = vld [vmem:[%s308 + $0x88] sm:$0xff]
        %v397 = vld [vmem:[%s308 + $0x90] sm:$0xff]
        %v398 = vld [vmem:[%s308 + $0x98] sm:$0xff]
        %v399 = vld [vmem:[%s308 + $0xa0] sm:$0xff]
        %v400 = vld [vmem:[%s308 + $0xa8] sm:$0xff]
        %v401 = vld [vmem:[%s308 + $0xb0] sm:$0xff]
        %v402 = vld [vmem:[%s308 + $0xb8] sm:$0xff]
        %v403 = vld [vmem:[%s308 + $0xc0] sm:$0xff]
        %v404 = vld [vmem:[%s308 + $0xc8] sm:$0xff]
        %v405 = vld [vmem:[%s308 + $0xd0] sm:$0xff]
        %v406 = vld [vmem:[%s308 + $0xd8] sm:$0xff]
        %v407 = vld [vmem:[%s308 + $0xe0] sm:$0xff]
        %v408 = vld [vmem:[%s308 + $0xe8] sm:$0xff]
        %v409 = vld [vmem:[%s308 + $0xf0] sm:$0xff]
        %v410 = vld [vmem:[%s308 + $0xf8] sm:$0xff]
        %v411 = vld [vmem:[%s308 + $0x100] sm:$0xff]
        %v412 = vld [vmem:[%s308 + $0x108] sm:$0xff]
        %v413 = vld [vmem:[%s308 + $0x110] sm:$0xff]
        %v414 = vld [vmem:[%s308 + $0x118] sm:$0xff]
        %v415 = vld [vmem:[%s308 + $0x120] sm:$0xff]
        %v416 = vld [vmem:[%s308 + $0x128] sm:$0xff]
        %v417 = vld [vmem:[%s308 + $0x130] sm:$0xff]
        %v418 = vld [vmem:[%s308 + $0x138] sm:$0xff]
        %v419 = vld [vmem:[%s308 + $0x140] sm:$0xff]
        %v420 = vld [vmem:[%s308 + $0x148] sm:$0xff]
        %v421 = vld [vmem:[%s308 + $0x150] sm:$0xff]
        %v422 = vld [vmem:[%s308 + $0x158] sm:$0xff]
        %v423 = vld [vmem:[%s308 + $0x160] sm:$0xff]
        %v424 = vld [vmem:[%s308 + $0x168] sm:$0xff]
        %v425 = vld [vmem:[%s308 + $0x170] sm:$0xff]
        %v426 = vld [vmem:[%s308 + $0x178] sm:$0xff]
        %v427 = vld [vmem:[%s308 + $0x180] sm:$0xff]
        %v428 = vld [vmem:[%s308 + $0x188] sm:$0xff]
        %v429 = vld [vmem:[%s308 + $0x190] sm:$0xff]
        %v430 = vld [vmem:[%s308 + $0x198] sm:$0xff]
        %v431 = vld [vmem:[%s308 + $0x1a0] sm:$0xff]
        %v432 = vld [vmem:[%s308 + $0x1a8] sm:$0xff]
        %v433 = vld [vmem:[%s308 + $0x1b0] sm:$0xff]
        %v434 = vld [vmem:[%s308 + $0x1b8] sm:$0xff]
        %v435 = vld [vmem:[%s308 + $0x1c0] sm:$0xff]
        %v436 = vld [vmem:[%s308 + $0x1c8] sm:$0xff]
        %v437 = vld [vmem:[%s308 + $0x1d0] sm:$0xff]
        %v438 = vld [vmem:[%s308 + $0x1d8] sm:$0xff]
        %v439 = vld [vmem:[%s308 + $0x1e0] sm:$0xff]
        %v440 = vld [vmem:[%s308 + $0x1e8] sm:$0xff]
        %v441 = vld [vmem:[%s308 + $0x1f0] sm:$0xff]
        %v442 = vld [vmem:[%s308 + $0x1f8] sm:$0xff]
        %v443 = vld [vmem:[%s308 + $0x200] sm:$0xff]
        %v444 = vld [vmem:[%s308 + $0x208] sm:$0xff]
        %v445 = vld [vmem:[%s308 + $0x210] sm:$0xff]
        %v446 = vld [vmem:[%s308 + $0x218] sm:$0xff]
        %v447 = vld [vmem:[%s308 + $0x220] sm:$0xff]
        %v448 = vld [vmem:[%s308 + $0x228] sm:$0xff]
        %v449 = vld [vmem:[%s308 + $0x230] sm:$0xff]
        %v450 = vld [vmem:[%s308 + $0x238] sm:$0xff]
        %v451 = vld [vmem:[%s308 + $0x240] sm:$0xff]
        %v452 = vld [vmem:[%s308 + $0x248] sm:$0xff]
        %v453 = vld [vmem:[%s308 + $0x250] sm:$0xff]
        %v454 = vld [vmem:[%s308 + $0x258] sm:$0xff]
        %v455 = vld [vmem:[%s308 + $0x260] sm:$0xff]
        %v456 = vld [vmem:[%s308 + $0x268] sm:$0xff]
        %v457 = vld [vmem:[%s308 + $0x270] sm:$0xff]
        %v458 = vld [vmem:[%s308 + $0x278] sm:$0xff]
        %v459 = vld [vmem:[%s308 + $0x280] sm:$0xff]
        %v460 = vld [vmem:[%s308 + $0x288] sm:$0xff]
        %v461 = vld [vmem:[%s308 + $0x290] sm:$0xff]
        %v462 = vld [vmem:[%s308 + $0x298] sm:$0xff]
        %v463 = vld [vmem:[%s308 + $0x2a0] sm:$0xff]
        %v464 = vld [vmem:[%s308 + $0x2a8] sm:$0xff]
        %v465 = vld [vmem:[%s308 + $0x2b0] sm:$0xff]
        %v466 = vld [vmem:[%s308 + $0x2b8] sm:$0xff]
        %v467 = vld [vmem:[%s308 + $0x2c0] sm:$0xff]
        %v468 = vld [vmem:[%s308 + $0x2c8] sm:$0xff]
        %v469 = vld [vmem:[%s308 + $0x2d0] sm:$0xff]
        %v470 = vld [vmem:[%s308 + $0x2d8] sm:$0xff]
        %v471 = vld [vmem:[%s308 + $0x2e0] sm:$0xff]
        %v472 = vld [vmem:[%s308 + $0x2e8] sm:$0xff]
        %v473 = vld [vmem:[%s308 + $0x2f0] sm:$0xff]
        %v474 = vld [vmem:[%s308 + $0x2f8] sm:$0xff]
        %v475 = vld [vmem:[%s308 + $0x300] sm:$0xff]
        %v476 = vld [vmem:[%s308 + $0x308] sm:$0xff]
        %v477 = vld [vmem:[%s308 + $0x310] sm:$0xff]
        %v478 = vld [vmem:[%s308 + $0x318] sm:$0xff]
        %v479 = vld [vmem:[%s308 + $0x320] sm:$0xff]
        %v480 = vld [vmem:[%s308 + $0x328] sm:$0xff]
        %v481 = vld [vmem:[%s308 + $0x330] sm:$0xff]
        %v482 = vld [vmem:[%s308 + $0x338] sm:$0xff]
        %v483 = vld [vmem:[%s308 + $0x340] sm:$0xff]
        %v484 = vld [vmem:[%s308 + $0x348] sm:$0xff]
        %v485 = vld [vmem:[%s308 + $0x350] sm:$0xff]
        %v486 = vld [vmem:[%s308 + $0x358] sm:$0xff]
        %v487 = vld [vmem:[%s308 + $0x360] sm:$0xff]
        %v488 = vld [vmem:[%s308 + $0x368] sm:$0xff]
        %v489 = vld [vmem:[%s308 + $0x370] sm:$0xff]
        %v490 = vld [vmem:[%s308 + $0x378] sm:$0xff]
        %v491 = vld [vmem:[%s308 + $0x380] sm:$0xff]
        %v492 = vld [vmem:[%s308 + $0x388] sm:$0xff]
        %v493 = vld [vmem:[%s308 + $0x390] sm:$0xff]
        %v494 = vld [vmem:[%s308 + $0x398] sm:$0xff]
        %v495 = vld [vmem:[%s308 + $0x3a0] sm:$0xff]
        %v496 = vld [vmem:[%s308 + $0x3a8] sm:$0xff]
        %v497 = vld [vmem:[%s308 + $0x3b0] sm:$0xff]
        %v498 = vld [vmem:[%s308 + $0x3b8] sm:$0xff]
        %v499 = vld [vmem:[%s308 + $0x3c0] sm:$0xff]
        %v500 = vld [vmem:[%s308 + $0x3c8] sm:$0xff]
        %v501 = vld [vmem:[%s308 + $0x3d0] sm:$0xff]
        %v502 = vld [vmem:[%s308 + $0x3d8] sm:$0xff]
        %v503 = vld [vmem:[%s308 + $0x3e0] sm:$0xff]
        %v504 = vld [vmem:[%s308 + $0x3e8] sm:$0xff]
        %v505 = vld [vmem:[%s308 + $0x3f0] sm:$0xff]
        %v506 = vld [vmem:[%s308 + $0x3f8] sm:$0xff]
        %v507 = vld [vmem:[%s308 + $0x400] sm:$0xff]
        %v508 = vld [vmem:[%s308 + $0x408] sm:$0xff]
        %v509 = vld [vmem:[%s308 + $0x410] sm:$0xff]
        %v510 = vld [vmem:[%s308 + $0x418] sm:$0xff]
        %v511 = vld [vmem:[%s308 + $0x420] sm:$0xff]
        %v512 = vld [vmem:[%s308 + $0x428] sm:$0xff]
        %v513 = vld [vmem:[%s308 + $0x430] sm:$0xff]
        %v514 = vld [vmem:[%s308 + $0x438] sm:$0xff]
        %v515 = vld [vmem:[%s308 + $0x440] sm:$0xff]
        %v516 = vld [vmem:[%s308 + $0x448] sm:$0xff]
        %v517 = vld [vmem:[%s308 + $0x450] sm:$0xff]
        %v518 = vld [vmem:[%s308 + $0x458] sm:$0xff]
        %v519 = vld [vmem:[%s308 + $0x460] sm:$0xff]
        %v520 = vld [vmem:[%s308 + $0x468] sm:$0xff]
        %v521 = vld [vmem:[%s308 + $0x470] sm:$0xff]
        %v522 = vld [vmem:[%s308 + $0x478] sm:$0xff]
        %v523 = vld [vmem:[%s308 + $0x480] sm:$0xff]
        %v524 = vld [vmem:[%s308 + $0x488] sm:$0xff]
        %v525 = vld [vmem:[%s308 + $0x490] sm:$0xff]
        %v526 = vld [vmem:[%s308 + $0x498] sm:$0xff]
        %v527 = vld [vmem:[%s308 + $0x4a0] sm:$0xff]
        %v528 = vld [vmem:[%s308 + $0x4a8] sm:$0xff]
        %v529 = vld [vmem:[%s308 + $0x4b0] sm:$0xff]
        %v530 = vld [vmem:[%s308 + $0x4b8] sm:$0xff]
        %v531 = vld [vmem:[%s308 + $0x4c0] sm:$0xff]
        %v532 = vld [vmem:[%s308 + $0x4c8] sm:$0xff]
        %v533 = vld [vmem:[%s308 + $0x4d0] sm:$0xff]
        %v534 = vld [vmem:[%s308 + $0x4d8] sm:$0xff]
        %v535 = vld [vmem:[%s308 + $0x4e0] sm:$0xff]
        %v536 = vld [vmem:[%s308 + $0x4e8] sm:$0xff]
        %v537 = vld [vmem:[%s308 + $0x4f0] sm:$0xff]
        %v538 = vld [vmem:[%s308 + $0x4f8] sm:$0xff]
        %v539 = vld [vmem:[%s308 + $0x500] sm:$0xff]
        %v540 = vld [vmem:[%s308 + $0x508] sm:$0xff]
        %v541 = vld [vmem:[%s308 + $0x510] sm:$0xff]
        %v542 = vld [vmem:[%s308 + $0x518] sm:$0xff]
        %v543 = vld [vmem:[%s308 + $0x520] sm:$0xff]
        %v544 = vld [vmem:[%s308 + $0x528] sm:$0xff]
        %v545 = vld [vmem:[%s308 + $0x530] sm:$0xff]
        %v546 = vld [vmem:[%s308 + $0x538] sm:$0xff]
        %v547 = vld [vmem:[%s308 + $0x540] sm:$0xff]
        %v548 = vld [vmem:[%s308 + $0x548] sm:$0xff]
        %v549 = vld [vmem:[%s308 + $0x550] sm:$0xff]
        %v550 = vld [vmem:[%s308 + $0x558] sm:$0xff]
        %v551 = vld [vmem:[%s308 + $0x560] sm:$0xff]
        %v552 = vld [vmem:[%s308 + $0x568] sm:$0xff]
        %v553 = vld [vmem:[%s308 + $0x570] sm:$0xff]
        %v554 = vld [vmem:[%s308 + $0x578] sm:$0xff]
        %v555 = vld [vmem:[%s308 + $0x580] sm:$0xff]
        %v556 = vld [vmem:[%s308 + $0x588] sm:$0xff]
        %v557 = vld [vmem:[%s308 + $0x590] sm:$0xff]
        %v558 = vld [vmem:[%s308 + $0x598] sm:$0xff]
        %v559 = vld [vmem:[%s308 + $0x5a0] sm:$0xff]
        %v560 = vld [vmem:[%s308 + $0x5a8] sm:$0xff]
        %v561 = vld [vmem:[%s308 + $0x5b0] sm:$0xff]
        %v562 = vld [vmem:[%s308 + $0x5b8] sm:$0xff]
        %v563 = vld [vmem:[%s308 + $0x5c0] sm:$0xff]
        %v564 = vld [vmem:[%s308 + $0x5c8] sm:$0xff]
        %v565 = vld [vmem:[%s308 + $0x5d0] sm:$0xff]
        %v566 = vld [vmem:[%s308 + $0x5d8] sm:$0xff]
        %v567 = vld [vmem:[%s308 + $0x5e0] sm:$0xff]
        %v568 = vld [vmem:[%s308 + $0x5e8] sm:$0xff]
        %v569 = vld [vmem:[%s308 + $0x5f0] sm:$0xff]
        %v570 = vld [vmem:[%s308 + $0x5f8] sm:$0xff]
        %v571 = vld [vmem:[%s308 + $0x600] sm:$0xff]
        %v572 = vld [vmem:[%s308 + $0x608] sm:$0xff]
        %v573 = vld [vmem:[%s308 + $0x610] sm:$0xff]
        %v574 = vld [vmem:[%s308 + $0x618] sm:$0xff]
        %v575 = vld [vmem:[%s308 + $0x620] sm:$0xff]
        %v576 = vld [vmem:[%s308 + $0x628] sm:$0xff]
        %v577 = vld [vmem:[%s308 + $0x630] sm:$0xff]
        %v578 = vld [vmem:[%s308 + $0x638] sm:$0xff]
        %v579 = vld [vmem:[%s308 + $0x640] sm:$0xff]
        %v580 = vld [vmem:[%s308 + $0x648] sm:$0xff]
        %v581 = vld [vmem:[%s308 + $0x650] sm:$0xff]
        %v582 = vld [vmem:[%s308 + $0x658] sm:$0xff]
        %v583 = vld [vmem:[%s308 + $0x660] sm:$0xff]
        %v584 = vld [vmem:[%s308 + $0x668] sm:$0xff]
        %v585 = vld [vmem:[%s308 + $0x670] sm:$0xff]
        %v586 = vld [vmem:[%s308 + $0x678] sm:$0xff]
        %v587 = vld [vmem:[%s308 + $0x680] sm:$0xff]
        %v588 = vld [vmem:[%s308 + $0x688] sm:$0xff]
        %v589 = vld [vmem:[%s308 + $0x690] sm:$0xff]
        %v590 = vld [vmem:[%s308 + $0x698] sm:$0xff]
        %v591 = vld [vmem:[%s308 + $0x6a0] sm:$0xff]
        %v592 = vld [vmem:[%s308 + $0x6a8] sm:$0xff]
        %v593 = vld [vmem:[%s308 + $0x6b0] sm:$0xff]
        %v594 = vld [vmem:[%s308 + $0x6b8] sm:$0xff]
        %v595 = vld [vmem:[%s308 + $0x6c0] sm:$0xff]
        %v596 = vld [vmem:[%s308 + $0x6c8] sm:$0xff]
        %v597 = vld [vmem:[%s308 + $0x6d0] sm:$0xff]
        %v598 = vld [vmem:[%s308 + $0x6d8] sm:$0xff]
        %v599 = vld [vmem:[%s308 + $0x6e0] sm:$0xff]
        %v600 = vld [vmem:[%s308 + $0x6e8] sm:$0xff]
        %v601 = vld [vmem:[%s308 + $0x6f0] sm:$0xff]
        %v602 = vld [vmem:[%s308 + $0x6f8] sm:$0xff]
        %v603 = vld [vmem:[%s308 + $0x700] sm:$0xff]
        %v604 = vld [vmem:[%s308 + $0x708] sm:$0xff]
        %v605 = vld [vmem:[%s308 + $0x710] sm:$0xff]
        %v606 = vld [vmem:[%s308 + $0x718] sm:$0xff]
        %v607 = vld [vmem:[%s308 + $0x720] sm:$0xff]
        %v608 = vld [vmem:[%s308 + $0x728] sm:$0xff]
        %v609 = vld [vmem:[%s308 + $0x730] sm:$0xff]
        %v610 = vld [vmem:[%s308 + $0x738] sm:$0xff]
        %v611 = vld [vmem:[%s308 + $0x740] sm:$0xff]
        %v612 = vld [vmem:[%s308 + $0x748] sm:$0xff]
        %v613 = vld [vmem:[%s308 + $0x750] sm:$0xff]
        %v614 = vld [vmem:[%s308 + $0x758] sm:$0xff]
        %v615 = vld [vmem:[%s308 + $0x760] sm:$0xff]
        %v616 = vld [vmem:[%s308 + $0x768] sm:$0xff]
        %v617 = vld [vmem:[%s308 + $0x770] sm:$0xff]
        %v618 = vld [vmem:[%s308 + $0x778] sm:$0xff]
        %v619 = vld [vmem:[%s308 + $0x780] sm:$0xff]
        %v620 = vld [vmem:[%s308 + $0x788] sm:$0xff]
        %v621 = vld [vmem:[%s308 + $0x790] sm:$0xff]
        %v622 = vld [vmem:[%s308 + $0x798] sm:$0xff]
        %v623 = vld [vmem:[%s308 + $0x7a0] sm:$0xff]
        %v624 = vld [vmem:[%s308 + $0x7a8] sm:$0xff]
        %v625 = vld [vmem:[%s308 + $0x7b0] sm:$0xff]
        %v626 = vld [vmem:[%s308 + $0x7b8] sm:$0xff]
        %v627 = vld [vmem:[%s308 + $0x7c0] sm:$0xff]
        %v628 = vld [vmem:[%s308 + $0x7c8] sm:$0xff]
        %v629 = vld [vmem:[%s308 + $0x7d0] sm:$0xff]
        %v630 = vld [vmem:[%s308 + $0x7d8] sm:$0xff]
        %v631 = vld [vmem:[%s308 + $0x7e0] sm:$0xff]
        %v632 = vld [vmem:[%s308 + $0x7e8] sm:$0xff]
        %v633 = vld [vmem:[%s308 + $0x7f0] sm:$0xff]
        %v634 = vld [vmem:[%s308 + $0x7f8] sm:$0xff]
        %v635 = vld [vmem:[%s318] sm:$0xff]
        %v637 = vperm.slane %v635, 0
        %v638 = vperm.slane %v635, 1
        %v639 = vperm.slane %v635, 2
        %v640 = vperm.slane %v635, 3
        %v641 = vperm.slane %v635, 4
        %v642 = vperm.slane %v635, 5
        %v643 = vperm.slane %v635, 6
        %v644 = vperm.slane %v635, 7
        %v655 = vunpack.c.l.b16 %v377
        %v656 = vunpack.c.h.b16 %v377
        %v657 = vunpack.c.l.b16 %v378
        %v658 = vunpack.c.h.b16 %v378
        %v659 = vpack.c.b16 %v655, %v655
        %v660 = vpack.c.b16 %v656, %v656
        %v661 = vpack.c.b16 %v657, %v657
        %v662 = vpack.c.b16 %v658, %v658
        %v923 = vunpack.c.l.b16 %v379
        %v924 = vunpack.c.h.b16 %v379
        %v925 = vunpack.c.l.b16 %v380
        %v926 = vunpack.c.h.b16 %v380
        %v927 = vunpack.c.l.b16 %v381
        %v928 = vunpack.c.h.b16 %v381
        %v929 = vunpack.c.l.b16 %v382
        %v930 = vunpack.c.h.b16 %v382
        %v931 = vunpack.c.l.b16 %v383
        %v932 = vunpack.c.h.b16 %v383
        %v933 = vunpack.c.l.b16 %v384
        %v934 = vunpack.c.h.b16 %v384
        %v935 = vunpack.c.l.b16 %v385
        %v936 = vunpack.c.h.b16 %v385
        %v937 = vunpack.c.l.b16 %v386
        %v938 = vunpack.c.h.b16 %v386
        %v939 = vunpack.c.l.b16 %v387
        %v940 = vunpack.c.h.b16 %v387
        %v941 = vunpack.c.l.b16 %v388
        %v942 = vunpack.c.h.b16 %v388
        %v943 = vunpack.c.l.b16 %v389
        %v944 = vunpack.c.h.b16 %v389
        %v945 = vunpack.c.l.b16 %v390
        %v946 = vunpack.c.h.b16 %v390
        %v947 = vunpack.c.l.b16 %v391
        %v948 = vunpack.c.h.b16 %v391
        %v949 = vunpack.c.l.b16 %v392
        %v950 = vunpack.c.h.b16 %v392
        %v951 = vunpack.c.l.b16 %v393
        %v952 = vunpack.c.h.b16 %v393
        %v953 = vunpack.c.l.b16 %v394
        %v954 = vunpack.c.h.b16 %v394
        %v955 = vunpack.c.l.b16 %v395
        %v956 = vunpack.c.h.b16 %v395
        %v957 = vunpack.c.l.b16 %v396
        %v958 = vunpack.c.h.b16 %v396
        %v959 = vunpack.c.l.b16 %v397
        %v960 = vunpack.c.h.b16 %v397
        %v961 = vunpack.c.l.b16 %v398
        %v962 = vunpack.c.h.b16 %v398
        %v963 = vunpack.c.l.b16 %v399
        %v964 = vunpack.c.h.b16 %v399
        %v965 = vunpack.c.l.b16 %v400
        %v966 = vunpack.c.h.b16 %v400
        %v967 = vunpack.c.l.b16 %v401
        %v968 = vunpack.c.h.b16 %v401
        %v969 = vunpack.c.l.b16 %v402
        %v970 = vunpack.c.h.b16 %v402
        %v971 = vunpack.c.l.b16 %v403
        %v972 = vunpack.c.h.b16 %v403
        %v973 = vunpack.c.l.b16 %v404
        %v974 = vunpack.c.h.b16 %v404
        %v975 = vunpack.c.l.b16 %v405
        %v976 = vunpack.c.h.b16 %v405
        %v977 = vunpack.c.l.b16 %v406
        %v978 = vunpack.c.h.b16 %v406
        %v979 = vunpack.c.l.b16 %v407
        %v980 = vunpack.c.h.b16 %v407
        %v981 = vunpack.c.l.b16 %v408
        %v982 = vunpack.c.h.b16 %v408
        %v983 = vunpack.c.l.b16 %v409
        %v984 = vunpack.c.h.b16 %v409
        %v985 = vunpack.c.l.b16 %v410
        %v986 = vunpack.c.h.b16 %v410
        %v987 = vunpack.c.l.b16 %v411
        %v988 = vunpack.c.h.b16 %v411
        %v989 = vunpack.c.l.b16 %v412
        %v990 = vunpack.c.h.b16 %v412
        %v991 = vunpack.c.l.b16 %v413
        %v992 = vunpack.c.h.b16 %v413
        %v993 = vunpack.c.l.b16 %v414
        %v994 = vunpack.c.h.b16 %v414
        %v995 = vunpack.c.l.b16 %v415
        %v996 = vunpack.c.h.b16 %v415
        %v997 = vunpack.c.l.b16 %v416
        %v998 = vunpack.c.h.b16 %v416
        %v999 = vunpack.c.l.b16 %v417
        %v1000 = vunpack.c.h.b16 %v417
        %v1001 = vunpack.c.l.b16 %v418
        %v1002 = vunpack.c.h.b16 %v418
        %v1003 = vunpack.c.l.b16 %v419
        %v1004 = vunpack.c.h.b16 %v419
        %v1005 = vunpack.c.l.b16 %v420
        %v1006 = vunpack.c.h.b16 %v420
        %v1007 = vunpack.c.l.b16 %v421
        %v1008 = vunpack.c.h.b16 %v421
        %v1009 = vunpack.c.l.b16 %v422
        %v1010 = vunpack.c.h.b16 %v422
        %v1011 = vunpack.c.l.b16 %v423
        %v1012 = vunpack.c.h.b16 %v423
        %v1013 = vunpack.c.l.b16 %v424
        %v1014 = vunpack.c.h.b16 %v424
        %v1015 = vunpack.c.l.b16 %v425
        %v1016 = vunpack.c.h.b16 %v425
        %v1017 = vunpack.c.l.b16 %v426
        %v1018 = vunpack.c.h.b16 %v426
        %v1019 = vunpack.c.l.b16 %v427
        %v1020 = vunpack.c.h.b16 %v427
        %v1021 = vunpack.c.l.b16 %v428
        %v1022 = vunpack.c.h.b16 %v428
        %v1023 = vunpack.c.l.b16 %v429
        %v1024 = vunpack.c.h.b16 %v429
        %v1025 = vunpack.c.l.b16 %v430
        %v1026 = vunpack.c.h.b16 %v430
        %v1027 = vunpack.c.l.b16 %v431
        %v1028 = vunpack.c.h.b16 %v431
        %v1029 = vunpack.c.l.b16 %v432
        %v1030 = vunpack.c.h.b16 %v432
        %v1031 = vunpack.c.l.b16 %v433
        %v1032 = vunpack.c.h.b16 %v433
        %v1033 = vunpack.c.l.b16 %v434
        %v1034 = vunpack.c.h.b16 %v434
        %v1035 = vunpack.c.l.b16 %v435
        %v1036 = vunpack.c.h.b16 %v435
        %v1037 = vunpack.c.l.b16 %v436
        %v1038 = vunpack.c.h.b16 %v436
        %v1039 = vunpack.c.l.b16 %v437
        %v1040 = vunpack.c.h.b16 %v437
        %v1041 = vunpack.c.l.b16 %v438
        %v1042 = vunpack.c.h.b16 %v438
        %v1043 = vunpack.c.l.b16 %v439
        %v1044 = vunpack.c.h.b16 %v439
        %v1045 = vunpack.c.l.b16 %v440
        %v1046 = vunpack.c.h.b16 %v440
        %v1047 = vunpack.c.l.b16 %v441
        %v1048 = vunpack.c.h.b16 %v441
        %v1049 = vunpack.c.l.b16 %v442
        %v1050 = vunpack.c.h.b16 %v442
        %v1051 = vunpack.c.l.b16 %v443
        %v1052 = vunpack.c.h.b16 %v443
        %v1053 = vunpack.c.l.b16 %v444
        %v1054 = vunpack.c.h.b16 %v444
        %v1055 = vunpack.c.l.b16 %v445
        %v1056 = vunpack.c.h.b16 %v445
        %v1057 = vunpack.c.l.b16 %v446
        %v1058 = vunpack.c.h.b16 %v446
        %v1059 = vunpack.c.l.b16 %v447
        %v1060 = vunpack.c.h.b16 %v447
        %v1061 = vunpack.c.l.b16 %v448
        %v1062 = vunpack.c.h.b16 %v448
        %v1063 = vunpack.c.l.b16 %v449
        %v1064 = vunpack.c.h.b16 %v449
        %v1065 = vunpack.c.l.b16 %v450
        %v1066 = vunpack.c.h.b16 %v450
        %v1067 = vunpack.c.l.b16 %v451
        %v1068 = vunpack.c.h.b16 %v451
        %v1069 = vunpack.c.l.b16 %v452
        %v1070 = vunpack.c.h.b16 %v452
        %v1071 = vunpack.c.l.b16 %v453
        %v1072 = vunpack.c.h.b16 %v453
        %v1073 = vunpack.c.l.b16 %v454
        %v1074 = vunpack.c.h.b16 %v454
        %v1075 = vunpack.c.l.b16 %v455
        %v1076 = vunpack.c.h.b16 %v455
        %v1077 = vunpack.c.l.b16 %v456
        %v1078 = vunpack.c.h.b16 %v456
        %v1079 = vunpack.c.l.b16 %v457
        %v1080 = vunpack.c.h.b16 %v457
        %v1081 = vunpack.c.l.b16 %v458
        %v1082 = vunpack.c.h.b16 %v458
        %v1083 = vunpack.c.l.b16 %v459
        %v1084 = vunpack.c.h.b16 %v459
        %v1085 = vunpack.c.l.b16 %v460
        %v1086 = vunpack.c.h.b16 %v460
        %v1087 = vunpack.c.l.b16 %v461
        %v1088 = vunpack.c.h.b16 %v461
        %v1089 = vunpack.c.l.b16 %v462
        %v1090 = vunpack.c.h.b16 %v462
        %v1091 = vunpack.c.l.b16 %v463
        %v1092 = vunpack.c.h.b16 %v463
        %v1093 = vunpack.c.l.b16 %v464
        %v1094 = vunpack.c.h.b16 %v464
        %v1095 = vunpack.c.l.b16 %v465
        %v1096 = vunpack.c.h.b16 %v465
        %v1097 = vunpack.c.l.b16 %v466
        %v1098 = vunpack.c.h.b16 %v466
        %v1099 = vunpack.c.l.b16 %v467
        %v1100 = vunpack.c.h.b16 %v467
        %v1101 = vunpack.c.l.b16 %v468
        %v1102 = vunpack.c.h.b16 %v468
        %v1103 = vunpack.c.l.b16 %v469
        %v1104 = vunpack.c.h.b16 %v469
        %v1105 = vunpack.c.l.b16 %v470
        %v1106 = vunpack.c.h.b16 %v470
        %v1107 = vunpack.c.l.b16 %v471
        %v1108 = vunpack.c.h.b16 %v471
        %v1109 = vunpack.c.l.b16 %v472
        %v1110 = vunpack.c.h.b16 %v472
        %v1111 = vunpack.c.l.b16 %v473
        %v1112 = vunpack.c.h.b16 %v473
        %v1113 = vunpack.c.l.b16 %v474
        %v1114 = vunpack.c.h.b16 %v474
        %v1115 = vunpack.c.l.b16 %v475
        %v1116 = vunpack.c.h.b16 %v475
        %v1117 = vunpack.c.l.b16 %v476
        %v1118 = vunpack.c.h.b16 %v476
        %v1119 = vunpack.c.l.b16 %v477
        %v1120 = vunpack.c.h.b16 %v477
        %v1121 = vunpack.c.l.b16 %v478
        %v1122 = vunpack.c.h.b16 %v478
        %v1123 = vunpack.c.l.b16 %v479
        %v1124 = vunpack.c.h.b16 %v479
        %v1125 = vunpack.c.l.b16 %v480
        %v1126 = vunpack.c.h.b16 %v480
        %v1127 = vunpack.c.l.b16 %v481
        %v1128 = vunpack.c.h.b16 %v481
        %v1129 = vunpack.c.l.b16 %v482
        %v1130 = vunpack.c.h.b16 %v482
        %v1131 = vunpack.c.l.b16 %v483
        %v1132 = vunpack.c.h.b16 %v483
        %v1133 = vunpack.c.l.b16 %v484
        %v1134 = vunpack.c.h.b16 %v484
        %v1135 = vunpack.c.l.b16 %v485
        %v1136 = vunpack.c.h.b16 %v485
        %v1137 = vunpack.c.l.b16 %v486
        %v1138 = vunpack.c.h.b16 %v486
        %v1139 = vunpack.c.l.b16 %v487
        %v1140 = vunpack.c.h.b16 %v487
        %v1141 = vunpack.c.l.b16 %v488
        %v1142 = vunpack.c.h.b16 %v488
        %v1143 = vunpack.c.l.b16 %v489
        %v1144 = vunpack.c.h.b16 %v489
        %v1145 = vunpack.c.l.b16 %v490
        %v1146 = vunpack.c.h.b16 %v490
        %v1147 = vunpack.c.l.b16 %v491
        %v1148 = vunpack.c.h.b16 %v491
        %v1149 = vunpack.c.l.b16 %v492
        %v1150 = vunpack.c.h.b16 %v492
        %v1151 = vunpack.c.l.b16 %v493
        %v1152 = vunpack.c.h.b16 %v493
        %v1153 = vunpack.c.l.b16 %v494
        %v1154 = vunpack.c.h.b16 %v494
        %v1155 = vunpack.c.l.b16 %v495
        %v1156 = vunpack.c.h.b16 %v495
        %v1157 = vunpack.c.l.b16 %v496
        %v1158 = vunpack.c.h.b16 %v496
        %v1159 = vunpack.c.l.b16 %v497
        %v1160 = vunpack.c.h.b16 %v497
        %v1161 = vunpack.c.l.b16 %v498
        %v1162 = vunpack.c.h.b16 %v498
        %v1163 = vunpack.c.l.b16 %v499
        %v1164 = vunpack.c.h.b16 %v499
        %v1165 = vunpack.c.l.b16 %v500
        %v1166 = vunpack.c.h.b16 %v500
        %v1167 = vunpack.c.l.b16 %v501
        %v1168 = vunpack.c.h.b16 %v501
        %v1169 = vunpack.c.l.b16 %v502
        %v1170 = vunpack.c.h.b16 %v502
        %v1171 = vunpack.c.l.b16 %v503
        %v1172 = vunpack.c.h.b16 %v503
        %v1173 = vunpack.c.l.b16 %v504
        %v1174 = vunpack.c.h.b16 %v504
        %v1175 = vunpack.c.l.b16 %v505
        %v1176 = vunpack.c.h.b16 %v505
        %v1177 = vunpack.c.l.b16 %v506
        %v1178 = vunpack.c.h.b16 %v506
        %v1179 = vunpack.c.l.b16 %v507
        %v1180 = vunpack.c.h.b16 %v507
        %v1181 = vunpack.c.l.b16 %v508
        %v1182 = vunpack.c.h.b16 %v508
        %v1183 = vunpack.c.l.b16 %v509
        %v1184 = vunpack.c.h.b16 %v509
        %v1185 = vunpack.c.l.b16 %v510
        %v1186 = vunpack.c.h.b16 %v510
        %v1187 = vunpack.c.l.b16 %v511
        %v1188 = vunpack.c.h.b16 %v511
        %v1189 = vunpack.c.l.b16 %v512
        %v1190 = vunpack.c.h.b16 %v512
        %v1191 = vunpack.c.l.b16 %v513
        %v1192 = vunpack.c.h.b16 %v513
        %v1193 = vunpack.c.l.b16 %v514
        %v1194 = vunpack.c.h.b16 %v514
        %v1195 = vunpack.c.l.b16 %v515
        %v1196 = vunpack.c.h.b16 %v515
        %v1197 = vunpack.c.l.b16 %v516
        %v1198 = vunpack.c.h.b16 %v516
        %v1199 = vunpack.c.l.b16 %v517
        %v1200 = vunpack.c.h.b16 %v517
        %v1201 = vunpack.c.l.b16 %v518
        %v1202 = vunpack.c.h.b16 %v518
        %v1203 = vunpack.c.l.b16 %v519
        %v1204 = vunpack.c.h.b16 %v519
        %v1205 = vunpack.c.l.b16 %v520
        %v1206 = vunpack.c.h.b16 %v520
        %v1207 = vunpack.c.l.b16 %v521
        %v1208 = vunpack.c.h.b16 %v521
        %v1209 = vunpack.c.l.b16 %v522
        %v1210 = vunpack.c.h.b16 %v522
        %v1211 = vunpack.c.l.b16 %v523
        %v1212 = vunpack.c.h.b16 %v523
        %v1213 = vunpack.c.l.b16 %v524
        %v1214 = vunpack.c.h.b16 %v524
        %v1215 = vunpack.c.l.b16 %v525
        %v1216 = vunpack.c.h.b16 %v525
        %v1217 = vunpack.c.l.b16 %v526
        %v1218 = vunpack.c.h.b16 %v526
        %v1219 = vunpack.c.l.b16 %v527
        %v1220 = vunpack.c.h.b16 %v527
        %v1221 = vunpack.c.l.b16 %v528
        %v1222 = vunpack.c.h.b16 %v528
        %v1223 = vunpack.c.l.b16 %v529
        %v1224 = vunpack.c.h.b16 %v529
        %v1225 = vunpack.c.l.b16 %v530
        %v1226 = vunpack.c.h.b16 %v530
        %v1227 = vunpack.c.l.b16 %v531
        %v1228 = vunpack.c.h.b16 %v531
        %v1229 = vunpack.c.l.b16 %v532
        %v1230 = vunpack.c.h.b16 %v532
        %v1231 = vunpack.c.l.b16 %v533
        %v1232 = vunpack.c.h.b16 %v533
        %v1233 = vunpack.c.l.b16 %v534
        %v1234 = vunpack.c.h.b16 %v534
        %v1235 = vunpack.c.l.b16 %v535
        %v1236 = vunpack.c.h.b16 %v535
        %v1237 = vunpack.c.l.b16 %v536
        %v1238 = vunpack.c.h.b16 %v536
        %v1239 = vunpack.c.l.b16 %v537
        %v1240 = vunpack.c.h.b16 %v537
        %v1241 = vunpack.c.l.b16 %v538
        %v1242 = vunpack.c.h.b16 %v538
        %v1243 = vunpack.c.l.b16 %v539
        %v1244 = vunpack.c.h.b16 %v539
        %v1245 = vunpack.c.l.b16 %v540
        %v1246 = vunpack.c.h.b16 %v540
        %v1247 = vunpack.c.l.b16 %v541
        %v1248 = vunpack.c.h.b16 %v541
        %v1249 = vunpack.c.l.b16 %v542
        %v1250 = vunpack.c.h.b16 %v542
        %v1251 = vunpack.c.l.b16 %v543
        %v1252 = vunpack.c.h.b16 %v543
        %v1253 = vunpack.c.l.b16 %v544
        %v1254 = vunpack.c.h.b16 %v544
        %v1255 = vunpack.c.l.b16 %v545
        %v1256 = vunpack.c.h.b16 %v545
        %v1257 = vunpack.c.l.b16 %v546
        %v1258 = vunpack.c.h.b16 %v546
        %v1259 = vunpack.c.l.b16 %v547
        %v1260 = vunpack.c.h.b16 %v547
        %v1261 = vunpack.c.l.b16 %v548
        %v1262 = vunpack.c.h.b16 %v548
        %v1263 = vunpack.c.l.b16 %v549
        %v1264 = vunpack.c.h.b16 %v549
        %v1265 = vunpack.c.l.b16 %v550
        %v1266 = vunpack.c.h.b16 %v550
        %v1267 = vunpack.c.l.b16 %v551
        %v1268 = vunpack.c.h.b16 %v551
        %v1269 = vunpack.c.l.b16 %v552
        %v1270 = vunpack.c.h.b16 %v552
        %v1271 = vunpack.c.l.b16 %v553
        %v1272 = vunpack.c.h.b16 %v553
        %v1273 = vunpack.c.l.b16 %v554
        %v1274 = vunpack.c.h.b16 %v554
        %v1275 = vunpack.c.l.b16 %v555
        %v1276 = vunpack.c.h.b16 %v555
        %v1277 = vunpack.c.l.b16 %v556
        %v1278 = vunpack.c.h.b16 %v556
        %v1279 = vunpack.c.l.b16 %v557
        %v1280 = vunpack.c.h.b16 %v557
        %v1281 = vunpack.c.l.b16 %v558
        %v1282 = vunpack.c.h.b16 %v558
        %v1283 = vunpack.c.l.b16 %v559
        %v1284 = vunpack.c.h.b16 %v559
        %v1285 = vunpack.c.l.b16 %v560
        %v1286 = vunpack.c.h.b16 %v560
        %v1287 = vunpack.c.l.b16 %v561
        %v1288 = vunpack.c.h.b16 %v561
        %v1289 = vunpack.c.l.b16 %v562
        %v1290 = vunpack.c.h.b16 %v562
        %v1291 = vunpack.c.l.b16 %v563
        %v1292 = vunpack.c.h.b16 %v563
        %v1293 = vunpack.c.l.b16 %v564
        %v1294 = vunpack.c.h.b16 %v564
        %v1295 = vunpack.c.l.b16 %v565
        %v1296 = vunpack.c.h.b16 %v565
        %v1297 = vunpack.c.l.b16 %v566
        %v1298 = vunpack.c.h.b16 %v566
        %v1299 = vunpack.c.l.b16 %v567
        %v1300 = vunpack.c.h.b16 %v567
        %v1301 = vunpack.c.l.b16 %v568
        %v1302 = vunpack.c.h.b16 %v568
        %v1303 = vunpack.c.l.b16 %v569
        %v1304 = vunpack.c.h.b16 %v569
        %v1305 = vunpack.c.l.b16 %v570
        %v1306 = vunpack.c.h.b16 %v570
        %v1307 = vunpack.c.l.b16 %v571
        %v1308 = vunpack.c.h.b16 %v571
        %v1309 = vunpack.c.l.b16 %v572
        %v1310 = vunpack.c.h.b16 %v572
        %v1311 = vunpack.c.l.b16 %v573
        %v1312 = vunpack.c.h.b16 %v573
        %v1313 = vunpack.c.l.b16 %v574
        %v1314 = vunpack.c.h.b16 %v574
        %v1315 = vunpack.c.l.b16 %v575
        %v1316 = vunpack.c.h.b16 %v575
        %v1317 = vunpack.c.l.b16 %v576
        %v1318 = vunpack.c.h.b16 %v576
        %v1319 = vunpack.c.l.b16 %v577
        %v1320 = vunpack.c.h.b16 %v577
        %v1321 = vunpack.c.l.b16 %v578
        %v1322 = vunpack.c.h.b16 %v578
        %v1323 = vunpack.c.l.b16 %v579
        %v1324 = vunpack.c.h.b16 %v579
        %v1325 = vunpack.c.l.b16 %v580
        %v1326 = vunpack.c.h.b16 %v580
        %v1327 = vunpack.c.l.b16 %v581
        %v1328 = vunpack.c.h.b16 %v581
        %v1329 = vunpack.c.l.b16 %v582
        %v1330 = vunpack.c.h.b16 %v582
        %v1331 = vunpack.c.l.b16 %v583
        %v1332 = vunpack.c.h.b16 %v583
        %v1333 = vunpack.c.l.b16 %v584
        %v1334 = vunpack.c.h.b16 %v584
        %v1335 = vunpack.c.l.b16 %v585
        %v1336 = vunpack.c.h.b16 %v585
        %v1337 = vunpack.c.l.b16 %v586
        %v1338 = vunpack.c.h.b16 %v586
        %v1339 = vunpack.c.l.b16 %v587
        %v1340 = vunpack.c.h.b16 %v587
        %v1341 = vunpack.c.l.b16 %v588
        %v1342 = vunpack.c.h.b16 %v588
        %v1343 = vunpack.c.l.b16 %v589
        %v1344 = vunpack.c.h.b16 %v589
        %v1345 = vunpack.c.l.b16 %v590
        %v1346 = vunpack.c.h.b16 %v590
        %v1347 = vunpack.c.l.b16 %v591
        %v1348 = vunpack.c.h.b16 %v591
        %v1349 = vunpack.c.l.b16 %v592
        %v1350 = vunpack.c.h.b16 %v592
        %v1351 = vunpack.c.l.b16 %v593
        %v1352 = vunpack.c.h.b16 %v593
        %v1353 = vunpack.c.l.b16 %v594
        %v1354 = vunpack.c.h.b16 %v594
        %v1355 = vunpack.c.l.b16 %v595
        %v1356 = vunpack.c.h.b16 %v595
        %v1357 = vunpack.c.l.b16 %v596
        %v1358 = vunpack.c.h.b16 %v596
        %v1359 = vunpack.c.l.b16 %v597
        %v1360 = vunpack.c.h.b16 %v597
        %v1361 = vunpack.c.l.b16 %v598
        %v1362 = vunpack.c.h.b16 %v598
        %v1363 = vunpack.c.l.b16 %v599
        %v1364 = vunpack.c.h.b16 %v599
        %v1365 = vunpack.c.l.b16 %v600
        %v1366 = vunpack.c.h.b16 %v600
        %v1367 = vunpack.c.l.b16 %v601
        %v1368 = vunpack.c.h.b16 %v601
        %v1369 = vunpack.c.l.b16 %v602
        %v1370 = vunpack.c.h.b16 %v602
        %v1371 = vunpack.c.l.b16 %v603
        %v1372 = vunpack.c.h.b16 %v603
        %v1373 = vunpack.c.l.b16 %v604
        %v1374 = vunpack.c.h.b16 %v604
        %v1375 = vunpack.c.l.b16 %v605
        %v1376 = vunpack.c.h.b16 %v605
        %v1377 = vunpack.c.l.b16 %v606
        %v1378 = vunpack.c.h.b16 %v606
        %v1379 = vunpack.c.l.b16 %v607
        %v1380 = vunpack.c.h.b16 %v607
        %v1381 = vunpack.c.l.b16 %v608
        %v1382 = vunpack.c.h.b16 %v608
        %v1383 = vunpack.c.l.b16 %v609
        %v1384 = vunpack.c.h.b16 %v609
        %v1385 = vunpack.c.l.b16 %v610
        %v1386 = vunpack.c.h.b16 %v610
        %v1387 = vunpack.c.l.b16 %v611
        %v1388 = vunpack.c.h.b16 %v611
        %v1389 = vunpack.c.l.b16 %v612
        %v1390 = vunpack.c.h.b16 %v612
        %v1391 = vunpack.c.l.b16 %v613
        %v1392 = vunpack.c.h.b16 %v613
        %v1393 = vunpack.c.l.b16 %v614
        %v1394 = vunpack.c.h.b16 %v614
        %v1395 = vunpack.c.l.b16 %v615
        %v1396 = vunpack.c.h.b16 %v615
        %v1397 = vunpack.c.l.b16 %v616
        %v1398 = vunpack.c.h.b16 %v616
        %v1399 = vunpack.c.l.b16 %v617
        %v1400 = vunpack.c.h.b16 %v617
        %v1401 = vunpack.c.l.b16 %v618
        %v1402 = vunpack.c.h.b16 %v618
        %v1403 = vunpack.c.l.b16 %v619
        %v1404 = vunpack.c.h.b16 %v619
        %v1405 = vunpack.c.l.b16 %v620
        %v1406 = vunpack.c.h.b16 %v620
        %v1407 = vunpack.c.l.b16 %v621
        %v1408 = vunpack.c.h.b16 %v621
        %v1409 = vunpack.c.l.b16 %v622
        %v1410 = vunpack.c.h.b16 %v622
        %v1411 = vunpack.c.l.b16 %v623
        %v1412 = vunpack.c.h.b16 %v623
        %v1413 = vunpack.c.l.b16 %v624
        %v1414 = vunpack.c.h.b16 %v624
        %v1415 = vunpack.c.l.b16 %v625
        %v1416 = vunpack.c.h.b16 %v625
        %v1417 = vunpack.c.l.b16 %v626
        %v1418 = vunpack.c.h.b16 %v626
        %v1419 = vunpack.c.l.b16 %v627
        %v1420 = vunpack.c.h.b16 %v627
        %v1421 = vunpack.c.l.b16 %v628
        %v1422 = vunpack.c.h.b16 %v628
        %v1423 = vunpack.c.l.b16 %v629
        %v1424 = vunpack.c.h.b16 %v629
        %v1425 = vunpack.c.l.b16 %v630
        %v1426 = vunpack.c.h.b16 %v630
        %v1427 = vunpack.c.l.b16 %v631
        %v1428 = vunpack.c.h.b16 %v631
        %v1429 = vunpack.c.l.b16 %v632
        %v1430 = vunpack.c.h.b16 %v632
        %v1431 = vunpack.c.l.b16 %v633
        %v1432 = vunpack.c.h.b16 %v633
        %v1433 = vunpack.c.l.b16 %v634
        %v1434 = vunpack.c.h.b16 %v634
        %v1435 = vpack.c.b16 %v931, %v923
        %v1436 = vpack.c.b16 %v932, %v924
        %v1437 = vpack.c.b16 %v933, %v925
        %v1438 = vpack.c.b16 %v934, %v926
        %v1439 = vpack.c.b16 %v935, %v927
        %v1440 = vpack.c.b16 %v936, %v928
        %v1441 = vpack.c.b16 %v937, %v929
        %v1442 = vpack.c.b16 %v938, %v930
        %v1443 = vpack.c.b16 %v947, %v939
        %v1444 = vpack.c.b16 %v948, %v940
        %v1445 = vpack.c.b16 %v949, %v941
        %v1446 = vpack.c.b16 %v950, %v942
        %v1447 = vpack.c.b16 %v951, %v943
        %v1448 = vpack.c.b16 %v952, %v944
        %v1449 = vpack.c.b16 %v953, %v945
        %v1450 = vpack.c.b16 %v954, %v946
        %v1451 = vpack.c.b16 %v963, %v955
        %v1452 = vpack.c.b16 %v964, %v956
        %v1453 = vpack.c.b16 %v965, %v957
        %v1454 = vpack.c.b16 %v966, %v958
        %v1455 = vpack.c.b16 %v967, %v959
        %v1456 = vpack.c.b16 %v968, %v960
        %v1457 = vpack.c.b16 %v969, %v961
        %v1458 = vpack.c.b16 %v970, %v962
        %v1459 = vpack.c.b16 %v979, %v971
        %v1460 = vpack.c.b16 %v980, %v972
        %v1461 = vpack.c.b16 %v981, %v973
        %v1462 = vpack.c.b16 %v982, %v974
        %v1463 = vpack.c.b16 %v983, %v975
        %v1464 = vpack.c.b16 %v984, %v976
        %v1465 = vpack.c.b16 %v985, %v977
        %v1466 = vpack.c.b16 %v986, %v978
        %v1467 = vpack.c.b16 %v995, %v987
        %v1468 = vpack.c.b16 %v996, %v988
        %v1469 = vpack.c.b16 %v997, %v989
        %v1470 = vpack.c.b16 %v998, %v990
        %v1471 = vpack.c.b16 %v999, %v991
        %v1472 = vpack.c.b16 %v1000, %v992
        %v1473 = vpack.c.b16 %v1001, %v993
        %v1474 = vpack.c.b16 %v1002, %v994
        %v1475 = vpack.c.b16 %v1011, %v1003
        %v1476 = vpack.c.b16 %v1012, %v1004
        %v1477 = vpack.c.b16 %v1013, %v1005
        %v1478 = vpack.c.b16 %v1014, %v1006
        %v1479 = vpack.c.b16 %v1015, %v1007
        %v1480 = vpack.c.b16 %v1016, %v1008
        %v1481 = vpack.c.b16 %v1017, %v1009
        %v1482 = vpack.c.b16 %v1018, %v1010
        %v1483 = vpack.c.b16 %v1027, %v1019
        %v1484 = vpack.c.b16 %v1028, %v1020
        %v1485 = vpack.c.b16 %v1029, %v1021
        %v1486 = vpack.c.b16 %v1030, %v1022
        %v1487 = vpack.c.b16 %v1031, %v1023
        %v1488 = vpack.c.b16 %v1032, %v1024
        %v1489 = vpack.c.b16 %v1033, %v1025
        %v1490 = vpack.c.b16 %v1034, %v1026
        %v1491 = vpack.c.b16 %v1043, %v1035
        %v1492 = vpack.c.b16 %v1044, %v1036
        %v1493 = vpack.c.b16 %v1045, %v1037
        %v1494 = vpack.c.b16 %v1046, %v1038
        %v1495 = vpack.c.b16 %v1047, %v1039
        %v1496 = vpack.c.b16 %v1048, %v1040
        %v1497 = vpack.c.b16 %v1049, %v1041
        %v1498 = vpack.c.b16 %v1050, %v1042
        %v1499 = vpack.c.b16 %v1059, %v1051
        %v1500 = vpack.c.b16 %v1060, %v1052
        %v1501 = vpack.c.b16 %v1061, %v1053
        %v1502 = vpack.c.b16 %v1062, %v1054
        %v1503 = vpack.c.b16 %v1063, %v1055
        %v1504 = vpack.c.b16 %v1064, %v1056
        %v1505 = vpack.c.b16 %v1065, %v1057
        %v1506 = vpack.c.b16 %v1066, %v1058
        %v1507 = vpack.c.b16 %v1075, %v1067
        %v1508 = vpack.c.b16 %v1076, %v1068
        %v1509 = vpack.c.b16 %v1077, %v1069
        %v1510 = vpack.c.b16 %v1078, %v1070
        %v1511 = vpack.c.b16 %v1079, %v1071
        %v1512 = vpack.c.b16 %v1080, %v1072
        %v1513 = vpack.c.b16 %v1081, %v1073
        %v1514 = vpack.c.b16 %v1082, %v1074
        %v1515 = vpack.c.b16 %v1091, %v1083
        %v1516 = vpack.c.b16 %v1092, %v1084
        %v1517 = vpack.c.b16 %v1093, %v1085
        %v1518 = vpack.c.b16 %v1094, %v1086
        %v1519 = vpack.c.b16 %v1095, %v1087
        %v1520 = vpack.c.b16 %v1096, %v1088
        %v1521 = vpack.c.b16 %v1097, %v1089
        %v1522 = vpack.c.b16 %v1098, %v1090
        %v1523 = vpack.c.b16 %v1107, %v1099
        %v1524 = vpack.c.b16 %v1108, %v1100
        %v1525 = vpack.c.b16 %v1109, %v1101
        %v1526 = vpack.c.b16 %v1110, %v1102
        %v1527 = vpack.c.b16 %v1111, %v1103
        %v1528 = vpack.c.b16 %v1112, %v1104
        %v1529 = vpack.c.b16 %v1113, %v1105
        %v1530 = vpack.c.b16 %v1114, %v1106
        %v1531 = vpack.c.b16 %v1123, %v1115
        %v1532 = vpack.c.b16 %v1124, %v1116
        %v1533 = vpack.c.b16 %v1125, %v1117
        %v1534 = vpack.c.b16 %v1126, %v1118
        %v1535 = vpack.c.b16 %v1127, %v1119
        %v1536 = vpack.c.b16 %v1128, %v1120
        %v1537 = vpack.c.b16 %v1129, %v1121
        %v1538 = vpack.c.b16 %v1130, %v1122
        %v1539 = vpack.c.b16 %v1139, %v1131
        %v1540 = vpack.c.b16 %v1140, %v1132
        %v1541 = vpack.c.b16 %v1141, %v1133
        %v1542 = vpack.c.b16 %v1142, %v1134
        %v1543 = vpack.c.b16 %v1143, %v1135
        %v1544 = vpack.c.b16 %v1144, %v1136
        %v1545 = vpack.c.b16 %v1145, %v1137
        %v1546 = vpack.c.b16 %v1146, %v1138
        %v1547 = vpack.c.b16 %v1155, %v1147
        %v1548 = vpack.c.b16 %v1156, %v1148
        %v1549 = vpack.c.b16 %v1157, %v1149
        %v1550 = vpack.c.b16 %v1158, %v1150
        %v1551 = vpack.c.b16 %v1159, %v1151
        %v1552 = vpack.c.b16 %v1160, %v1152
        %v1553 = vpack.c.b16 %v1161, %v1153
        %v1554 = vpack.c.b16 %v1162, %v1154
        %v1555 = vpack.c.b16 %v1171, %v1163
        %v1556 = vpack.c.b16 %v1172, %v1164
        %v1557 = vpack.c.b16 %v1173, %v1165
        %v1558 = vpack.c.b16 %v1174, %v1166
        %v1559 = vpack.c.b16 %v1175, %v1167
        %v1560 = vpack.c.b16 %v1176, %v1168
        %v1561 = vpack.c.b16 %v1177, %v1169
        %v1562 = vpack.c.b16 %v1178, %v1170
        %v1563 = vpack.c.b16 %v1187, %v1179
        %v1564 = vpack.c.b16 %v1188, %v1180
        %v1565 = vpack.c.b16 %v1189, %v1181
        %v1566 = vpack.c.b16 %v1190, %v1182
        %v1567 = vpack.c.b16 %v1191, %v1183
        %v1568 = vpack.c.b16 %v1192, %v1184
        %v1569 = vpack.c.b16 %v1193, %v1185
        %v1570 = vpack.c.b16 %v1194, %v1186
        %v1571 = vpack.c.b16 %v1203, %v1195
        %v1572 = vpack.c.b16 %v1204, %v1196
        %v1573 = vpack.c.b16 %v1205, %v1197
        %v1574 = vpack.c.b16 %v1206, %v1198
        %v1575 = vpack.c.b16 %v1207, %v1199
        %v1576 = vpack.c.b16 %v1208, %v1200
        %v1577 = vpack.c.b16 %v1209, %v1201
        %v1578 = vpack.c.b16 %v1210, %v1202
        %v1579 = vpack.c.b16 %v1219, %v1211
        %v1580 = vpack.c.b16 %v1220, %v1212
        %v1581 = vpack.c.b16 %v1221, %v1213
        %v1582 = vpack.c.b16 %v1222, %v1214
        %v1583 = vpack.c.b16 %v1223, %v1215
        %v1584 = vpack.c.b16 %v1224, %v1216
        %v1585 = vpack.c.b16 %v1225, %v1217
        %v1586 = vpack.c.b16 %v1226, %v1218
        %v1587 = vpack.c.b16 %v1235, %v1227
        %v1588 = vpack.c.b16 %v1236, %v1228
        %v1589 = vpack.c.b16 %v1237, %v1229
        %v1590 = vpack.c.b16 %v1238, %v1230
        %v1591 = vpack.c.b16 %v1239, %v1231
        %v1592 = vpack.c.b16 %v1240, %v1232
        %v1593 = vpack.c.b16 %v1241, %v1233
        %v1594 = vpack.c.b16 %v1242, %v1234
        %v1595 = vpack.c.b16 %v1251, %v1243
        %v1596 = vpack.c.b16 %v1252, %v1244
        %v1597 = vpack.c.b16 %v1253, %v1245
        %v1598 = vpack.c.b16 %v1254, %v1246
        %v1599 = vpack.c.b16 %v1255, %v1247
        %v1600 = vpack.c.b16 %v1256, %v1248
        %v1601 = vpack.c.b16 %v1257, %v1249
        %v1602 = vpack.c.b16 %v1258, %v1250
        %v1603 = vpack.c.b16 %v1267, %v1259
        %v1604 = vpack.c.b16 %v1268, %v1260
        %v1605 = vpack.c.b16 %v1269, %v1261
        %v1606 = vpack.c.b16 %v1270, %v1262
        %v1607 = vpack.c.b16 %v1271, %v1263
        %v1608 = vpack.c.b16 %v1272, %v1264
        %v1609 = vpack.c.b16 %v1273, %v1265
        %v1610 = vpack.c.b16 %v1274, %v1266
        %v1611 = vpack.c.b16 %v1283, %v1275
        %v1612 = vpack.c.b16 %v1284, %v1276
        %v1613 = vpack.c.b16 %v1285, %v1277
        %v1614 = vpack.c.b16 %v1286, %v1278
        %v1615 = vpack.c.b16 %v1287, %v1279
        %v1616 = vpack.c.b16 %v1288, %v1280
        %v1617 = vpack.c.b16 %v1289, %v1281
        %v1618 = vpack.c.b16 %v1290, %v1282
        %v1619 = vpack.c.b16 %v1299, %v1291
        %v1620 = vpack.c.b16 %v1300, %v1292
        %v1621 = vpack.c.b16 %v1301, %v1293
        %v1622 = vpack.c.b16 %v1302, %v1294
        %v1623 = vpack.c.b16 %v1303, %v1295
        %v1624 = vpack.c.b16 %v1304, %v1296
        %v1625 = vpack.c.b16 %v1305, %v1297
        %v1626 = vpack.c.b16 %v1306, %v1298
        %v1627 = vpack.c.b16 %v1315, %v1307
        %v1628 = vpack.c.b16 %v1316, %v1308
        %v1629 = vpack.c.b16 %v1317, %v1309
        %v1630 = vpack.c.b16 %v1318, %v1310
        %v1631 = vpack.c.b16 %v1319, %v1311
        %v1632 = vpack.c.b16 %v1320, %v1312
        %v1633 = vpack.c.b16 %v1321, %v1313
        %v1634 = vpack.c.b16 %v1322, %v1314
        %v1635 = vpack.c.b16 %v1331, %v1323
        %v1636 = vpack.c.b16 %v1332, %v1324
        %v1637 = vpack.c.b16 %v1333, %v1325
        %v1638 = vpack.c.b16 %v1334, %v1326
        %v1639 = vpack.c.b16 %v1335, %v1327
        %v1640 = vpack.c.b16 %v1336, %v1328
        %v1641 = vpack.c.b16 %v1337, %v1329
        %v1642 = vpack.c.b16 %v1338, %v1330
        %v1643 = vpack.c.b16 %v1347, %v1339
        %v1644 = vpack.c.b16 %v1348, %v1340
        %v1645 = vpack.c.b16 %v1349, %v1341
        %v1646 = vpack.c.b16 %v1350, %v1342
        %v1647 = vpack.c.b16 %v1351, %v1343
        %v1648 = vpack.c.b16 %v1352, %v1344
        %v1649 = vpack.c.b16 %v1353, %v1345
        %v1650 = vpack.c.b16 %v1354, %v1346
        %v1651 = vpack.c.b16 %v1363, %v1355
        %v1652 = vpack.c.b16 %v1364, %v1356
        %v1653 = vpack.c.b16 %v1365, %v1357
        %v1654 = vpack.c.b16 %v1366, %v1358
        %v1655 = vpack.c.b16 %v1367, %v1359
        %v1656 = vpack.c.b16 %v1368, %v1360
        %v1657 = vpack.c.b16 %v1369, %v1361
        %v1658 = vpack.c.b16 %v1370, %v1362
        %v1659 = vpack.c.b16 %v1379, %v1371
        %v1660 = vpack.c.b16 %v1380, %v1372
        %v1661 = vpack.c.b16 %v1381, %v1373
        %v1662 = vpack.c.b16 %v1382, %v1374
        %v1663 = vpack.c.b16 %v1383, %v1375
        %v1664 = vpack.c.b16 %v1384, %v1376
        %v1665 = vpack.c.b16 %v1385, %v1377
        %v1666 = vpack.c.b16 %v1386, %v1378
        %v1667 = vpack.c.b16 %v1395, %v1387
        %v1668 = vpack.c.b16 %v1396, %v1388
        %v1669 = vpack.c.b16 %v1397, %v1389
        %v1670 = vpack.c.b16 %v1398, %v1390
        %v1671 = vpack.c.b16 %v1399, %v1391
        %v1672 = vpack.c.b16 %v1400, %v1392
        %v1673 = vpack.c.b16 %v1401, %v1393
        %v1674 = vpack.c.b16 %v1402, %v1394
        %v1675 = vpack.c.b16 %v1411, %v1403
        %v1676 = vpack.c.b16 %v1412, %v1404
        %v1677 = vpack.c.b16 %v1413, %v1405
        %v1678 = vpack.c.b16 %v1414, %v1406
        %v1679 = vpack.c.b16 %v1415, %v1407
        %v1680 = vpack.c.b16 %v1416, %v1408
        %v1681 = vpack.c.b16 %v1417, %v1409
        %v1682 = vpack.c.b16 %v1418, %v1410
        %v1683 = vpack.c.b16 %v1427, %v1419
        %v1684 = vpack.c.b16 %v1428, %v1420
        %v1685 = vpack.c.b16 %v1429, %v1421
        %v1686 = vpack.c.b16 %v1430, %v1422
        %v1687 = vpack.c.b16 %v1431, %v1423
        %v1688 = vpack.c.b16 %v1432, %v1424
        %v1689 = vpack.c.b16 %v1433, %v1425
        %v1690 = vpack.c.b16 %v1434, %v1426
        %1947 = vmatpush.bf16.msra.mxu0 %v1491
        %1948 = vmatpush.bf16.msra.mxu0 %v1483
        %1949 = vmatpush.bf16.msra.mxu0 %v1475
        %1950 = vmatpush.bf16.msra.mxu0 %v1467
        %1951 = vmatpush.bf16.msra.mxu0 %v1459
        %1952 = vmatpush.bf16.msra.mxu0 %v1451
        %1953 = vmatpush.bf16.msra.mxu0 %v1443
        %1954 = vmatpush.bf16.msra.mxu0 %v1435
        %1955 = vmatmul.bf16.gmra.mxu0 %v659
        %v1956 = vpop.f32.mrf.mxu0
        %v1957 = vadd.f32 %v637, %v1956
        %v1958 = vpop.f32.mrf.mxu0
        %1959 = vdwg.mxu0
        %1960 = vmatpush.bf16.msra.mxu0 %v1555
        %1961 = vmatpush.bf16.msra.mxu0 %v1547
        %1962 = vmatpush.bf16.msra.mxu0 %v1539
        %1963 = vmatpush.bf16.msra.mxu0 %v1531
        %1964 = vmatpush.bf16.msra.mxu0 %v1523
        %1965 = vmatpush.bf16.msra.mxu0 %v1515
        %1966 = vmatpush.bf16.msra.mxu0 %v1507
        %1967 = vmatpush.bf16.msra.mxu0 %v1499
        %1968 = vmatmul.bf16.gmra.mxu0 %v660
        %v1969 = vpop.f32.mrf.mxu0
        %v1970 = vadd.f32 %v1957, %v1969
        %v1971 = vpop.f32.mrf.mxu0
        %1972 = vdwg.mxu0
        %1973 = vmatpush.bf16.msra.mxu0 %v1619
        %1974 = vmatpush.bf16.msra.mxu0 %v1611
        %1975 = vmatpush.bf16.msra.mxu0 %v1603
        %1976 = vmatpush.bf16.msra.mxu0 %v1595
        %1977 = vmatpush.bf16.msra.mxu0 %v1587
        %1978 = vmatpush.bf16.msra.mxu0 %v1579
        %1979 = vmatpush.bf16.msra.mxu0 %v1571
        %1980 = vmatpush.bf16.msra.mxu0 %v1563
        %1981 = vmatmul.bf16.gmra.mxu0 %v661
        %v1982 = vpop.f32.mrf.mxu0
        %v1983 = vadd.f32 %v1970, %v1982
        %v1984 = vpop.f32.mrf.mxu0
        %1985 = vdwg.mxu0
        %1986 = vmatpush.bf16.msra.mxu0 %v1683
        %1987 = vmatpush.bf16.msra.mxu0 %v1675
        %1988 = vmatpush.bf16.msra.mxu0 %v1667
        %1989 = vmatpush.bf16.msra.mxu0 %v1659
        %1990 = vmatpush.bf16.msra.mxu0 %v1651
        %1991 = vmatpush.bf16.msra.mxu0 %v1643
        %1992 = vmatpush.bf16.msra.mxu0 %v1635
        %1993 = vmatpush.bf16.msra.mxu0 %v1627
        %1994 = vmatmul.bf16.gmra.mxu0 %v662
        %v1995 = vpop.f32.mrf.mxu0
        %v1996 = vadd.f32 %v1983, %v1995
        %v1997 = vpop.f32.mrf.mxu0
        %1998 = vdwg.mxu0
        %1999 = vmatpush.bf16.msra.mxu0 %v1492
        %2000 = vmatpush.bf16.msra.mxu0 %v1484
        %2001 = vmatpush.bf16.msra.mxu0 %v1476
        %2002 = vmatpush.bf16.msra.mxu0 %v1468
        %2003 = vmatpush.bf16.msra.mxu0 %v1460
        %2004 = vmatpush.bf16.msra.mxu0 %v1452
        %2005 = vmatpush.bf16.msra.mxu0 %v1444
        %2006 = vmatpush.bf16.msra.mxu0 %v1436
        %2007 = vmatmul.bf16.gmra.mxu0 %v659
        %v2008 = vpop.f32.mrf.mxu0
        %v2009 = vadd.f32 %v638, %v2008
        %v2010 = vpop.f32.mrf.mxu0
        %2011 = vdwg.mxu0
        %2012 = vmatpush.bf16.msra.mxu0 %v1556
        %2013 = vmatpush.bf16.msra.mxu0 %v1548
        %2014 = vmatpush.bf16.msra.mxu0 %v1540
        %2015 = vmatpush.bf16.msra.mxu0 %v1532
        %2016 = vmatpush.bf16.msra.mxu0 %v1524
        %2017 = vmatpush.bf16.msra.mxu0 %v1516
        %2018 = vmatpush.bf16.msra.mxu0 %v1508
        %2019 = vmatpush.bf16.msra.mxu0 %v1500
        %2020 = vmatmul.bf16.gmra.mxu0 %v660
        %v2021 = vpop.f32.mrf.mxu0
        %v2022 = vadd.f32 %v2009, %v2021
        %v2023 = vpop.f32.mrf.mxu0
        %2024 = vdwg.mxu0
        %2025 = vmatpush.bf16.msra.mxu0 %v1620
        %2026 = vmatpush.bf16.msra.mxu0 %v1612
        %2027 = vmatpush.bf16.msra.mxu0 %v1604
        %2028 = vmatpush.bf16.msra.mxu0 %v1596
        %2029 = vmatpush.bf16.msra.mxu0 %v1588
        %2030 = vmatpush.bf16.msra.mxu0 %v1580
        %2031 = vmatpush.bf16.msra.mxu0 %v1572
        %2032 = vmatpush.bf16.msra.mxu0 %v1564
        %2033 = vmatmul.bf16.gmra.mxu0 %v661
        %v2034 = vpop.f32.mrf.mxu0
        %v2035 = vadd.f32 %v2022, %v2034
        %v2036 = vpop.f32.mrf.mxu0
        %2037 = vdwg.mxu0
        %2038 = vmatpush.bf16.msra.mxu0 %v1684
        %2039 = vmatpush.bf16.msra.mxu0 %v1676
        %2040 = vmatpush.bf16.msra.mxu0 %v1668
        %2041 = vmatpush.bf16.msra.mxu0 %v1660
        %2042 = vmatpush.bf16.msra.mxu0 %v1652
        %2043 = vmatpush.bf16.msra.mxu0 %v1644
        %2044 = vmatpush.bf16.msra.mxu0 %v1636
        %2045 = vmatpush.bf16.msra.mxu0 %v1628
        %2046 = vmatmul.bf16.gmra.mxu0 %v662
        %v2047 = vpop.f32.mrf.mxu0
        %v2048 = vadd.f32 %v2035, %v2047
        %v2049 = vpop.f32.mrf.mxu0
        %2050 = vdwg.mxu0
        %2051 = vmatpush.bf16.msra.mxu0 %v1493
        %2052 = vmatpush.bf16.msra.mxu0 %v1485
        %2053 = vmatpush.bf16.msra.mxu0 %v1477
        %2054 = vmatpush.bf16.msra.mxu0 %v1469
        %2055 = vmatpush.bf16.msra.mxu0 %v1461
        %2056 = vmatpush.bf16.msra.mxu0 %v1453
        %2057 = vmatpush.bf16.msra.mxu0 %v1445
        %2058 = vmatpush.bf16.msra.mxu0 %v1437
        %2059 = vmatmul.bf16.gmra.mxu0 %v659
        %v2060 = vpop.f32.mrf.mxu0
        %v2061 = vadd.f32 %v639, %v2060
        %v2062 = vpop.f32.mrf.mxu0
        %2063 = vdwg.mxu0
        %2064 = vmatpush.bf16.msra.mxu0 %v1557
        %2065 = vmatpush.bf16.msra.mxu0 %v1549
        %2066 = vmatpush.bf16.msra.mxu0 %v1541
        %2067 = vmatpush.bf16.msra.mxu0 %v1533
        %2068 = vmatpush.bf16.msra.mxu0 %v1525
        %2069 = vmatpush.bf16.msra.mxu0 %v1517
        %2070 = vmatpush.bf16.msra.mxu0 %v1509
        %2071 = vmatpush.bf16.msra.mxu0 %v1501
        %2072 = vmatmul.bf16.gmra.mxu0 %v660
        %v2073 = vpop.f32.mrf.mxu0
        %v2074 = vadd.f32 %v2061, %v2073
        %v2075 = vpop.f32.mrf.mxu0
        %2076 = vdwg.mxu0
        %2077 = vmatpush.bf16.msra.mxu0 %v1621
        %2078 = vmatpush.bf16.msra.mxu0 %v1613
        %2079 = vmatpush.bf16.msra.mxu0 %v1605
        %2080 = vmatpush.bf16.msra.mxu0 %v1597
        %2081 = vmatpush.bf16.msra.mxu0 %v1589
        %2082 = vmatpush.bf16.msra.mxu0 %v1581
        %2083 = vmatpush.bf16.msra.mxu0 %v1573
        %2084 = vmatpush.bf16.msra.mxu0 %v1565
        %2085 = vmatmul.bf16.gmra.mxu0 %v661
        %v2086 = vpop.f32.mrf.mxu0
        %v2087 = vadd.f32 %v2074, %v2086
        %v2088 = vpop.f32.mrf.mxu0
        %2089 = vdwg.mxu0
        %2090 = vmatpush.bf16.msra.mxu0 %v1685
        %2091 = vmatpush.bf16.msra.mxu0 %v1677
        %2092 = vmatpush.bf16.msra.mxu0 %v1669
        %2093 = vmatpush.bf16.msra.mxu0 %v1661
        %2094 = vmatpush.bf16.msra.mxu0 %v1653
        %2095 = vmatpush.bf16.msra.mxu0 %v1645
        %2096 = vmatpush.bf16.msra.mxu0 %v1637
        %2097 = vmatpush.bf16.msra.mxu0 %v1629
        %2098 = vmatmul.bf16.gmra.mxu0 %v662
        %v2099 = vpop.f32.mrf.mxu0
        %v2100 = vadd.f32 %v2087, %v2099
        %v2101 = vpop.f32.mrf.mxu0
        %2102 = vdwg.mxu0
        %2103 = vmatpush.bf16.msra.mxu0 %v1494
        %2104 = vmatpush.bf16.msra.mxu0 %v1486
        %2105 = vmatpush.bf16.msra.mxu0 %v1478
        %2106 = vmatpush.bf16.msra.mxu0 %v1470
        %2107 = vmatpush.bf16.msra.mxu0 %v1462
        %2108 = vmatpush.bf16.msra.mxu0 %v1454
        %2109 = vmatpush.bf16.msra.mxu0 %v1446
        %2110 = vmatpush.bf16.msra.mxu0 %v1438
        %2111 = vmatmul.bf16.gmra.mxu0 %v659
        %v2112 = vpop.f32.mrf.mxu0
        %v2113 = vadd.f32 %v640, %v2112
        %v2114 = vpop.f32.mrf.mxu0
        %2115 = vdwg.mxu0
        %2116 = vmatpush.bf16.msra.mxu0 %v1558
        %2117 = vmatpush.bf16.msra.mxu0 %v1550
        %2118 = vmatpush.bf16.msra.mxu0 %v1542
        %2119 = vmatpush.bf16.msra.mxu0 %v1534
        %2120 = vmatpush.bf16.msra.mxu0 %v1526
        %2121 = vmatpush.bf16.msra.mxu0 %v1518
        %2122 = vmatpush.bf16.msra.mxu0 %v1510
        %2123 = vmatpush.bf16.msra.mxu0 %v1502
        %2124 = vmatmul.bf16.gmra.mxu0 %v660
        %v2125 = vpop.f32.mrf.mxu0
        %v2126 = vadd.f32 %v2113, %v2125
        %v2127 = vpop.f32.mrf.mxu0
        %2128 = vdwg.mxu0
        %2129 = vmatpush.bf16.msra.mxu0 %v1622
        %2130 = vmatpush.bf16.msra.mxu0 %v1614
        %2131 = vmatpush.bf16.msra.mxu0 %v1606
        %2132 = vmatpush.bf16.msra.mxu0 %v1598
        %2133 = vmatpush.bf16.msra.mxu0 %v1590
        %2134 = vmatpush.bf16.msra.mxu0 %v1582
        %2135 = vmatpush.bf16.msra.mxu0 %v1574
        %2136 = vmatpush.bf16.msra.mxu0 %v1566
        %2137 = vmatmul.bf16.gmra.mxu0 %v661
        %v2138 = vpop.f32.mrf.mxu0
        %v2139 = vadd.f32 %v2126, %v2138
        %v2140 = vpop.f32.mrf.mxu0
        %2141 = vdwg.mxu0
        %2142 = vmatpush.bf16.msra.mxu0 %v1686
        %2143 = vmatpush.bf16.msra.mxu0 %v1678
        %2144 = vmatpush.bf16.msra.mxu0 %v1670
        %2145 = vmatpush.bf16.msra.mxu0 %v1662
        %2146 = vmatpush.bf16.msra.mxu0 %v1654
        %2147 = vmatpush.bf16.msra.mxu0 %v1646
        %2148 = vmatpush.bf16.msra.mxu0 %v1638
        %2149 = vmatpush.bf16.msra.mxu0 %v1630
        %2150 = vmatmul.bf16.gmra.mxu0 %v662
        %v2151 = vpop.f32.mrf.mxu0
        %v2152 = vadd.f32 %v2139, %v2151
        %v2153 = vpop.f32.mrf.mxu0
        %2154 = vdwg.mxu0
        %2155 = vmatpush.bf16.msra.mxu0 %v1495
        %2156 = vmatpush.bf16.msra.mxu0 %v1487
        %2157 = vmatpush.bf16.msra.mxu0 %v1479
        %2158 = vmatpush.bf16.msra.mxu0 %v1471
        %2159 = vmatpush.bf16.msra.mxu0 %v1463
        %2160 = vmatpush.bf16.msra.mxu0 %v1455
        %2161 = vmatpush.bf16.msra.mxu0 %v1447
        %2162 = vmatpush.bf16.msra.mxu0 %v1439
        %2163 = vmatmul.bf16.gmra.mxu0 %v659
        %v2164 = vpop.f32.mrf.mxu0
        %v2165 = vadd.f32 %v641, %v2164
        %v2166 = vpop.f32.mrf.mxu0
        %2167 = vdwg.mxu0
        %2168 = vmatpush.bf16.msra.mxu0 %v1559
        %2169 = vmatpush.bf16.msra.mxu0 %v1551
        %2170 = vmatpush.bf16.msra.mxu0 %v1543
        %2171 = vmatpush.bf16.msra.mxu0 %v1535
        %2172 = vmatpush.bf16.msra.mxu0 %v1527
        %2173 = vmatpush.bf16.msra.mxu0 %v1519
        %2174 = vmatpush.bf16.msra.mxu0 %v1511
        %2175 = vmatpush.bf16.msra.mxu0 %v1503
        %2176 = vmatmul.bf16.gmra.mxu0 %v660
        %v2177 = vpop.f32.mrf.mxu0
        %v2178 = vadd.f32 %v2165, %v2177
        %v2179 = vpop.f32.mrf.mxu0
        %2180 = vdwg.mxu0
        %2181 = vmatpush.bf16.msra.mxu0 %v1623
        %2182 = vmatpush.bf16.msra.mxu0 %v1615
        %2183 = vmatpush.bf16.msra.mxu0 %v1607
        %2184 = vmatpush.bf16.msra.mxu0 %v1599
        %2185 = vmatpush.bf16.msra.mxu0 %v1591
        %2186 = vmatpush.bf16.msra.mxu0 %v1583
        %2187 = vmatpush.bf16.msra.mxu0 %v1575
        %2188 = vmatpush.bf16.msra.mxu0 %v1567
        %2189 = vmatmul.bf16.gmra.mxu0 %v661
        %v2190 = vpop.f32.mrf.mxu0
        %v2191 = vadd.f32 %v2178, %v2190
        %v2192 = vpop.f32.mrf.mxu0
        %2193 = vdwg.mxu0
        %2194 = vmatpush.bf16.msra.mxu0 %v1687
        %2195 = vmatpush.bf16.msra.mxu0 %v1679
        %2196 = vmatpush.bf16.msra.mxu0 %v1671
        %2197 = vmatpush.bf16.msra.mxu0 %v1663
        %2198 = vmatpush.bf16.msra.mxu0 %v1655
        %2199 = vmatpush.bf16.msra.mxu0 %v1647
        %2200 = vmatpush.bf16.msra.mxu0 %v1639
        %2201 = vmatpush.bf16.msra.mxu0 %v1631
        %2202 = vmatmul.bf16.gmra.mxu0 %v662
        %v2203 = vpop.f32.mrf.mxu0
        %v2204 = vadd.f32 %v2191, %v2203
        %v2205 = vpop.f32.mrf.mxu0
        %2206 = vdwg.mxu0
        %2207 = vmatpush.bf16.msra.mxu0 %v1496
        %2208 = vmatpush.bf16.msra.mxu0 %v1488
        %2209 = vmatpush.bf16.msra.mxu0 %v1480
        %2210 = vmatpush.bf16.msra.mxu0 %v1472
        %2211 = vmatpush.bf16.msra.mxu0 %v1464
        %2212 = vmatpush.bf16.msra.mxu0 %v1456
        %2213 = vmatpush.bf16.msra.mxu0 %v1448
        %2214 = vmatpush.bf16.msra.mxu0 %v1440
        %2215 = vmatmul.bf16.gmra.mxu0 %v659
        %v2216 = vpop.f32.mrf.mxu0
        %v2217 = vadd.f32 %v642, %v2216
        %v2218 = vpop.f32.mrf.mxu0
        %2219 = vdwg.mxu0
        %2220 = vmatpush.bf16.msra.mxu0 %v1560
        %2221 = vmatpush.bf16.msra.mxu0 %v1552
        %2222 = vmatpush.bf16.msra.mxu0 %v1544
        %2223 = vmatpush.bf16.msra.mxu0 %v1536
        %2224 = vmatpush.bf16.msra.mxu0 %v1528
        %2225 = vmatpush.bf16.msra.mxu0 %v1520
        %2226 = vmatpush.bf16.msra.mxu0 %v1512
        %2227 = vmatpush.bf16.msra.mxu0 %v1504
        %2228 = vmatmul.bf16.gmra.mxu0 %v660
        %v2229 = vpop.f32.mrf.mxu0
        %v2230 = vadd.f32 %v2217, %v2229
        %v2231 = vpop.f32.mrf.mxu0
        %2232 = vdwg.mxu0
        %2233 = vmatpush.bf16.msra.mxu0 %v1624
        %2234 = vmatpush.bf16.msra.mxu0 %v1616
        %2235 = vmatpush.bf16.msra.mxu0 %v1608
        %2236 = vmatpush.bf16.msra.mxu0 %v1600
        %2237 = vmatpush.bf16.msra.mxu0 %v1592
        %2238 = vmatpush.bf16.msra.mxu0 %v1584
        %2239 = vmatpush.bf16.msra.mxu0 %v1576
        %2240 = vmatpush.bf16.msra.mxu0 %v1568
        %2241 = vmatmul.bf16.gmra.mxu0 %v661
        %v2242 = vpop.f32.mrf.mxu0
        %v2243 = vadd.f32 %v2230, %v2242
        %v2244 = vpop.f32.mrf.mxu0
        %2245 = vdwg.mxu0
        %2246 = vmatpush.bf16.msra.mxu0 %v1688
        %2247 = vmatpush.bf16.msra.mxu0 %v1680
        %2248 = vmatpush.bf16.msra.mxu0 %v1672
        %2249 = vmatpush.bf16.msra.mxu0 %v1664
        %2250 = vmatpush.bf16.msra.mxu0 %v1656
        %2251 = vmatpush.bf16.msra.mxu0 %v1648
        %2252 = vmatpush.bf16.msra.mxu0 %v1640
        %2253 = vmatpush.bf16.msra.mxu0 %v1632
        %2254 = vmatmul.bf16.gmra.mxu0 %v662
        %v2255 = vpop.f32.mrf.mxu0
        %v2256 = vadd.f32 %v2243, %v2255
        %v2257 = vpop.f32.mrf.mxu0
        %2258 = vdwg.mxu0
        %2259 = vmatpush.bf16.msra.mxu0 %v1497
        %2260 = vmatpush.bf16.msra.mxu0 %v1489
        %2261 = vmatpush.bf16.msra.mxu0 %v1481
        %2262 = vmatpush.bf16.msra.mxu0 %v1473
        %2263 = vmatpush.bf16.msra.mxu0 %v1465
        %2264 = vmatpush.bf16.msra.mxu0 %v1457
        %2265 = vmatpush.bf16.msra.mxu0 %v1449
        %2266 = vmatpush.bf16.msra.mxu0 %v1441
        %2267 = vmatmul.bf16.gmra.mxu0 %v659
        %v2268 = vpop.f32.mrf.mxu0
        %v2269 = vadd.f32 %v643, %v2268
        %v2270 = vpop.f32.mrf.mxu0
        %2271 = vdwg.mxu0
        %2272 = vmatpush.bf16.msra.mxu0 %v1561
        %2273 = vmatpush.bf16.msra.mxu0 %v1553
        %2274 = vmatpush.bf16.msra.mxu0 %v1545
        %2275 = vmatpush.bf16.msra.mxu0 %v1537
        %2276 = vmatpush.bf16.msra.mxu0 %v1529
        %2277 = vmatpush.bf16.msra.mxu0 %v1521
        %2278 = vmatpush.bf16.msra.mxu0 %v1513
        %2279 = vmatpush.bf16.msra.mxu0 %v1505
        %2280 = vmatmul.bf16.gmra.mxu0 %v660
        %v2281 = vpop.f32.mrf.mxu0
        %v2282 = vadd.f32 %v2269, %v2281
        %v2283 = vpop.f32.mrf.mxu0
        %2284 = vdwg.mxu0
        %2285 = vmatpush.bf16.msra.mxu0 %v1625
        %2286 = vmatpush.bf16.msra.mxu0 %v1617
        %2287 = vmatpush.bf16.msra.mxu0 %v1609
        %2288 = vmatpush.bf16.msra.mxu0 %v1601
        %2289 = vmatpush.bf16.msra.mxu0 %v1593
        %2290 = vmatpush.bf16.msra.mxu0 %v1585
        %2291 = vmatpush.bf16.msra.mxu0 %v1577
        %2292 = vmatpush.bf16.msra.mxu0 %v1569
        %2293 = vmatmul.bf16.gmra.mxu0 %v661
        %v2294 = vpop.f32.mrf.mxu0
        %v2295 = vadd.f32 %v2282, %v2294
        %v2296 = vpop.f32.mrf.mxu0
        %2297 = vdwg.mxu0
        %2298 = vmatpush.bf16.msra.mxu0 %v1689
        %2299 = vmatpush.bf16.msra.mxu0 %v1681
        %2300 = vmatpush.bf16.msra.mxu0 %v1673
        %2301 = vmatpush.bf16.msra.mxu0 %v1665
        %2302 = vmatpush.bf16.msra.mxu0 %v1657
        %2303 = vmatpush.bf16.msra.mxu0 %v1649
        %2304 = vmatpush.bf16.msra.mxu0 %v1641
        %2305 = vmatpush.bf16.msra.mxu0 %v1633
        %2306 = vmatmul.bf16.gmra.mxu0 %v662
        %v2307 = vpop.f32.mrf.mxu0
        %v2308 = vadd.f32 %v2295, %v2307
        %v2309 = vpop.f32.mrf.mxu0
        %2310 = vdwg.mxu0
        %2311 = vmatpush.bf16.msra.mxu0 %v1498
        %2312 = vmatpush.bf16.msra.mxu0 %v1490
        %2313 = vmatpush.bf16.msra.mxu0 %v1482
        %2314 = vmatpush.bf16.msra.mxu0 %v1474
        %2315 = vmatpush.bf16.msra.mxu0 %v1466
        %2316 = vmatpush.bf16.msra.mxu0 %v1458
        %2317 = vmatpush.bf16.msra.mxu0 %v1450
        %2318 = vmatpush.bf16.msra.mxu0 %v1442
        %2319 = vmatmul.bf16.gmra.mxu0 %v659
        %v2320 = vpop.f32.mrf.mxu0
        %v2321 = vadd.f32 %v644, %v2320
        %v2322 = vpop.f32.mrf.mxu0
        %2323 = vdwg.mxu0
        %2324 = vmatpush.bf16.msra.mxu0 %v1562
        %2325 = vmatpush.bf16.msra.mxu0 %v1554
        %2326 = vmatpush.bf16.msra.mxu0 %v1546
        %2327 = vmatpush.bf16.msra.mxu0 %v1538
        %2328 = vmatpush.bf16.msra.mxu0 %v1530
        %2329 = vmatpush.bf16.msra.mxu0 %v1522
        %2330 = vmatpush.bf16.msra.mxu0 %v1514
        %2331 = vmatpush.bf16.msra.mxu0 %v1506
        %2332 = vmatmul.bf16.gmra.mxu0 %v660
        %v2333 = vpop.f32.mrf.mxu0
        %v2334 = vadd.f32 %v2321, %v2333
        %v2335 = vpop.f32.mrf.mxu0
        %2336 = vdwg.mxu0
        %2337 = vmatpush.bf16.msra.mxu0 %v1626
        %2338 = vmatpush.bf16.msra.mxu0 %v1618
        %2339 = vmatpush.bf16.msra.mxu0 %v1610
        %2340 = vmatpush.bf16.msra.mxu0 %v1602
        %2341 = vmatpush.bf16.msra.mxu0 %v1594
        %2342 = vmatpush.bf16.msra.mxu0 %v1586
        %2343 = vmatpush.bf16.msra.mxu0 %v1578
        %2344 = vmatpush.bf16.msra.mxu0 %v1570
        %2345 = vmatmul.bf16.gmra.mxu0 %v661
        %v2346 = vpop.f32.mrf.mxu0
        %v2347 = vadd.f32 %v2334, %v2346
        %v2348 = vpop.f32.mrf.mxu0
        %2349 = vdwg.mxu0
        %2350 = vmatpush.bf16.msra.mxu0 %v1690
        %2351 = vmatpush.bf16.msra.mxu0 %v1682
        %2352 = vmatpush.bf16.msra.mxu0 %v1674
        %2353 = vmatpush.bf16.msra.mxu0 %v1666
        %2354 = vmatpush.bf16.msra.mxu0 %v1658
        %2355 = vmatpush.bf16.msra.mxu0 %v1650
        %2356 = vmatpush.bf16.msra.mxu0 %v1642
        %2357 = vmatpush.bf16.msra.mxu0 %v1634
        %2358 = vmatmul.bf16.gmra.mxu0 %v662
        %v2359 = vpop.f32.mrf.mxu0
        %v2360 = vadd.f32 %v2347, %v2359
        %v2361 = vpop.f32.mrf.mxu0
        %2362 = vdwg.mxu0
        %v2363 = vmax.f32 %v1996, 0.0
        %v2364 = vmax.f32 %v2048, 0.0
        %v2365 = vmax.f32 %v2100, 0.0
        %v2366 = vmax.f32 %v2152, 0.0
        %v2367 = vmax.f32 %v2204, 0.0
        %v2368 = vmax.f32 %v2256, 0.0
        %v2369 = vmax.f32 %v2308, 0.0
        %v2370 = vmax.f32 %v2360, 0.0
        %v2371 = vld [vmem:[#allocation2] sm:$0xff]
        %v2372 = vld [vmem:[#allocation2 + $0x8] sm:$0xff]
        %v2373 = vld [vmem:[#allocation2 + $0x10] sm:$0xff]
        %v2374 = vld [vmem:[#allocation2 + $0x18] sm:$0xff]
        %v2375 = vpack.c.bf16 %v2363, %v2363
        %v2376 = vpack.c.bf16 %v2364, %v2364
        %v2377 = vpack.c.bf16 %v2365, %v2365
        %v2378 = vpack.c.bf16 %v2366, %v2366
        %v2379 = vpack.c.bf16 %v2367, %v2367
        %v2380 = vpack.c.bf16 %v2368, %v2368
        %v2381 = vpack.c.bf16 %v2369, %v2369
        %v2382 = vpack.c.bf16 %v2370, %v2370
        %v2383 = vld [vmem:[%s328] sm:$0xff]
        %v2384 = vld [vmem:[%s328 + $0x8] sm:$0xff]
        %v2385 = vld [vmem:[%s328 + $0x10] sm:$0xff]
        %v2386 = vld [vmem:[%s328 + $0x18] sm:$0xff]
        %v2387 = vld [vmem:[%s328 + $0x20] sm:$0xff]
        %v2388 = vld [vmem:[%s328 + $0x28] sm:$0xff]
        %v2389 = vld [vmem:[%s328 + $0x30] sm:$0xff]
        %v2390 = vld [vmem:[%s328 + $0x38] sm:$0xff]
        %v2391 = vld [vmem:[%s328 + $0x40] sm:$0xff]
        %v2392 = vld [vmem:[%s328 + $0x48] sm:$0xff]
        %v2393 = vld [vmem:[%s328 + $0x50] sm:$0xff]
        %v2394 = vld [vmem:[%s328 + $0x58] sm:$0xff]
        %v2395 = vld [vmem:[%s328 + $0x60] sm:$0xff]
        %v2396 = vld [vmem:[%s328 + $0x68] sm:$0xff]
        %v2397 = vld [vmem:[%s328 + $0x70] sm:$0xff]
        %v2398 = vld [vmem:[%s328 + $0x78] sm:$0xff]
        %v2399 = vld [vmem:[%s328 + $0x80] sm:$0xff]
        %v2400 = vld [vmem:[%s328 + $0x88] sm:$0xff]
        %v2401 = vld [vmem:[%s328 + $0x90] sm:$0xff]
        %v2402 = vld [vmem:[%s328 + $0x98] sm:$0xff]
        %v2403 = vld [vmem:[%s328 + $0xa0] sm:$0xff]
        %v2404 = vld [vmem:[%s328 + $0xa8] sm:$0xff]
        %v2405 = vld [vmem:[%s328 + $0xb0] sm:$0xff]
        %v2406 = vld [vmem:[%s328 + $0xb8] sm:$0xff]
        %v2407 = vld [vmem:[%s328 + $0xc0] sm:$0xff]
        %v2408 = vld [vmem:[%s328 + $0xc8] sm:$0xff]
        %v2409 = vld [vmem:[%s328 + $0xd0] sm:$0xff]
        %v2410 = vld [vmem:[%s328 + $0xd8] sm:$0xff]
        %v2411 = vld [vmem:[%s328 + $0xe0] sm:$0xff]
        %v2412 = vld [vmem:[%s328 + $0xe8] sm:$0xff]
        %v2413 = vld [vmem:[%s328 + $0xf0] sm:$0xff]
        %v2414 = vld [vmem:[%s328 + $0xf8] sm:$0xff]
        %v2415 = vld [vmem:[%s328 + $0x100] sm:$0xff]
        %v2416 = vld [vmem:[%s328 + $0x108] sm:$0xff]
        %v2417 = vld [vmem:[%s328 + $0x110] sm:$0xff]
        %v2418 = vld [vmem:[%s328 + $0x118] sm:$0xff]
        %v2419 = vld [vmem:[%s328 + $0x120] sm:$0xff]
        %v2420 = vld [vmem:[%s328 + $0x128] sm:$0xff]
        %v2421 = vld [vmem:[%s328 + $0x130] sm:$0xff]
        %v2422 = vld [vmem:[%s328 + $0x138] sm:$0xff]
        %v2423 = vld [vmem:[%s328 + $0x140] sm:$0xff]
        %v2424 = vld [vmem:[%s328 + $0x148] sm:$0xff]
        %v2425 = vld [vmem:[%s328 + $0x150] sm:$0xff]
        %v2426 = vld [vmem:[%s328 + $0x158] sm:$0xff]
        %v2427 = vld [vmem:[%s328 + $0x160] sm:$0xff]
        %v2428 = vld [vmem:[%s328 + $0x168] sm:$0xff]
        %v2429 = vld [vmem:[%s328 + $0x170] sm:$0xff]
        %v2430 = vld [vmem:[%s328 + $0x178] sm:$0xff]
        %v2431 = vld [vmem:[%s328 + $0x180] sm:$0xff]
        %v2432 = vld [vmem:[%s328 + $0x188] sm:$0xff]
        %v2433 = vld [vmem:[%s328 + $0x190] sm:$0xff]
        %v2434 = vld [vmem:[%s328 + $0x198] sm:$0xff]
        %v2435 = vld [vmem:[%s328 + $0x1a0] sm:$0xff]
        %v2436 = vld [vmem:[%s328 + $0x1a8] sm:$0xff]
        %v2437 = vld [vmem:[%s328 + $0x1b0] sm:$0xff]
        %v2438 = vld [vmem:[%s328 + $0x1b8] sm:$0xff]
        %v2439 = vld [vmem:[%s328 + $0x1c0] sm:$0xff]
        %v2440 = vld [vmem:[%s328 + $0x1c8] sm:$0xff]
        %v2441 = vld [vmem:[%s328 + $0x1d0] sm:$0xff]
        %v2442 = vld [vmem:[%s328 + $0x1d8] sm:$0xff]
        %v2443 = vld [vmem:[%s328 + $0x1e0] sm:$0xff]
        %v2444 = vld [vmem:[%s328 + $0x1e8] sm:$0xff]
        %v2445 = vld [vmem:[%s328 + $0x1f0] sm:$0xff]
        %v2446 = vld [vmem:[%s328 + $0x1f8] sm:$0xff]
        %v2447 = vld [vmem:[%s328 + $0x200] sm:$0xff]
        %v2448 = vld [vmem:[%s328 + $0x208] sm:$0xff]
        %v2449 = vld [vmem:[%s328 + $0x210] sm:$0xff]
        %v2450 = vld [vmem:[%s328 + $0x218] sm:$0xff]
        %v2451 = vld [vmem:[%s328 + $0x220] sm:$0xff]
        %v2452 = vld [vmem:[%s328 + $0x228] sm:$0xff]
        %v2453 = vld [vmem:[%s328 + $0x230] sm:$0xff]
        %v2454 = vld [vmem:[%s328 + $0x238] sm:$0xff]
        %v2455 = vld [vmem:[%s328 + $0x240] sm:$0xff]
        %v2456 = vld [vmem:[%s328 + $0x248] sm:$0xff]
        %v2457 = vld [vmem:[%s328 + $0x250] sm:$0xff]
        %v2458 = vld [vmem:[%s328 + $0x258] sm:$0xff]
        %v2459 = vld [vmem:[%s328 + $0x260] sm:$0xff]
        %v2460 = vld [vmem:[%s328 + $0x268] sm:$0xff]
        %v2461 = vld [vmem:[%s328 + $0x270] sm:$0xff]
        %v2462 = vld [vmem:[%s328 + $0x278] sm:$0xff]
        %v2463 = vld [vmem:[%s328 + $0x280] sm:$0xff]
        %v2464 = vld [vmem:[%s328 + $0x288] sm:$0xff]
        %v2465 = vld [vmem:[%s328 + $0x290] sm:$0xff]
        %v2466 = vld [vmem:[%s328 + $0x298] sm:$0xff]
        %v2467 = vld [vmem:[%s328 + $0x2a0] sm:$0xff]
        %v2468 = vld [vmem:[%s328 + $0x2a8] sm:$0xff]
        %v2469 = vld [vmem:[%s328 + $0x2b0] sm:$0xff]
        %v2470 = vld [vmem:[%s328 + $0x2b8] sm:$0xff]
        %v2471 = vld [vmem:[%s328 + $0x2c0] sm:$0xff]
        %v2472 = vld [vmem:[%s328 + $0x2c8] sm:$0xff]
        %v2473 = vld [vmem:[%s328 + $0x2d0] sm:$0xff]
        %v2474 = vld [vmem:[%s328 + $0x2d8] sm:$0xff]
        %v2475 = vld [vmem:[%s328 + $0x2e0] sm:$0xff]
        %v2476 = vld [vmem:[%s328 + $0x2e8] sm:$0xff]
        %v2477 = vld [vmem:[%s328 + $0x2f0] sm:$0xff]
        %v2478 = vld [vmem:[%s328 + $0x2f8] sm:$0xff]
        %v2479 = vld [vmem:[%s328 + $0x300] sm:$0xff]
        %v2480 = vld [vmem:[%s328 + $0x308] sm:$0xff]
        %v2481 = vld [vmem:[%s328 + $0x310] sm:$0xff]
        %v2482 = vld [vmem:[%s328 + $0x318] sm:$0xff]
        %v2483 = vld [vmem:[%s328 + $0x320] sm:$0xff]
        %v2484 = vld [vmem:[%s328 + $0x328] sm:$0xff]
        %v2485 = vld [vmem:[%s328 + $0x330] sm:$0xff]
        %v2486 = vld [vmem:[%s328 + $0x338] sm:$0xff]
        %v2487 = vld [vmem:[%s328 + $0x340] sm:$0xff]
        %v2488 = vld [vmem:[%s328 + $0x348] sm:$0xff]
        %v2489 = vld [vmem:[%s328 + $0x350] sm:$0xff]
        %v2490 = vld [vmem:[%s328 + $0x358] sm:$0xff]
        %v2491 = vld [vmem:[%s328 + $0x360] sm:$0xff]
        %v2492 = vld [vmem:[%s328 + $0x368] sm:$0xff]
        %v2493 = vld [vmem:[%s328 + $0x370] sm:$0xff]
        %v2494 = vld [vmem:[%s328 + $0x378] sm:$0xff]
        %v2495 = vld [vmem:[%s328 + $0x380] sm:$0xff]
        %v2496 = vld [vmem:[%s328 + $0x388] sm:$0xff]
        %v2497 = vld [vmem:[%s328 + $0x390] sm:$0xff]
        %v2498 = vld [vmem:[%s328 + $0x398] sm:$0xff]
        %v2499 = vld [vmem:[%s328 + $0x3a0] sm:$0xff]
        %v2500 = vld [vmem:[%s328 + $0x3a8] sm:$0xff]
        %v2501 = vld [vmem:[%s328 + $0x3b0] sm:$0xff]
        %v2502 = vld [vmem:[%s328 + $0x3b8] sm:$0xff]
        %v2503 = vld [vmem:[%s328 + $0x3c0] sm:$0xff]
        %v2504 = vld [vmem:[%s328 + $0x3c8] sm:$0xff]
        %v2505 = vld [vmem:[%s328 + $0x3d0] sm:$0xff]
        %v2506 = vld [vmem:[%s328 + $0x3d8] sm:$0xff]
        %v2507 = vld [vmem:[%s328 + $0x3e0] sm:$0xff]
        %v2508 = vld [vmem:[%s328 + $0x3e8] sm:$0xff]
        %v2509 = vld [vmem:[%s328 + $0x3f0] sm:$0xff]
        %v2510 = vld [vmem:[%s328 + $0x3f8] sm:$0xff]
        %v2511 = vld [vmem:[%s328 + $0x400] sm:$0xff]
        %v2512 = vld [vmem:[%s328 + $0x408] sm:$0xff]
        %v2513 = vld [vmem:[%s328 + $0x410] sm:$0xff]
        %v2514 = vld [vmem:[%s328 + $0x418] sm:$0xff]
        %v2515 = vld [vmem:[%s328 + $0x420] sm:$0xff]
        %v2516 = vld [vmem:[%s328 + $0x428] sm:$0xff]
        %v2517 = vld [vmem:[%s328 + $0x430] sm:$0xff]
        %v2518 = vld [vmem:[%s328 + $0x438] sm:$0xff]
        %v2519 = vld [vmem:[%s328 + $0x440] sm:$0xff]
        %v2520 = vld [vmem:[%s328 + $0x448] sm:$0xff]
        %v2521 = vld [vmem:[%s328 + $0x450] sm:$0xff]
        %v2522 = vld [vmem:[%s328 + $0x458] sm:$0xff]
        %v2523 = vld [vmem:[%s328 + $0x460] sm:$0xff]
        %v2524 = vld [vmem:[%s328 + $0x468] sm:$0xff]
        %v2525 = vld [vmem:[%s328 + $0x470] sm:$0xff]
        %v2526 = vld [vmem:[%s328 + $0x478] sm:$0xff]
        %v2527 = vld [vmem:[%s328 + $0x480] sm:$0xff]
        %v2528 = vld [vmem:[%s328 + $0x488] sm:$0xff]
        %v2529 = vld [vmem:[%s328 + $0x490] sm:$0xff]
        %v2530 = vld [vmem:[%s328 + $0x498] sm:$0xff]
        %v2531 = vld [vmem:[%s328 + $0x4a0] sm:$0xff]
        %v2532 = vld [vmem:[%s328 + $0x4a8] sm:$0xff]
        %v2533 = vld [vmem:[%s328 + $0x4b0] sm:$0xff]
        %v2534 = vld [vmem:[%s328 + $0x4b8] sm:$0xff]
        %v2535 = vld [vmem:[%s328 + $0x4c0] sm:$0xff]
        %v2536 = vld [vmem:[%s328 + $0x4c8] sm:$0xff]
        %v2537 = vld [vmem:[%s328 + $0x4d0] sm:$0xff]
        %v2538 = vld [vmem:[%s328 + $0x4d8] sm:$0xff]
        %v2539 = vld [vmem:[%s328 + $0x4e0] sm:$0xff]
        %v2540 = vld [vmem:[%s328 + $0x4e8] sm:$0xff]
        %v2541 = vld [vmem:[%s328 + $0x4f0] sm:$0xff]
        %v2542 = vld [vmem:[%s328 + $0x4f8] sm:$0xff]
        %v2543 = vld [vmem:[%s328 + $0x500] sm:$0xff]
        %v2544 = vld [vmem:[%s328 + $0x508] sm:$0xff]
        %v2545 = vld [vmem:[%s328 + $0x510] sm:$0xff]
        %v2546 = vld [vmem:[%s328 + $0x518] sm:$0xff]
        %v2547 = vld [vmem:[%s328 + $0x520] sm:$0xff]
        %v2548 = vld [vmem:[%s328 + $0x528] sm:$0xff]
        %v2549 = vld [vmem:[%s328 + $0x530] sm:$0xff]
        %v2550 = vld [vmem:[%s328 + $0x538] sm:$0xff]
        %v2551 = vld [vmem:[%s328 + $0x540] sm:$0xff]
        %v2552 = vld [vmem:[%s328 + $0x548] sm:$0xff]
        %v2553 = vld [vmem:[%s328 + $0x550] sm:$0xff]
        %v2554 = vld [vmem:[%s328 + $0x558] sm:$0xff]
        %v2555 = vld [vmem:[%s328 + $0x560] sm:$0xff]
        %v2556 = vld [vmem:[%s328 + $0x568] sm:$0xff]
        %v2557 = vld [vmem:[%s328 + $0x570] sm:$0xff]
        %v2558 = vld [vmem:[%s328 + $0x578] sm:$0xff]
        %v2559 = vld [vmem:[%s328 + $0x580] sm:$0xff]
        %v2560 = vld [vmem:[%s328 + $0x588] sm:$0xff]
        %v2561 = vld [vmem:[%s328 + $0x590] sm:$0xff]
        %v2562 = vld [vmem:[%s328 + $0x598] sm:$0xff]
        %v2563 = vld [vmem:[%s328 + $0x5a0] sm:$0xff]
        %v2564 = vld [vmem:[%s328 + $0x5a8] sm:$0xff]
        %v2565 = vld [vmem:[%s328 + $0x5b0] sm:$0xff]
        %v2566 = vld [vmem:[%s328 + $0x5b8] sm:$0xff]
        %v2567 = vld [vmem:[%s328 + $0x5c0] sm:$0xff]
        %v2568 = vld [vmem:[%s328 + $0x5c8] sm:$0xff]
        %v2569 = vld [vmem:[%s328 + $0x5d0] sm:$0xff]
        %v2570 = vld [vmem:[%s328 + $0x5d8] sm:$0xff]
        %v2571 = vld [vmem:[%s328 + $0x5e0] sm:$0xff]
        %v2572 = vld [vmem:[%s328 + $0x5e8] sm:$0xff]
        %v2573 = vld [vmem:[%s328 + $0x5f0] sm:$0xff]
        %v2574 = vld [vmem:[%s328 + $0x5f8] sm:$0xff]
        %v2575 = vld [vmem:[%s328 + $0x600] sm:$0xff]
        %v2576 = vld [vmem:[%s328 + $0x608] sm:$0xff]
        %v2577 = vld [vmem:[%s328 + $0x610] sm:$0xff]
        %v2578 = vld [vmem:[%s328 + $0x618] sm:$0xff]
        %v2579 = vld [vmem:[%s328 + $0x620] sm:$0xff]
        %v2580 = vld [vmem:[%s328 + $0x628] sm:$0xff]
        %v2581 = vld [vmem:[%s328 + $0x630] sm:$0xff]
        %v2582 = vld [vmem:[%s328 + $0x638] sm:$0xff]
        %v2583 = vld [vmem:[%s328 + $0x640] sm:$0xff]
        %v2584 = vld [vmem:[%s328 + $0x648] sm:$0xff]
        %v2585 = vld [vmem:[%s328 + $0x650] sm:$0xff]
        %v2586 = vld [vmem:[%s328 + $0x658] sm:$0xff]
        %v2587 = vld [vmem:[%s328 + $0x660] sm:$0xff]
        %v2588 = vld [vmem:[%s328 + $0x668] sm:$0xff]
        %v2589 = vld [vmem:[%s328 + $0x670] sm:$0xff]
        %v2590 = vld [vmem:[%s328 + $0x678] sm:$0xff]
        %v2591 = vld [vmem:[%s328 + $0x680] sm:$0xff]
        %v2592 = vld [vmem:[%s328 + $0x688] sm:$0xff]
        %v2593 = vld [vmem:[%s328 + $0x690] sm:$0xff]
        %v2594 = vld [vmem:[%s328 + $0x698] sm:$0xff]
        %v2595 = vld [vmem:[%s328 + $0x6a0] sm:$0xff]
        %v2596 = vld [vmem:[%s328 + $0x6a8] sm:$0xff]
        %v2597 = vld [vmem:[%s328 + $0x6b0] sm:$0xff]
        %v2598 = vld [vmem:[%s328 + $0x6b8] sm:$0xff]
        %v2599 = vld [vmem:[%s328 + $0x6c0] sm:$0xff]
        %v2600 = vld [vmem:[%s328 + $0x6c8] sm:$0xff]
        %v2601 = vld [vmem:[%s328 + $0x6d0] sm:$0xff]
        %v2602 = vld [vmem:[%s328 + $0x6d8] sm:$0xff]
        %v2603 = vld [vmem:[%s328 + $0x6e0] sm:$0xff]
        %v2604 = vld [vmem:[%s328 + $0x6e8] sm:$0xff]
        %v2605 = vld [vmem:[%s328 + $0x6f0] sm:$0xff]
        %v2606 = vld [vmem:[%s328 + $0x6f8] sm:$0xff]
        %v2607 = vld [vmem:[%s328 + $0x700] sm:$0xff]
        %v2608 = vld [vmem:[%s328 + $0x708] sm:$0xff]
        %v2609 = vld [vmem:[%s328 + $0x710] sm:$0xff]
        %v2610 = vld [vmem:[%s328 + $0x718] sm:$0xff]
        %v2611 = vld [vmem:[%s328 + $0x720] sm:$0xff]
        %v2612 = vld [vmem:[%s328 + $0x728] sm:$0xff]
        %v2613 = vld [vmem:[%s328 + $0x730] sm:$0xff]
        %v2614 = vld [vmem:[%s328 + $0x738] sm:$0xff]
        %v2615 = vld [vmem:[%s328 + $0x740] sm:$0xff]
        %v2616 = vld [vmem:[%s328 + $0x748] sm:$0xff]
        %v2617 = vld [vmem:[%s328 + $0x750] sm:$0xff]
        %v2618 = vld [vmem:[%s328 + $0x758] sm:$0xff]
        %v2619 = vld [vmem:[%s328 + $0x760] sm:$0xff]
        %v2620 = vld [vmem:[%s328 + $0x768] sm:$0xff]
        %v2621 = vld [vmem:[%s328 + $0x770] sm:$0xff]
        %v2622 = vld [vmem:[%s328 + $0x778] sm:$0xff]
        %v2623 = vld [vmem:[%s328 + $0x780] sm:$0xff]
        %v2624 = vld [vmem:[%s328 + $0x788] sm:$0xff]
        %v2625 = vld [vmem:[%s328 + $0x790] sm:$0xff]
        %v2626 = vld [vmem:[%s328 + $0x798] sm:$0xff]
        %v2627 = vld [vmem:[%s328 + $0x7a0] sm:$0xff]
        %v2628 = vld [vmem:[%s328 + $0x7a8] sm:$0xff]
        %v2629 = vld [vmem:[%s328 + $0x7b0] sm:$0xff]
        %v2630 = vld [vmem:[%s328 + $0x7b8] sm:$0xff]
        %v2631 = vld [vmem:[%s328 + $0x7c0] sm:$0xff]
        %v2632 = vld [vmem:[%s328 + $0x7c8] sm:$0xff]
        %v2633 = vld [vmem:[%s328 + $0x7d0] sm:$0xff]
        %v2634 = vld [vmem:[%s328 + $0x7d8] sm:$0xff]
        %v2635 = vld [vmem:[%s328 + $0x7e0] sm:$0xff]
        %v2636 = vld [vmem:[%s328 + $0x7e8] sm:$0xff]
        %v2637 = vld [vmem:[%s328 + $0x7f0] sm:$0xff]
        %v2638 = vld [vmem:[%s328 + $0x7f8] sm:$0xff]
        %v2895 = vunpack.c.l.b16 %v2383
        %v2896 = vunpack.c.h.b16 %v2383
        %v2897 = vunpack.c.l.b16 %v2384
        %v2898 = vunpack.c.h.b16 %v2384
        %v2899 = vunpack.c.l.b16 %v2385
        %v2900 = vunpack.c.h.b16 %v2385
        %v2901 = vunpack.c.l.b16 %v2386
        %v2902 = vunpack.c.h.b16 %v2386
        %v2903 = vunpack.c.l.b16 %v2387
        %v2904 = vunpack.c.h.b16 %v2387
        %v2905 = vunpack.c.l.b16 %v2388
        %v2906 = vunpack.c.h.b16 %v2388
        %v2907 = vunpack.c.l.b16 %v2389
        %v2908 = vunpack.c.h.b16 %v2389
        %v2909 = vunpack.c.l.b16 %v2390
        %v2910 = vunpack.c.h.b16 %v2390
        %v2911 = vunpack.c.l.b16 %v2391
        %v2912 = vunpack.c.h.b16 %v2391
        %v2913 = vunpack.c.l.b16 %v2392
        %v2914 = vunpack.c.h.b16 %v2392
        %v2915 = vunpack.c.l.b16 %v2393
        %v2916 = vunpack.c.h.b16 %v2393
        %v2917 = vunpack.c.l.b16 %v2394
        %v2918 = vunpack.c.h.b16 %v2394
        %v2919 = vunpack.c.l.b16 %v2395
        %v2920 = vunpack.c.h.b16 %v2395
        %v2921 = vunpack.c.l.b16 %v2396
        %v2922 = vunpack.c.h.b16 %v2396
        %v2923 = vunpack.c.l.b16 %v2397
        %v2924 = vunpack.c.h.b16 %v2397
        %v2925 = vunpack.c.l.b16 %v2398
        %v2926 = vunpack.c.h.b16 %v2398
        %v2927 = vunpack.c.l.b16 %v2399
        %v2928 = vunpack.c.h.b16 %v2399
        %v2929 = vunpack.c.l.b16 %v2400
        %v2930 = vunpack.c.h.b16 %v2400
        %v2931 = vunpack.c.l.b16 %v2401
        %v2932 = vunpack.c.h.b16 %v2401
        %v2933 = vunpack.c.l.b16 %v2402
        %v2934 = vunpack.c.h.b16 %v2402
        %v2935 = vunpack.c.l.b16 %v2403
        %v2936 = vunpack.c.h.b16 %v2403
        %v2937 = vunpack.c.l.b16 %v2404
        %v2938 = vunpack.c.h.b16 %v2404
        %v2939 = vunpack.c.l.b16 %v2405
        %v2940 = vunpack.c.h.b16 %v2405
        %v2941 = vunpack.c.l.b16 %v2406
        %v2942 = vunpack.c.h.b16 %v2406
        %v2943 = vunpack.c.l.b16 %v2407
        %v2944 = vunpack.c.h.b16 %v2407
        %v2945 = vunpack.c.l.b16 %v2408
        %v2946 = vunpack.c.h.b16 %v2408
        %v2947 = vunpack.c.l.b16 %v2409
        %v2948 = vunpack.c.h.b16 %v2409
        %v2949 = vunpack.c.l.b16 %v2410
        %v2950 = vunpack.c.h.b16 %v2410
        %v2951 = vunpack.c.l.b16 %v2411
        %v2952 = vunpack.c.h.b16 %v2411
        %v2953 = vunpack.c.l.b16 %v2412
        %v2954 = vunpack.c.h.b16 %v2412
        %v2955 = vunpack.c.l.b16 %v2413
        %v2956 = vunpack.c.h.b16 %v2413
        %v2957 = vunpack.c.l.b16 %v2414
        %v2958 = vunpack.c.h.b16 %v2414
        %v2959 = vunpack.c.l.b16 %v2415
        %v2960 = vunpack.c.h.b16 %v2415
        %v2961 = vunpack.c.l.b16 %v2416
        %v2962 = vunpack.c.h.b16 %v2416
        %v2963 = vunpack.c.l.b16 %v2417
        %v2964 = vunpack.c.h.b16 %v2417
        %v2965 = vunpack.c.l.b16 %v2418
        %v2966 = vunpack.c.h.b16 %v2418
        %v2967 = vunpack.c.l.b16 %v2419
        %v2968 = vunpack.c.h.b16 %v2419
        %v2969 = vunpack.c.l.b16 %v2420
        %v2970 = vunpack.c.h.b16 %v2420
        %v2971 = vunpack.c.l.b16 %v2421
        %v2972 = vunpack.c.h.b16 %v2421
        %v2973 = vunpack.c.l.b16 %v2422
        %v2974 = vunpack.c.h.b16 %v2422
        %v2975 = vunpack.c.l.b16 %v2423
        %v2976 = vunpack.c.h.b16 %v2423
        %v2977 = vunpack.c.l.b16 %v2424
        %v2978 = vunpack.c.h.b16 %v2424
        %v2979 = vunpack.c.l.b16 %v2425
        %v2980 = vunpack.c.h.b16 %v2425
        %v2981 = vunpack.c.l.b16 %v2426
        %v2982 = vunpack.c.h.b16 %v2426
        %v2983 = vunpack.c.l.b16 %v2427
        %v2984 = vunpack.c.h.b16 %v2427
        %v2985 = vunpack.c.l.b16 %v2428
        %v2986 = vunpack.c.h.b16 %v2428
        %v2987 = vunpack.c.l.b16 %v2429
        %v2988 = vunpack.c.h.b16 %v2429
        %v2989 = vunpack.c.l.b16 %v2430
        %v2990 = vunpack.c.h.b16 %v2430
        %v2991 = vunpack.c.l.b16 %v2431
        %v2992 = vunpack.c.h.b16 %v2431
        %v2993 = vunpack.c.l.b16 %v2432
        %v2994 = vunpack.c.h.b16 %v2432
        %v2995 = vunpack.c.l.b16 %v2433
        %v2996 = vunpack.c.h.b16 %v2433
        %v2997 = vunpack.c.l.b16 %v2434
        %v2998 = vunpack.c.h.b16 %v2434
        %v2999 = vunpack.c.l.b16 %v2435
        %v3000 = vunpack.c.h.b16 %v2435
        %v3001 = vunpack.c.l.b16 %v2436
        %v3002 = vunpack.c.h.b16 %v2436
        %v3003 = vunpack.c.l.b16 %v2437
        %v3004 = vunpack.c.h.b16 %v2437
        %v3005 = vunpack.c.l.b16 %v2438
        %v3006 = vunpack.c.h.b16 %v2438
        %v3007 = vunpack.c.l.b16 %v2439
        %v3008 = vunpack.c.h.b16 %v2439
        %v3009 = vunpack.c.l.b16 %v2440
        %v3010 = vunpack.c.h.b16 %v2440
        %v3011 = vunpack.c.l.b16 %v2441
        %v3012 = vunpack.c.h.b16 %v2441
        %v3013 = vunpack.c.l.b16 %v2442
        %v3014 = vunpack.c.h.b16 %v2442
        %v3015 = vunpack.c.l.b16 %v2443
        %v3016 = vunpack.c.h.b16 %v2443
        %v3017 = vunpack.c.l.b16 %v2444
        %v3018 = vunpack.c.h.b16 %v2444
        %v3019 = vunpack.c.l.b16 %v2445
        %v3020 = vunpack.c.h.b16 %v2445
        %v3021 = vunpack.c.l.b16 %v2446
        %v3022 = vunpack.c.h.b16 %v2446
        %v3023 = vunpack.c.l.b16 %v2447
        %v3024 = vunpack.c.h.b16 %v2447
        %v3025 = vunpack.c.l.b16 %v2448
        %v3026 = vunpack.c.h.b16 %v2448
        %v3027 = vunpack.c.l.b16 %v2449
        %v3028 = vunpack.c.h.b16 %v2449
        %v3029 = vunpack.c.l.b16 %v2450
        %v3030 = vunpack.c.h.b16 %v2450
        %v3031 = vunpack.c.l.b16 %v2451
        %v3032 = vunpack.c.h.b16 %v2451
        %v3033 = vunpack.c.l.b16 %v2452
        %v3034 = vunpack.c.h.b16 %v2452
        %v3035 = vunpack.c.l.b16 %v2453
        %v3036 = vunpack.c.h.b16 %v2453
        %v3037 = vunpack.c.l.b16 %v2454
        %v3038 = vunpack.c.h.b16 %v2454
        %v3039 = vunpack.c.l.b16 %v2455
        %v3040 = vunpack.c.h.b16 %v2455
        %v3041 = vunpack.c.l.b16 %v2456
        %v3042 = vunpack.c.h.b16 %v2456
        %v3043 = vunpack.c.l.b16 %v2457
        %v3044 = vunpack.c.h.b16 %v2457
        %v3045 = vunpack.c.l.b16 %v2458
        %v3046 = vunpack.c.h.b16 %v2458
        %v3047 = vunpack.c.l.b16 %v2459
        %v3048 = vunpack.c.h.b16 %v2459
        %v3049 = vunpack.c.l.b16 %v2460
        %v3050 = vunpack.c.h.b16 %v2460
        %v3051 = vunpack.c.l.b16 %v2461
        %v3052 = vunpack.c.h.b16 %v2461
        %v3053 = vunpack.c.l.b16 %v2462
        %v3054 = vunpack.c.h.b16 %v2462
        %v3055 = vunpack.c.l.b16 %v2463
        %v3056 = vunpack.c.h.b16 %v2463
        %v3057 = vunpack.c.l.b16 %v2464
        %v3058 = vunpack.c.h.b16 %v2464
        %v3059 = vunpack.c.l.b16 %v2465
        %v3060 = vunpack.c.h.b16 %v2465
        %v3061 = vunpack.c.l.b16 %v2466
        %v3062 = vunpack.c.h.b16 %v2466
        %v3063 = vunpack.c.l.b16 %v2467
        %v3064 = vunpack.c.h.b16 %v2467
        %v3065 = vunpack.c.l.b16 %v2468
        %v3066 = vunpack.c.h.b16 %v2468
        %v3067 = vunpack.c.l.b16 %v2469
        %v3068 = vunpack.c.h.b16 %v2469
        %v3069 = vunpack.c.l.b16 %v2470
        %v3070 = vunpack.c.h.b16 %v2470
        %v3071 = vunpack.c.l.b16 %v2471
        %v3072 = vunpack.c.h.b16 %v2471
        %v3073 = vunpack.c.l.b16 %v2472
        %v3074 = vunpack.c.h.b16 %v2472
        %v3075 = vunpack.c.l.b16 %v2473
        %v3076 = vunpack.c.h.b16 %v2473
        %v3077 = vunpack.c.l.b16 %v2474
        %v3078 = vunpack.c.h.b16 %v2474
        %v3079 = vunpack.c.l.b16 %v2475
        %v3080 = vunpack.c.h.b16 %v2475
        %v3081 = vunpack.c.l.b16 %v2476
        %v3082 = vunpack.c.h.b16 %v2476
        %v3083 = vunpack.c.l.b16 %v2477
        %v3084 = vunpack.c.h.b16 %v2477
        %v3085 = vunpack.c.l.b16 %v2478
        %v3086 = vunpack.c.h.b16 %v2478
        %v3087 = vunpack.c.l.b16 %v2479
        %v3088 = vunpack.c.h.b16 %v2479
        %v3089 = vunpack.c.l.b16 %v2480
        %v3090 = vunpack.c.h.b16 %v2480
        %v3091 = vunpack.c.l.b16 %v2481
        %v3092 = vunpack.c.h.b16 %v2481
        %v3093 = vunpack.c.l.b16 %v2482
        %v3094 = vunpack.c.h.b16 %v2482
        %v3095 = vunpack.c.l.b16 %v2483
        %v3096 = vunpack.c.h.b16 %v2483
        %v3097 = vunpack.c.l.b16 %v2484
        %v3098 = vunpack.c.h.b16 %v2484
        %v3099 = vunpack.c.l.b16 %v2485
        %v3100 = vunpack.c.h.b16 %v2485
        %v3101 = vunpack.c.l.b16 %v2486
        %v3102 = vunpack.c.h.b16 %v2486
        %v3103 = vunpack.c.l.b16 %v2487
        %v3104 = vunpack.c.h.b16 %v2487
        %v3105 = vunpack.c.l.b16 %v2488
        %v3106 = vunpack.c.h.b16 %v2488
        %v3107 = vunpack.c.l.b16 %v2489
        %v3108 = vunpack.c.h.b16 %v2489
        %v3109 = vunpack.c.l.b16 %v2490
        %v3110 = vunpack.c.h.b16 %v2490
        %v3111 = vunpack.c.l.b16 %v2491
        %v3112 = vunpack.c.h.b16 %v2491
        %v3113 = vunpack.c.l.b16 %v2492
        %v3114 = vunpack.c.h.b16 %v2492
        %v3115 = vunpack.c.l.b16 %v2493
        %v3116 = vunpack.c.h.b16 %v2493
        %v3117 = vunpack.c.l.b16 %v2494
        %v3118 = vunpack.c.h.b16 %v2494
        %v3119 = vunpack.c.l.b16 %v2495
        %v3120 = vunpack.c.h.b16 %v2495
        %v3121 = vunpack.c.l.b16 %v2496
        %v3122 = vunpack.c.h.b16 %v2496
        %v3123 = vunpack.c.l.b16 %v2497
        %v3124 = vunpack.c.h.b16 %v2497
        %v3125 = vunpack.c.l.b16 %v2498
        %v3126 = vunpack.c.h.b16 %v2498
        %v3127 = vunpack.c.l.b16 %v2499
        %v3128 = vunpack.c.h.b16 %v2499
        %v3129 = vunpack.c.l.b16 %v2500
        %v3130 = vunpack.c.h.b16 %v2500
        %v3131 = vunpack.c.l.b16 %v2501
        %v3132 = vunpack.c.h.b16 %v2501
        %v3133 = vunpack.c.l.b16 %v2502
        %v3134 = vunpack.c.h.b16 %v2502
        %v3135 = vunpack.c.l.b16 %v2503
        %v3136 = vunpack.c.h.b16 %v2503
        %v3137 = vunpack.c.l.b16 %v2504
        %v3138 = vunpack.c.h.b16 %v2504
        %v3139 = vunpack.c.l.b16 %v2505
        %v3140 = vunpack.c.h.b16 %v2505
        %v3141 = vunpack.c.l.b16 %v2506
        %v3142 = vunpack.c.h.b16 %v2506
        %v3143 = vunpack.c.l.b16 %v2507
        %v3144 = vunpack.c.h.b16 %v2507
        %v3145 = vunpack.c.l.b16 %v2508
        %v3146 = vunpack.c.h.b16 %v2508
        %v3147 = vunpack.c.l.b16 %v2509
        %v3148 = vunpack.c.h.b16 %v2509
        %v3149 = vunpack.c.l.b16 %v2510
        %v3150 = vunpack.c.h.b16 %v2510
        %v3151 = vunpack.c.l.b16 %v2511
        %v3152 = vunpack.c.h.b16 %v2511
        %v3153 = vunpack.c.l.b16 %v2512
        %v3154 = vunpack.c.h.b16 %v2512
        %v3155 = vunpack.c.l.b16 %v2513
        %v3156 = vunpack.c.h.b16 %v2513
        %v3157 = vunpack.c.l.b16 %v2514
        %v3158 = vunpack.c.h.b16 %v2514
        %v3159 = vunpack.c.l.b16 %v2515
        %v3160 = vunpack.c.h.b16 %v2515
        %v3161 = vunpack.c.l.b16 %v2516
        %v3162 = vunpack.c.h.b16 %v2516
        %v3163 = vunpack.c.l.b16 %v2517
        %v3164 = vunpack.c.h.b16 %v2517
        %v3165 = vunpack.c.l.b16 %v2518
        %v3166 = vunpack.c.h.b16 %v2518
        %v3167 = vunpack.c.l.b16 %v2519
        %v3168 = vunpack.c.h.b16 %v2519
        %v3169 = vunpack.c.l.b16 %v2520
        %v3170 = vunpack.c.h.b16 %v2520
        %v3171 = vunpack.c.l.b16 %v2521
        %v3172 = vunpack.c.h.b16 %v2521
        %v3173 = vunpack.c.l.b16 %v2522
        %v3174 = vunpack.c.h.b16 %v2522
        %v3175 = vunpack.c.l.b16 %v2523
        %v3176 = vunpack.c.h.b16 %v2523
        %v3177 = vunpack.c.l.b16 %v2524
        %v3178 = vunpack.c.h.b16 %v2524
        %v3179 = vunpack.c.l.b16 %v2525
        %v3180 = vunpack.c.h.b16 %v2525
        %v3181 = vunpack.c.l.b16 %v2526
        %v3182 = vunpack.c.h.b16 %v2526
        %v3183 = vunpack.c.l.b16 %v2527
        %v3184 = vunpack.c.h.b16 %v2527
        %v3185 = vunpack.c.l.b16 %v2528
        %v3186 = vunpack.c.h.b16 %v2528
        %v3187 = vunpack.c.l.b16 %v2529
        %v3188 = vunpack.c.h.b16 %v2529
        %v3189 = vunpack.c.l.b16 %v2530
        %v3190 = vunpack.c.h.b16 %v2530
        %v3191 = vunpack.c.l.b16 %v2531
        %v3192 = vunpack.c.h.b16 %v2531
        %v3193 = vunpack.c.l.b16 %v2532
        %v3194 = vunpack.c.h.b16 %v2532
        %v3195 = vunpack.c.l.b16 %v2533
        %v3196 = vunpack.c.h.b16 %v2533
        %v3197 = vunpack.c.l.b16 %v2534
        %v3198 = vunpack.c.h.b16 %v2534
        %v3199 = vunpack.c.l.b16 %v2535
        %v3200 = vunpack.c.h.b16 %v2535
        %v3201 = vunpack.c.l.b16 %v2536
        %v3202 = vunpack.c.h.b16 %v2536
        %v3203 = vunpack.c.l.b16 %v2537
        %v3204 = vunpack.c.h.b16 %v2537
        %v3205 = vunpack.c.l.b16 %v2538
        %v3206 = vunpack.c.h.b16 %v2538
        %v3207 = vunpack.c.l.b16 %v2539
        %v3208 = vunpack.c.h.b16 %v2539
        %v3209 = vunpack.c.l.b16 %v2540
        %v3210 = vunpack.c.h.b16 %v2540
        %v3211 = vunpack.c.l.b16 %v2541
        %v3212 = vunpack.c.h.b16 %v2541
        %v3213 = vunpack.c.l.b16 %v2542
        %v3214 = vunpack.c.h.b16 %v2542
        %v3215 = vunpack.c.l.b16 %v2543
        %v3216 = vunpack.c.h.b16 %v2543
        %v3217 = vunpack.c.l.b16 %v2544
        %v3218 = vunpack.c.h.b16 %v2544
        %v3219 = vunpack.c.l.b16 %v2545
        %v3220 = vunpack.c.h.b16 %v2545
        %v3221 = vunpack.c.l.b16 %v2546
        %v3222 = vunpack.c.h.b16 %v2546
        %v3223 = vunpack.c.l.b16 %v2547
        %v3224 = vunpack.c.h.b16 %v2547
        %v3225 = vunpack.c.l.b16 %v2548
        %v3226 = vunpack.c.h.b16 %v2548
        %v3227 = vunpack.c.l.b16 %v2549
        %v3228 = vunpack.c.h.b16 %v2549
        %v3229 = vunpack.c.l.b16 %v2550
        %v3230 = vunpack.c.h.b16 %v2550
        %v3231 = vunpack.c.l.b16 %v2551
        %v3232 = vunpack.c.h.b16 %v2551
        %v3233 = vunpack.c.l.b16 %v2552
        %v3234 = vunpack.c.h.b16 %v2552
        %v3235 = vunpack.c.l.b16 %v2553
        %v3236 = vunpack.c.h.b16 %v2553
        %v3237 = vunpack.c.l.b16 %v2554
        %v3238 = vunpack.c.h.b16 %v2554
        %v3239 = vunpack.c.l.b16 %v2555
        %v3240 = vunpack.c.h.b16 %v2555
        %v3241 = vunpack.c.l.b16 %v2556
        %v3242 = vunpack.c.h.b16 %v2556
        %v3243 = vunpack.c.l.b16 %v2557
        %v3244 = vunpack.c.h.b16 %v2557
        %v3245 = vunpack.c.l.b16 %v2558
        %v3246 = vunpack.c.h.b16 %v2558
        %v3247 = vunpack.c.l.b16 %v2559
        %v3248 = vunpack.c.h.b16 %v2559
        %v3249 = vunpack.c.l.b16 %v2560
        %v3250 = vunpack.c.h.b16 %v2560
        %v3251 = vunpack.c.l.b16 %v2561
        %v3252 = vunpack.c.h.b16 %v2561
        %v3253 = vunpack.c.l.b16 %v2562
        %v3254 = vunpack.c.h.b16 %v2562
        %v3255 = vunpack.c.l.b16 %v2563
        %v3256 = vunpack.c.h.b16 %v2563
        %v3257 = vunpack.c.l.b16 %v2564
        %v3258 = vunpack.c.h.b16 %v2564
        %v3259 = vunpack.c.l.b16 %v2565
        %v3260 = vunpack.c.h.b16 %v2565
        %v3261 = vunpack.c.l.b16 %v2566
        %v3262 = vunpack.c.h.b16 %v2566
        %v3263 = vunpack.c.l.b16 %v2567
        %v3264 = vunpack.c.h.b16 %v2567
        %v3265 = vunpack.c.l.b16 %v2568
        %v3266 = vunpack.c.h.b16 %v2568
        %v3267 = vunpack.c.l.b16 %v2569
        %v3268 = vunpack.c.h.b16 %v2569
        %v3269 = vunpack.c.l.b16 %v2570
        %v3270 = vunpack.c.h.b16 %v2570
        %v3271 = vunpack.c.l.b16 %v2571
        %v3272 = vunpack.c.h.b16 %v2571
        %v3273 = vunpack.c.l.b16 %v2572
        %v3274 = vunpack.c.h.b16 %v2572
        %v3275 = vunpack.c.l.b16 %v2573
        %v3276 = vunpack.c.h.b16 %v2573
        %v3277 = vunpack.c.l.b16 %v2574
        %v3278 = vunpack.c.h.b16 %v2574
        %v3279 = vunpack.c.l.b16 %v2575
        %v3280 = vunpack.c.h.b16 %v2575
        %v3281 = vunpack.c.l.b16 %v2576
        %v3282 = vunpack.c.h.b16 %v2576
        %v3283 = vunpack.c.l.b16 %v2577
        %v3284 = vunpack.c.h.b16 %v2577
        %v3285 = vunpack.c.l.b16 %v2578
        %v3286 = vunpack.c.h.b16 %v2578
        %v3287 = vunpack.c.l.b16 %v2579
        %v3288 = vunpack.c.h.b16 %v2579
        %v3289 = vunpack.c.l.b16 %v2580
        %v3290 = vunpack.c.h.b16 %v2580
        %v3291 = vunpack.c.l.b16 %v2581
        %v3292 = vunpack.c.h.b16 %v2581
        %v3293 = vunpack.c.l.b16 %v2582
        %v3294 = vunpack.c.h.b16 %v2582
        %v3295 = vunpack.c.l.b16 %v2583
        %v3296 = vunpack.c.h.b16 %v2583
        %v3297 = vunpack.c.l.b16 %v2584
        %v3298 = vunpack.c.h.b16 %v2584
        %v3299 = vunpack.c.l.b16 %v2585
        %v3300 = vunpack.c.h.b16 %v2585
        %v3301 = vunpack.c.l.b16 %v2586
        %v3302 = vunpack.c.h.b16 %v2586
        %v3303 = vunpack.c.l.b16 %v2587
        %v3304 = vunpack.c.h.b16 %v2587
        %v3305 = vunpack.c.l.b16 %v2588
        %v3306 = vunpack.c.h.b16 %v2588
        %v3307 = vunpack.c.l.b16 %v2589
        %v3308 = vunpack.c.h.b16 %v2589
        %v3309 = vunpack.c.l.b16 %v2590
        %v3310 = vunpack.c.h.b16 %v2590
        %v3311 = vunpack.c.l.b16 %v2591
        %v3312 = vunpack.c.h.b16 %v2591
        %v3313 = vunpack.c.l.b16 %v2592
        %v3314 = vunpack.c.h.b16 %v2592
        %v3315 = vunpack.c.l.b16 %v2593
        %v3316 = vunpack.c.h.b16 %v2593
        %v3317 = vunpack.c.l.b16 %v2594
        %v3318 = vunpack.c.h.b16 %v2594
        %v3319 = vunpack.c.l.b16 %v2595
        %v3320 = vunpack.c.h.b16 %v2595
        %v3321 = vunpack.c.l.b16 %v2596
        %v3322 = vunpack.c.h.b16 %v2596
        %v3323 = vunpack.c.l.b16 %v2597
        %v3324 = vunpack.c.h.b16 %v2597
        %v3325 = vunpack.c.l.b16 %v2598
        %v3326 = vunpack.c.h.b16 %v2598
        %v3327 = vunpack.c.l.b16 %v2599
        %v3328 = vunpack.c.h.b16 %v2599
        %v3329 = vunpack.c.l.b16 %v2600
        %v3330 = vunpack.c.h.b16 %v2600
        %v3331 = vunpack.c.l.b16 %v2601
        %v3332 = vunpack.c.h.b16 %v2601
        %v3333 = vunpack.c.l.b16 %v2602
        %v3334 = vunpack.c.h.b16 %v2602
        %v3335 = vunpack.c.l.b16 %v2603
        %v3336 = vunpack.c.h.b16 %v2603
        %v3337 = vunpack.c.l.b16 %v2604
        %v3338 = vunpack.c.h.b16 %v2604
        %v3339 = vunpack.c.l.b16 %v2605
        %v3340 = vunpack.c.h.b16 %v2605
        %v3341 = vunpack.c.l.b16 %v2606
        %v3342 = vunpack.c.h.b16 %v2606
        %v3343 = vunpack.c.l.b16 %v2607
        %v3344 = vunpack.c.h.b16 %v2607
        %v3345 = vunpack.c.l.b16 %v2608
        %v3346 = vunpack.c.h.b16 %v2608
        %v3347 = vunpack.c.l.b16 %v2609
        %v3348 = vunpack.c.h.b16 %v2609
        %v3349 = vunpack.c.l.b16 %v2610
        %v3350 = vunpack.c.h.b16 %v2610
        %v3351 = vunpack.c.l.b16 %v2611
        %v3352 = vunpack.c.h.b16 %v2611
        %v3353 = vunpack.c.l.b16 %v2612
        %v3354 = vunpack.c.h.b16 %v2612
        %v3355 = vunpack.c.l.b16 %v2613
        %v3356 = vunpack.c.h.b16 %v2613
        %v3357 = vunpack.c.l.b16 %v2614
        %v3358 = vunpack.c.h.b16 %v2614
        %v3359 = vunpack.c.l.b16 %v2615
        %v3360 = vunpack.c.h.b16 %v2615
        %v3361 = vunpack.c.l.b16 %v2616
        %v3362 = vunpack.c.h.b16 %v2616
        %v3363 = vunpack.c.l.b16 %v2617
        %v3364 = vunpack.c.h.b16 %v2617
        %v3365 = vunpack.c.l.b16 %v2618
        %v3366 = vunpack.c.h.b16 %v2618
        %v3367 = vunpack.c.l.b16 %v2619
        %v3368 = vunpack.c.h.b16 %v2619
        %v3369 = vunpack.c.l.b16 %v2620
        %v3370 = vunpack.c.h.b16 %v2620
        %v3371 = vunpack.c.l.b16 %v2621
        %v3372 = vunpack.c.h.b16 %v2621
        %v3373 = vunpack.c.l.b16 %v2622
        %v3374 = vunpack.c.h.b16 %v2622
        %v3375 = vunpack.c.l.b16 %v2623
        %v3376 = vunpack.c.h.b16 %v2623
        %v3377 = vunpack.c.l.b16 %v2624
        %v3378 = vunpack.c.h.b16 %v2624
        %v3379 = vunpack.c.l.b16 %v2625
        %v3380 = vunpack.c.h.b16 %v2625
        %v3381 = vunpack.c.l.b16 %v2626
        %v3382 = vunpack.c.h.b16 %v2626
        %v3383 = vunpack.c.l.b16 %v2627
        %v3384 = vunpack.c.h.b16 %v2627
        %v3385 = vunpack.c.l.b16 %v2628
        %v3386 = vunpack.c.h.b16 %v2628
        %v3387 = vunpack.c.l.b16 %v2629
        %v3388 = vunpack.c.h.b16 %v2629
        %v3389 = vunpack.c.l.b16 %v2630
        %v3390 = vunpack.c.h.b16 %v2630
        %v3391 = vunpack.c.l.b16 %v2631
        %v3392 = vunpack.c.h.b16 %v2631
        %v3393 = vunpack.c.l.b16 %v2632
        %v3394 = vunpack.c.h.b16 %v2632
        %v3395 = vunpack.c.l.b16 %v2633
        %v3396 = vunpack.c.h.b16 %v2633
        %v3397 = vunpack.c.l.b16 %v2634
        %v3398 = vunpack.c.h.b16 %v2634
        %v3399 = vunpack.c.l.b16 %v2635
        %v3400 = vunpack.c.h.b16 %v2635
        %v3401 = vunpack.c.l.b16 %v2636
        %v3402 = vunpack.c.h.b16 %v2636
        %v3403 = vunpack.c.l.b16 %v2637
        %v3404 = vunpack.c.h.b16 %v2637
        %v3405 = vunpack.c.l.b16 %v2638
        %v3406 = vunpack.c.h.b16 %v2638
        %v3407 = vpack.c.b16 %v2899, %v2895
        %v3408 = vpack.c.b16 %v2900, %v2896
        %v3409 = vpack.c.b16 %v2901, %v2897
        %v3410 = vpack.c.b16 %v2902, %v2898
        %v3411 = vpack.c.b16 %v2907, %v2903
        %v3412 = vpack.c.b16 %v2908, %v2904
        %v3413 = vpack.c.b16 %v2909, %v2905
        %v3414 = vpack.c.b16 %v2910, %v2906
        %v3415 = vpack.c.b16 %v2915, %v2911
        %v3416 = vpack.c.b16 %v2916, %v2912
        %v3417 = vpack.c.b16 %v2917, %v2913
        %v3418 = vpack.c.b16 %v2918, %v2914
        %v3419 = vpack.c.b16 %v2923, %v2919
        %v3420 = vpack.c.b16 %v2924, %v2920
        %v3421 = vpack.c.b16 %v2925, %v2921
        %v3422 = vpack.c.b16 %v2926, %v2922
        %v3423 = vpack.c.b16 %v2931, %v2927
        %v3424 = vpack.c.b16 %v2932, %v2928
        %v3425 = vpack.c.b16 %v2933, %v2929
        %v3426 = vpack.c.b16 %v2934, %v2930
        %v3427 = vpack.c.b16 %v2939, %v2935
        %v3428 = vpack.c.b16 %v2940, %v2936
        %v3429 = vpack.c.b16 %v2941, %v2937
        %v3430 = vpack.c.b16 %v2942, %v2938
        %v3431 = vpack.c.b16 %v2947, %v2943
        %v3432 = vpack.c.b16 %v2948, %v2944
        %v3433 = vpack.c.b16 %v2949, %v2945
        %v3434 = vpack.c.b16 %v2950, %v2946
        %v3435 = vpack.c.b16 %v2955, %v2951
        %v3436 = vpack.c.b16 %v2956, %v2952
        %v3437 = vpack.c.b16 %v2957, %v2953
        %v3438 = vpack.c.b16 %v2958, %v2954
        %v3439 = vpack.c.b16 %v2963, %v2959
        %v3440 = vpack.c.b16 %v2964, %v2960
        %v3441 = vpack.c.b16 %v2965, %v2961
        %v3442 = vpack.c.b16 %v2966, %v2962
        %v3443 = vpack.c.b16 %v2971, %v2967
        %v3444 = vpack.c.b16 %v2972, %v2968
        %v3445 = vpack.c.b16 %v2973, %v2969
        %v3446 = vpack.c.b16 %v2974, %v2970
        %v3447 = vpack.c.b16 %v2979, %v2975
        %v3448 = vpack.c.b16 %v2980, %v2976
        %v3449 = vpack.c.b16 %v2981, %v2977
        %v3450 = vpack.c.b16 %v2982, %v2978
        %v3451 = vpack.c.b16 %v2987, %v2983
        %v3452 = vpack.c.b16 %v2988, %v2984
        %v3453 = vpack.c.b16 %v2989, %v2985
        %v3454 = vpack.c.b16 %v2990, %v2986
        %v3455 = vpack.c.b16 %v2995, %v2991
        %v3456 = vpack.c.b16 %v2996, %v2992
        %v3457 = vpack.c.b16 %v2997, %v2993
        %v3458 = vpack.c.b16 %v2998, %v2994
        %v3459 = vpack.c.b16 %v3003, %v2999
        %v3460 = vpack.c.b16 %v3004, %v3000
        %v3461 = vpack.c.b16 %v3005, %v3001
        %v3462 = vpack.c.b16 %v3006, %v3002
        %v3463 = vpack.c.b16 %v3011, %v3007
        %v3464 = vpack.c.b16 %v3012, %v3008
        %v3465 = vpack.c.b16 %v3013, %v3009
        %v3466 = vpack.c.b16 %v3014, %v3010
        %v3467 = vpack.c.b16 %v3019, %v3015
        %v3468 = vpack.c.b16 %v3020, %v3016
        %v3469 = vpack.c.b16 %v3021, %v3017
        %v3470 = vpack.c.b16 %v3022, %v3018
        %v3471 = vpack.c.b16 %v3027, %v3023
        %v3472 = vpack.c.b16 %v3028, %v3024
        %v3473 = vpack.c.b16 %v3029, %v3025
        %v3474 = vpack.c.b16 %v3030, %v3026
        %v3475 = vpack.c.b16 %v3035, %v3031
        %v3476 = vpack.c.b16 %v3036, %v3032
        %v3477 = vpack.c.b16 %v3037, %v3033
        %v3478 = vpack.c.b16 %v3038, %v3034
        %v3479 = vpack.c.b16 %v3043, %v3039
        %v3480 = vpack.c.b16 %v3044, %v3040
        %v3481 = vpack.c.b16 %v3045, %v3041
        %v3482 = vpack.c.b16 %v3046, %v3042
        %v3483 = vpack.c.b16 %v3051, %v3047
        %v3484 = vpack.c.b16 %v3052, %v3048
        %v3485 = vpack.c.b16 %v3053, %v3049
        %v3486 = vpack.c.b16 %v3054, %v3050
        %v3487 = vpack.c.b16 %v3059, %v3055
        %v3488 = vpack.c.b16 %v3060, %v3056
        %v3489 = vpack.c.b16 %v3061, %v3057
        %v3490 = vpack.c.b16 %v3062, %v3058
        %v3491 = vpack.c.b16 %v3067, %v3063
        %v3492 = vpack.c.b16 %v3068, %v3064
        %v3493 = vpack.c.b16 %v3069, %v3065
        %v3494 = vpack.c.b16 %v3070, %v3066
        %v3495 = vpack.c.b16 %v3075, %v3071
        %v3496 = vpack.c.b16 %v3076, %v3072
        %v3497 = vpack.c.b16 %v3077, %v3073
        %v3498 = vpack.c.b16 %v3078, %v3074
        %v3499 = vpack.c.b16 %v3083, %v3079
        %v3500 = vpack.c.b16 %v3084, %v3080
        %v3501 = vpack.c.b16 %v3085, %v3081
        %v3502 = vpack.c.b16 %v3086, %v3082
        %v3503 = vpack.c.b16 %v3091, %v3087
        %v3504 = vpack.c.b16 %v3092, %v3088
        %v3505 = vpack.c.b16 %v3093, %v3089
        %v3506 = vpack.c.b16 %v3094, %v3090
        %v3507 = vpack.c.b16 %v3099, %v3095
        %v3508 = vpack.c.b16 %v3100, %v3096
        %v3509 = vpack.c.b16 %v3101, %v3097
        %v3510 = vpack.c.b16 %v3102, %v3098
        %v3511 = vpack.c.b16 %v3107, %v3103
        %v3512 = vpack.c.b16 %v3108, %v3104
        %v3513 = vpack.c.b16 %v3109, %v3105
        %v3514 = vpack.c.b16 %v3110, %v3106
        %v3515 = vpack.c.b16 %v3115, %v3111
        %v3516 = vpack.c.b16 %v3116, %v3112
        %v3517 = vpack.c.b16 %v3117, %v3113
        %v3518 = vpack.c.b16 %v3118, %v3114
        %v3519 = vpack.c.b16 %v3123, %v3119
        %v3520 = vpack.c.b16 %v3124, %v3120
        %v3521 = vpack.c.b16 %v3125, %v3121
        %v3522 = vpack.c.b16 %v3126, %v3122
        %v3523 = vpack.c.b16 %v3131, %v3127
        %v3524 = vpack.c.b16 %v3132, %v3128
        %v3525 = vpack.c.b16 %v3133, %v3129
        %v3526 = vpack.c.b16 %v3134, %v3130
        %v3527 = vpack.c.b16 %v3139, %v3135
        %v3528 = vpack.c.b16 %v3140, %v3136
        %v3529 = vpack.c.b16 %v3141, %v3137
        %v3530 = vpack.c.b16 %v3142, %v3138
        %v3531 = vpack.c.b16 %v3147, %v3143
        %v3532 = vpack.c.b16 %v3148, %v3144
        %v3533 = vpack.c.b16 %v3149, %v3145
        %v3534 = vpack.c.b16 %v3150, %v3146
        %v3535 = vpack.c.b16 %v3155, %v3151
        %v3536 = vpack.c.b16 %v3156, %v3152
        %v3537 = vpack.c.b16 %v3157, %v3153
        %v3538 = vpack.c.b16 %v3158, %v3154
        %v3539 = vpack.c.b16 %v3163, %v3159
        %v3540 = vpack.c.b16 %v3164, %v3160
        %v3541 = vpack.c.b16 %v3165, %v3161
        %v3542 = vpack.c.b16 %v3166, %v3162
        %v3543 = vpack.c.b16 %v3171, %v3167
        %v3544 = vpack.c.b16 %v3172, %v3168
        %v3545 = vpack.c.b16 %v3173, %v3169
        %v3546 = vpack.c.b16 %v3174, %v3170
        %v3547 = vpack.c.b16 %v3179, %v3175
        %v3548 = vpack.c.b16 %v3180, %v3176
        %v3549 = vpack.c.b16 %v3181, %v3177
        %v3550 = vpack.c.b16 %v3182, %v3178
        %v3551 = vpack.c.b16 %v3187, %v3183
        %v3552 = vpack.c.b16 %v3188, %v3184
        %v3553 = vpack.c.b16 %v3189, %v3185
        %v3554 = vpack.c.b16 %v3190, %v3186
        %v3555 = vpack.c.b16 %v3195, %v3191
        %v3556 = vpack.c.b16 %v3196, %v3192
        %v3557 = vpack.c.b16 %v3197, %v3193
        %v3558 = vpack.c.b16 %v3198, %v3194
        %v3559 = vpack.c.b16 %v3203, %v3199
        %v3560 = vpack.c.b16 %v3204, %v3200
        %v3561 = vpack.c.b16 %v3205, %v3201
        %v3562 = vpack.c.b16 %v3206, %v3202
        %v3563 = vpack.c.b16 %v3211, %v3207
        %v3564 = vpack.c.b16 %v3212, %v3208
        %v3565 = vpack.c.b16 %v3213, %v3209
        %v3566 = vpack.c.b16 %v3214, %v3210
        %v3567 = vpack.c.b16 %v3219, %v3215
        %v3568 = vpack.c.b16 %v3220, %v3216
        %v3569 = vpack.c.b16 %v3221, %v3217
        %v3570 = vpack.c.b16 %v3222, %v3218
        %v3571 = vpack.c.b16 %v3227, %v3223
        %v3572 = vpack.c.b16 %v3228, %v3224
        %v3573 = vpack.c.b16 %v3229, %v3225
        %v3574 = vpack.c.b16 %v3230, %v3226
        %v3575 = vpack.c.b16 %v3235, %v3231
        %v3576 = vpack.c.b16 %v3236, %v3232
        %v3577 = vpack.c.b16 %v3237, %v3233
        %v3578 = vpack.c.b16 %v3238, %v3234
        %v3579 = vpack.c.b16 %v3243, %v3239
        %v3580 = vpack.c.b16 %v3244, %v3240
        %v3581 = vpack.c.b16 %v3245, %v3241
        %v3582 = vpack.c.b16 %v3246, %v3242
        %v3583 = vpack.c.b16 %v3251, %v3247
        %v3584 = vpack.c.b16 %v3252, %v3248
        %v3585 = vpack.c.b16 %v3253, %v3249
        %v3586 = vpack.c.b16 %v3254, %v3250
        %v3587 = vpack.c.b16 %v3259, %v3255
        %v3588 = vpack.c.b16 %v3260, %v3256
        %v3589 = vpack.c.b16 %v3261, %v3257
        %v3590 = vpack.c.b16 %v3262, %v3258
        %v3591 = vpack.c.b16 %v3267, %v3263
        %v3592 = vpack.c.b16 %v3268, %v3264
        %v3593 = vpack.c.b16 %v3269, %v3265
        %v3594 = vpack.c.b16 %v3270, %v3266
        %v3595 = vpack.c.b16 %v3275, %v3271
        %v3596 = vpack.c.b16 %v3276, %v3272
        %v3597 = vpack.c.b16 %v3277, %v3273
        %v3598 = vpack.c.b16 %v3278, %v3274
        %v3599 = vpack.c.b16 %v3283, %v3279
        %v3600 = vpack.c.b16 %v3284, %v3280
        %v3601 = vpack.c.b16 %v3285, %v3281
        %v3602 = vpack.c.b16 %v3286, %v3282
        %v3603 = vpack.c.b16 %v3291, %v3287
        %v3604 = vpack.c.b16 %v3292, %v3288
        %v3605 = vpack.c.b16 %v3293, %v3289
        %v3606 = vpack.c.b16 %v3294, %v3290
        %v3607 = vpack.c.b16 %v3299, %v3295
        %v3608 = vpack.c.b16 %v3300, %v3296
        %v3609 = vpack.c.b16 %v3301, %v3297
        %v3610 = vpack.c.b16 %v3302, %v3298
        %v3611 = vpack.c.b16 %v3307, %v3303
        %v3612 = vpack.c.b16 %v3308, %v3304
        %v3613 = vpack.c.b16 %v3309, %v3305
        %v3614 = vpack.c.b16 %v3310, %v3306
        %v3615 = vpack.c.b16 %v3315, %v3311
        %v3616 = vpack.c.b16 %v3316, %v3312
        %v3617 = vpack.c.b16 %v3317, %v3313
        %v3618 = vpack.c.b16 %v3318, %v3314
        %v3619 = vpack.c.b16 %v3323, %v3319
        %v3620 = vpack.c.b16 %v3324, %v3320
        %v3621 = vpack.c.b16 %v3325, %v3321
        %v3622 = vpack.c.b16 %v3326, %v3322
        %v3623 = vpack.c.b16 %v3331, %v3327
        %v3624 = vpack.c.b16 %v3332, %v3328
        %v3625 = vpack.c.b16 %v3333, %v3329
        %v3626 = vpack.c.b16 %v3334, %v3330
        %v3627 = vpack.c.b16 %v3339, %v3335
        %v3628 = vpack.c.b16 %v3340, %v3336
        %v3629 = vpack.c.b16 %v3341, %v3337
        %v3630 = vpack.c.b16 %v3342, %v3338
        %v3631 = vpack.c.b16 %v3347, %v3343
        %v3632 = vpack.c.b16 %v3348, %v3344
        %v3633 = vpack.c.b16 %v3349, %v3345
        %v3634 = vpack.c.b16 %v3350, %v3346
        %v3635 = vpack.c.b16 %v3355, %v3351
        %v3636 = vpack.c.b16 %v3356, %v3352
        %v3637 = vpack.c.b16 %v3357, %v3353
        %v3638 = vpack.c.b16 %v3358, %v3354
        %v3639 = vpack.c.b16 %v3363, %v3359
        %v3640 = vpack.c.b16 %v3364, %v3360
        %v3641 = vpack.c.b16 %v3365, %v3361
        %v3642 = vpack.c.b16 %v3366, %v3362
        %v3643 = vpack.c.b16 %v3371, %v3367
        %v3644 = vpack.c.b16 %v3372, %v3368
        %v3645 = vpack.c.b16 %v3373, %v3369
        %v3646 = vpack.c.b16 %v3374, %v3370
        %v3647 = vpack.c.b16 %v3379, %v3375
        %v3648 = vpack.c.b16 %v3380, %v3376
        %v3649 = vpack.c.b16 %v3381, %v3377
        %v3650 = vpack.c.b16 %v3382, %v3378
        %v3651 = vpack.c.b16 %v3387, %v3383
        %v3652 = vpack.c.b16 %v3388, %v3384
        %v3653 = vpack.c.b16 %v3389, %v3385
        %v3654 = vpack.c.b16 %v3390, %v3386
        %v3655 = vpack.c.b16 %v3395, %v3391
        %v3656 = vpack.c.b16 %v3396, %v3392
        %v3657 = vpack.c.b16 %v3397, %v3393
        %v3658 = vpack.c.b16 %v3398, %v3394
        %v3659 = vpack.c.b16 %v3403, %v3399
        %v3660 = vpack.c.b16 %v3404, %v3400
        %v3661 = vpack.c.b16 %v3405, %v3401
        %v3662 = vpack.c.b16 %v3406, %v3402
        %3919 = vmatpush.bf16.msra.mxu0 %v3435
        %3920 = vmatpush.bf16.msra.mxu0 %v3431
        %3921 = vmatpush.bf16.msra.mxu0 %v3427
        %3922 = vmatpush.bf16.msra.mxu0 %v3423
        %3923 = vmatpush.bf16.msra.mxu0 %v3419
        %3924 = vmatpush.bf16.msra.mxu0 %v3415
        %3925 = vmatpush.bf16.msra.mxu0 %v3411
        %3926 = vmatpush.bf16.msra.mxu0 %v3407
        %3927 = vmatmul.bf16.gmra.mxu0 %v2375
        %v3928 = vpop.f32.mrf.mxu0
        %v3929 = vadd.f32 0.0, %v3928
        %v3930 = vpop.f32.mrf.mxu0
        %3931 = vdwg.mxu0
        %3932 = vmatpush.bf16.msra.mxu0 %v3467
        %3933 = vmatpush.bf16.msra.mxu0 %v3463
        %3934 = vmatpush.bf16.msra.mxu0 %v3459
        %3935 = vmatpush.bf16.msra.mxu0 %v3455
        %3936 = vmatpush.bf16.msra.mxu0 %v3451
        %3937 = vmatpush.bf16.msra.mxu0 %v3447
        %3938 = vmatpush.bf16.msra.mxu0 %v3443
        %3939 = vmatpush.bf16.msra.mxu0 %v3439
        %3940 = vmatmul.bf16.gmra.mxu0 %v2376
        %v3941 = vpop.f32.mrf.mxu0
        %v3942 = vadd.f32 %v3929, %v3941
        %v3943 = vpop.f32.mrf.mxu0
        %3944 = vdwg.mxu0
        %3945 = vmatpush.bf16.msra.mxu0 %v3499
        %3946 = vmatpush.bf16.msra.mxu0 %v3495
        %3947 = vmatpush.bf16.msra.mxu0 %v3491
        %3948 = vmatpush.bf16.msra.mxu0 %v3487
        %3949 = vmatpush.bf16.msra.mxu0 %v3483
        %3950 = vmatpush.bf16.msra.mxu0 %v3479
        %3951 = vmatpush.bf16.msra.mxu0 %v3475
        %3952 = vmatpush.bf16.msra.mxu0 %v3471
        %3953 = vmatmul.bf16.gmra.mxu0 %v2377
        %v3954 = vpop.f32.mrf.mxu0
        %v3955 = vadd.f32 %v3942, %v3954
        %v3956 = vpop.f32.mrf.mxu0
        %3957 = vdwg.mxu0
        %3958 = vmatpush.bf16.msra.mxu0 %v3531
        %3959 = vmatpush.bf16.msra.mxu0 %v3527
        %3960 = vmatpush.bf16.msra.mxu0 %v3523
        %3961 = vmatpush.bf16.msra.mxu0 %v3519
        %3962 = vmatpush.bf16.msra.mxu0 %v3515
        %3963 = vmatpush.bf16.msra.mxu0 %v3511
        %3964 = vmatpush.bf16.msra.mxu0 %v3507
        %3965 = vmatpush.bf16.msra.mxu0 %v3503
        %3966 = vmatmul.bf16.gmra.mxu0 %v2378
        %v3967 = vpop.f32.mrf.mxu0
        %v3968 = vadd.f32 %v3955, %v3967
        %v3969 = vpop.f32.mrf.mxu0
        %3970 = vdwg.mxu0
        %3971 = vmatpush.bf16.msra.mxu0 %v3563
        %3972 = vmatpush.bf16.msra.mxu0 %v3559
        %3973 = vmatpush.bf16.msra.mxu0 %v3555
        %3974 = vmatpush.bf16.msra.mxu0 %v3551
        %3975 = vmatpush.bf16.msra.mxu0 %v3547
        %3976 = vmatpush.bf16.msra.mxu0 %v3543
        %3977 = vmatpush.bf16.msra.mxu0 %v3539
        %3978 = vmatpush.bf16.msra.mxu0 %v3535
        %3979 = vmatmul.bf16.gmra.mxu0 %v2379
        %v3980 = vpop.f32.mrf.mxu0
        %v3981 = vadd.f32 %v3968, %v3980
        %v3982 = vpop.f32.mrf.mxu0
        %3983 = vdwg.mxu0
        %3984 = vmatpush.bf16.msra.mxu0 %v3595
        %3985 = vmatpush.bf16.msra.mxu0 %v3591
        %3986 = vmatpush.bf16.msra.mxu0 %v3587
        %3987 = vmatpush.bf16.msra.mxu0 %v3583
        %3988 = vmatpush.bf16.msra.mxu0 %v3579
        %3989 = vmatpush.bf16.msra.mxu0 %v3575
        %3990 = vmatpush.bf16.msra.mxu0 %v3571
        %3991 = vmatpush.bf16.msra.mxu0 %v3567
        %3992 = vmatmul.bf16.gmra.mxu0 %v2380
        %v3993 = vpop.f32.mrf.mxu0
        %v3994 = vadd.f32 %v3981, %v3993
        %v3995 = vpop.f32.mrf.mxu0
        %3996 = vdwg.mxu0
        %3997 = vmatpush.bf16.msra.mxu0 %v3627
        %3998 = vmatpush.bf16.msra.mxu0 %v3623
        %3999 = vmatpush.bf16.msra.mxu0 %v3619
        %4000 = vmatpush.bf16.msra.mxu0 %v3615
        %4001 = vmatpush.bf16.msra.mxu0 %v3611
        %4002 = vmatpush.bf16.msra.mxu0 %v3607
        %4003 = vmatpush.bf16.msra.mxu0 %v3603
        %4004 = vmatpush.bf16.msra.mxu0 %v3599
        %4005 = vmatmul.bf16.gmra.mxu0 %v2381
        %v4006 = vpop.f32.mrf.mxu0
        %v4007 = vadd.f32 %v3994, %v4006
        %v4008 = vpop.f32.mrf.mxu0
        %4009 = vdwg.mxu0
        %4010 = vmatpush.bf16.msra.mxu0 %v3659
        %4011 = vmatpush.bf16.msra.mxu0 %v3655
        %4012 = vmatpush.bf16.msra.mxu0 %v3651
        %4013 = vmatpush.bf16.msra.mxu0 %v3647
        %4014 = vmatpush.bf16.msra.mxu0 %v3643
        %4015 = vmatpush.bf16.msra.mxu0 %v3639
        %4016 = vmatpush.bf16.msra.mxu0 %v3635
        %4017 = vmatpush.bf16.msra.mxu0 %v3631
        %4018 = vmatmul.bf16.gmra.mxu0 %v2382
        %v4019 = vpop.f32.mrf.mxu0
        %v4020 = vadd.f32 %v4007, %v4019
        %v4021 = vpop.f32.mrf.mxu0
        %4022 = vdwg.mxu0
        %4023 = vmatpush.bf16.msra.mxu0 %v3436
        %4024 = vmatpush.bf16.msra.mxu0 %v3432
        %4025 = vmatpush.bf16.msra.mxu0 %v3428
        %4026 = vmatpush.bf16.msra.mxu0 %v3424
        %4027 = vmatpush.bf16.msra.mxu0 %v3420
        %4028 = vmatpush.bf16.msra.mxu0 %v3416
        %4029 = vmatpush.bf16.msra.mxu0 %v3412
        %4030 = vmatpush.bf16.msra.mxu0 %v3408
        %4031 = vmatmul.bf16.gmra.mxu0 %v2375
        %v4032 = vpop.f32.mrf.mxu0
        %v4033 = vadd.f32 0.0, %v4032
        %v4034 = vpop.f32.mrf.mxu0
        %4035 = vdwg.mxu0
        %4036 = vmatpush.bf16.msra.mxu0 %v3468
        %4037 = vmatpush.bf16.msra.mxu0 %v3464
        %4038 = vmatpush.bf16.msra.mxu0 %v3460
        %4039 = vmatpush.bf16.msra.mxu0 %v3456
        %4040 = vmatpush.bf16.msra.mxu0 %v3452
        %4041 = vmatpush.bf16.msra.mxu0 %v3448
        %4042 = vmatpush.bf16.msra.mxu0 %v3444
        %4043 = vmatpush.bf16.msra.mxu0 %v3440
        %4044 = vmatmul.bf16.gmra.mxu0 %v2376
        %v4045 = vpop.f32.mrf.mxu0
        %v4046 = vadd.f32 %v4033, %v4045
        %v4047 = vpop.f32.mrf.mxu0
        %4048 = vdwg.mxu0
        %4049 = vmatpush.bf16.msra.mxu0 %v3500
        %4050 = vmatpush.bf16.msra.mxu0 %v3496
        %4051 = vmatpush.bf16.msra.mxu0 %v3492
        %4052 = vmatpush.bf16.msra.mxu0 %v3488
        %4053 = vmatpush.bf16.msra.mxu0 %v3484
        %4054 = vmatpush.bf16.msra.mxu0 %v3480
        %4055 = vmatpush.bf16.msra.mxu0 %v3476
        %4056 = vmatpush.bf16.msra.mxu0 %v3472
        %4057 = vmatmul.bf16.gmra.mxu0 %v2377
        %v4058 = vpop.f32.mrf.mxu0
        %v4059 = vadd.f32 %v4046, %v4058
        %v4060 = vpop.f32.mrf.mxu0
        %4061 = vdwg.mxu0
        %4062 = vmatpush.bf16.msra.mxu0 %v3532
        %4063 = vmatpush.bf16.msra.mxu0 %v3528
        %4064 = vmatpush.bf16.msra.mxu0 %v3524
        %4065 = vmatpush.bf16.msra.mxu0 %v3520
        %4066 = vmatpush.bf16.msra.mxu0 %v3516
        %4067 = vmatpush.bf16.msra.mxu0 %v3512
        %4068 = vmatpush.bf16.msra.mxu0 %v3508
        %4069 = vmatpush.bf16.msra.mxu0 %v3504
        %4070 = vmatmul.bf16.gmra.mxu0 %v2378
        %v4071 = vpop.f32.mrf.mxu0
        %v4072 = vadd.f32 %v4059, %v4071
        %v4073 = vpop.f32.mrf.mxu0
        %4074 = vdwg.mxu0
        %4075 = vmatpush.bf16.msra.mxu0 %v3564
        %4076 = vmatpush.bf16.msra.mxu0 %v3560
        %4077 = vmatpush.bf16.msra.mxu0 %v3556
        %4078 = vmatpush.bf16.msra.mxu0 %v3552
        %4079 = vmatpush.bf16.msra.mxu0 %v3548
        %4080 = vmatpush.bf16.msra.mxu0 %v3544
        %4081 = vmatpush.bf16.msra.mxu0 %v3540
        %4082 = vmatpush.bf16.msra.mxu0 %v3536
        %4083 = vmatmul.bf16.gmra.mxu0 %v2379
        %v4084 = vpop.f32.mrf.mxu0
        %v4085 = vadd.f32 %v4072, %v4084
        %v4086 = vpop.f32.mrf.mxu0
        %4087 = vdwg.mxu0
        %4088 = vmatpush.bf16.msra.mxu0 %v3596
        %4089 = vmatpush.bf16.msra.mxu0 %v3592
        %4090 = vmatpush.bf16.msra.mxu0 %v3588
        %4091 = vmatpush.bf16.msra.mxu0 %v3584
        %4092 = vmatpush.bf16.msra.mxu0 %v3580
        %4093 = vmatpush.bf16.msra.mxu0 %v3576
        %4094 = vmatpush.bf16.msra.mxu0 %v3572
        %4095 = vmatpush.bf16.msra.mxu0 %v3568
        %4096 = vmatmul.bf16.gmra.mxu0 %v2380
        %v4097 = vpop.f32.mrf.mxu0
        %v4098 = vadd.f32 %v4085, %v4097
        %v4099 = vpop.f32.mrf.mxu0
        %4100 = vdwg.mxu0
        %4101 = vmatpush.bf16.msra.mxu0 %v3628
        %4102 = vmatpush.bf16.msra.mxu0 %v3624
        %4103 = vmatpush.bf16.msra.mxu0 %v3620
        %4104 = vmatpush.bf16.msra.mxu0 %v3616
        %4105 = vmatpush.bf16.msra.mxu0 %v3612
        %4106 = vmatpush.bf16.msra.mxu0 %v3608
        %4107 = vmatpush.bf16.msra.mxu0 %v3604
        %4108 = vmatpush.bf16.msra.mxu0 %v3600
        %4109 = vmatmul.bf16.gmra.mxu0 %v2381
        %v4110 = vpop.f32.mrf.mxu0
        %v4111 = vadd.f32 %v4098, %v4110
        %v4112 = vpop.f32.mrf.mxu0
        %4113 = vdwg.mxu0
        %4114 = vmatpush.bf16.msra.mxu0 %v3660
        %4115 = vmatpush.bf16.msra.mxu0 %v3656
        %4116 = vmatpush.bf16.msra.mxu0 %v3652
        %4117 = vmatpush.bf16.msra.mxu0 %v3648
        %4118 = vmatpush.bf16.msra.mxu0 %v3644
        %4119 = vmatpush.bf16.msra.mxu0 %v3640
        %4120 = vmatpush.bf16.msra.mxu0 %v3636
        %4121 = vmatpush.bf16.msra.mxu0 %v3632
        %4122 = vmatmul.bf16.gmra.mxu0 %v2382
        %v4123 = vpop.f32.mrf.mxu0
        %v4124 = vadd.f32 %v4111, %v4123
        %v4125 = vpop.f32.mrf.mxu0
        %4126 = vdwg.mxu0
        %4127 = vmatpush.bf16.msra.mxu0 %v3437
        %4128 = vmatpush.bf16.msra.mxu0 %v3433
        %4129 = vmatpush.bf16.msra.mxu0 %v3429
        %4130 = vmatpush.bf16.msra.mxu0 %v3425
        %4131 = vmatpush.bf16.msra.mxu0 %v3421
        %4132 = vmatpush.bf16.msra.mxu0 %v3417
        %4133 = vmatpush.bf16.msra.mxu0 %v3413
        %4134 = vmatpush.bf16.msra.mxu0 %v3409
        %4135 = vmatmul.bf16.gmra.mxu0 %v2375
        %v4136 = vpop.f32.mrf.mxu0
        %v4137 = vadd.f32 0.0, %v4136
        %v4138 = vpop.f32.mrf.mxu0
        %4139 = vdwg.mxu0
        %4140 = vmatpush.bf16.msra.mxu0 %v3469
        %4141 = vmatpush.bf16.msra.mxu0 %v3465
        %4142 = vmatpush.bf16.msra.mxu0 %v3461
        %4143 = vmatpush.bf16.msra.mxu0 %v3457
        %4144 = vmatpush.bf16.msra.mxu0 %v3453
        %4145 = vmatpush.bf16.msra.mxu0 %v3449
        %4146 = vmatpush.bf16.msra.mxu0 %v3445
        %4147 = vmatpush.bf16.msra.mxu0 %v3441
        %4148 = vmatmul.bf16.gmra.mxu0 %v2376
        %v4149 = vpop.f32.mrf.mxu0
        %v4150 = vadd.f32 %v4137, %v4149
        %v4151 = vpop.f32.mrf.mxu0
        %4152 = vdwg.mxu0
        %4153 = vmatpush.bf16.msra.mxu0 %v3501
        %4154 = vmatpush.bf16.msra.mxu0 %v3497
        %4155 = vmatpush.bf16.msra.mxu0 %v3493
        %4156 = vmatpush.bf16.msra.mxu0 %v3489
        %4157 = vmatpush.bf16.msra.mxu0 %v3485
        %4158 = vmatpush.bf16.msra.mxu0 %v3481
        %4159 = vmatpush.bf16.msra.mxu0 %v3477
        %4160 = vmatpush.bf16.msra.mxu0 %v3473
        %4161 = vmatmul.bf16.gmra.mxu0 %v2377
        %v4162 = vpop.f32.mrf.mxu0
        %v4163 = vadd.f32 %v4150, %v4162
        %v4164 = vpop.f32.mrf.mxu0
        %4165 = vdwg.mxu0
        %4166 = vmatpush.bf16.msra.mxu0 %v3533
        %4167 = vmatpush.bf16.msra.mxu0 %v3529
        %4168 = vmatpush.bf16.msra.mxu0 %v3525
        %4169 = vmatpush.bf16.msra.mxu0 %v3521
        %4170 = vmatpush.bf16.msra.mxu0 %v3517
        %4171 = vmatpush.bf16.msra.mxu0 %v3513
        %4172 = vmatpush.bf16.msra.mxu0 %v3509
        %4173 = vmatpush.bf16.msra.mxu0 %v3505
        %4174 = vmatmul.bf16.gmra.mxu0 %v2378
        %v4175 = vpop.f32.mrf.mxu0
        %v4176 = vadd.f32 %v4163, %v4175
        %v4177 = vpop.f32.mrf.mxu0
        %4178 = vdwg.mxu0
        %4179 = vmatpush.bf16.msra.mxu0 %v3565
        %4180 = vmatpush.bf16.msra.mxu0 %v3561
        %4181 = vmatpush.bf16.msra.mxu0 %v3557
        %4182 = vmatpush.bf16.msra.mxu0 %v3553
        %4183 = vmatpush.bf16.msra.mxu0 %v3549
        %4184 = vmatpush.bf16.msra.mxu0 %v3545
        %4185 = vmatpush.bf16.msra.mxu0 %v3541
        %4186 = vmatpush.bf16.msra.mxu0 %v3537
        %4187 = vmatmul.bf16.gmra.mxu0 %v2379
        %v4188 = vpop.f32.mrf.mxu0
        %v4189 = vadd.f32 %v4176, %v4188
        %v4190 = vpop.f32.mrf.mxu0
        %4191 = vdwg.mxu0
        %4192 = vmatpush.bf16.msra.mxu0 %v3597
        %4193 = vmatpush.bf16.msra.mxu0 %v3593
        %4194 = vmatpush.bf16.msra.mxu0 %v3589
        %4195 = vmatpush.bf16.msra.mxu0 %v3585
        %4196 = vmatpush.bf16.msra.mxu0 %v3581
        %4197 = vmatpush.bf16.msra.mxu0 %v3577
        %4198 = vmatpush.bf16.msra.mxu0 %v3573
        %4199 = vmatpush.bf16.msra.mxu0 %v3569
        %4200 = vmatmul.bf16.gmra.mxu0 %v2380
        %v4201 = vpop.f32.mrf.mxu0
        %v4202 = vadd.f32 %v4189, %v4201
        %v4203 = vpop.f32.mrf.mxu0
        %4204 = vdwg.mxu0
        %4205 = vmatpush.bf16.msra.mxu0 %v3629
        %4206 = vmatpush.bf16.msra.mxu0 %v3625
        %4207 = vmatpush.bf16.msra.mxu0 %v3621
        %4208 = vmatpush.bf16.msra.mxu0 %v3617
        %4209 = vmatpush.bf16.msra.mxu0 %v3613
        %4210 = vmatpush.bf16.msra.mxu0 %v3609
        %4211 = vmatpush.bf16.msra.mxu0 %v3605
        %4212 = vmatpush.bf16.msra.mxu0 %v3601
        %4213 = vmatmul.bf16.gmra.mxu0 %v2381
        %v4214 = vpop.f32.mrf.mxu0
        %v4215 = vadd.f32 %v4202, %v4214
        %v4216 = vpop.f32.mrf.mxu0
        %4217 = vdwg.mxu0
        %4218 = vmatpush.bf16.msra.mxu0 %v3661
        %4219 = vmatpush.bf16.msra.mxu0 %v3657
        %4220 = vmatpush.bf16.msra.mxu0 %v3653
        %4221 = vmatpush.bf16.msra.mxu0 %v3649
        %4222 = vmatpush.bf16.msra.mxu0 %v3645
        %4223 = vmatpush.bf16.msra.mxu0 %v3641
        %4224 = vmatpush.bf16.msra.mxu0 %v3637
        %4225 = vmatpush.bf16.msra.mxu0 %v3633
        %4226 = vmatmul.bf16.gmra.mxu0 %v2382
        %v4227 = vpop.f32.mrf.mxu0
        %v4228 = vadd.f32 %v4215, %v4227
        %v4229 = vpop.f32.mrf.mxu0
        %4230 = vdwg.mxu0
        %4231 = vmatpush.bf16.msra.mxu0 %v3438
        %4232 = vmatpush.bf16.msra.mxu0 %v3434
        %4233 = vmatpush.bf16.msra.mxu0 %v3430
        %4234 = vmatpush.bf16.msra.mxu0 %v3426
        %4235 = vmatpush.bf16.msra.mxu0 %v3422
        %4236 = vmatpush.bf16.msra.mxu0 %v3418
        %4237 = vmatpush.bf16.msra.mxu0 %v3414
        %4238 = vmatpush.bf16.msra.mxu0 %v3410
        %4239 = vmatmul.bf16.gmra.mxu0 %v2375
        %v4240 = vpop.f32.mrf.mxu0
        %v4241 = vadd.f32 0.0, %v4240
        %v4242 = vpop.f32.mrf.mxu0
        %4243 = vdwg.mxu0
        %4244 = vmatpush.bf16.msra.mxu0 %v3470
        %4245 = vmatpush.bf16.msra.mxu0 %v3466
        %4246 = vmatpush.bf16.msra.mxu0 %v3462
        %4247 = vmatpush.bf16.msra.mxu0 %v3458
        %4248 = vmatpush.bf16.msra.mxu0 %v3454
        %4249 = vmatpush.bf16.msra.mxu0 %v3450
        %4250 = vmatpush.bf16.msra.mxu0 %v3446
        %4251 = vmatpush.bf16.msra.mxu0 %v3442
        %4252 = vmatmul.bf16.gmra.mxu0 %v2376
        %v4253 = vpop.f32.mrf.mxu0
        %v4254 = vadd.f32 %v4241, %v4253
        %v4255 = vpop.f32.mrf.mxu0
        %4256 = vdwg.mxu0
        %4257 = vmatpush.bf16.msra.mxu0 %v3502
        %4258 = vmatpush.bf16.msra.mxu0 %v3498
        %4259 = vmatpush.bf16.msra.mxu0 %v3494
        %4260 = vmatpush.bf16.msra.mxu0 %v3490
        %4261 = vmatpush.bf16.msra.mxu0 %v3486
        %4262 = vmatpush.bf16.msra.mxu0 %v3482
        %4263 = vmatpush.bf16.msra.mxu0 %v3478
        %4264 = vmatpush.bf16.msra.mxu0 %v3474
        %4265 = vmatmul.bf16.gmra.mxu0 %v2377
        %v4266 = vpop.f32.mrf.mxu0
        %v4267 = vadd.f32 %v4254, %v4266
        %v4268 = vpop.f32.mrf.mxu0
        %4269 = vdwg.mxu0
        %4270 = vmatpush.bf16.msra.mxu0 %v3534
        %4271 = vmatpush.bf16.msra.mxu0 %v3530
        %4272 = vmatpush.bf16.msra.mxu0 %v3526
        %4273 = vmatpush.bf16.msra.mxu0 %v3522
        %4274 = vmatpush.bf16.msra.mxu0 %v3518
        %4275 = vmatpush.bf16.msra.mxu0 %v3514
        %4276 = vmatpush.bf16.msra.mxu0 %v3510
        %4277 = vmatpush.bf16.msra.mxu0 %v3506
        %4278 = vmatmul.bf16.gmra.mxu0 %v2378
        %v4279 = vpop.f32.mrf.mxu0
        %v4280 = vadd.f32 %v4267, %v4279
        %v4281 = vpop.f32.mrf.mxu0
        %4282 = vdwg.mxu0
        %4283 = vmatpush.bf16.msra.mxu0 %v3566
        %4284 = vmatpush.bf16.msra.mxu0 %v3562
        %4285 = vmatpush.bf16.msra.mxu0 %v3558
        %4286 = vmatpush.bf16.msra.mxu0 %v3554
        %4287 = vmatpush.bf16.msra.mxu0 %v3550
        %4288 = vmatpush.bf16.msra.mxu0 %v3546
        %4289 = vmatpush.bf16.msra.mxu0 %v3542
        %4290 = vmatpush.bf16.msra.mxu0 %v3538
        %4291 = vmatmul.bf16.gmra.mxu0 %v2379
        %v4292 = vpop.f32.mrf.mxu0
        %v4293 = vadd.f32 %v4280, %v4292
        %v4294 = vpop.f32.mrf.mxu0
        %4295 = vdwg.mxu0
        %4296 = vmatpush.bf16.msra.mxu0 %v3598
        %4297 = vmatpush.bf16.msra.mxu0 %v3594
        %4298 = vmatpush.bf16.msra.mxu0 %v3590
        %4299 = vmatpush.bf16.msra.mxu0 %v3586
        %4300 = vmatpush.bf16.msra.mxu0 %v3582
        %4301 = vmatpush.bf16.msra.mxu0 %v3578
        %4302 = vmatpush.bf16.msra.mxu0 %v3574
        %4303 = vmatpush.bf16.msra.mxu0 %v3570
        %4304 = vmatmul.bf16.gmra.mxu0 %v2380
        %v4305 = vpop.f32.mrf.mxu0
        %v4306 = vadd.f32 %v4293, %v4305
        %v4307 = vpop.f32.mrf.mxu0
        %4308 = vdwg.mxu0
        %4309 = vmatpush.bf16.msra.mxu0 %v3630
        %4310 = vmatpush.bf16.msra.mxu0 %v3626
        %4311 = vmatpush.bf16.msra.mxu0 %v3622
        %4312 = vmatpush.bf16.msra.mxu0 %v3618
        %4313 = vmatpush.bf16.msra.mxu0 %v3614
        %4314 = vmatpush.bf16.msra.mxu0 %v3610
        %4315 = vmatpush.bf16.msra.mxu0 %v3606
        %4316 = vmatpush.bf16.msra.mxu0 %v3602
        %4317 = vmatmul.bf16.gmra.mxu0 %v2381
        %v4318 = vpop.f32.mrf.mxu0
        %v4319 = vadd.f32 %v4306, %v4318
        %v4320 = vpop.f32.mrf.mxu0
        %4321 = vdwg.mxu0
        %4322 = vmatpush.bf16.msra.mxu0 %v3662
        %4323 = vmatpush.bf16.msra.mxu0 %v3658
        %4324 = vmatpush.bf16.msra.mxu0 %v3654
        %4325 = vmatpush.bf16.msra.mxu0 %v3650
        %4326 = vmatpush.bf16.msra.mxu0 %v3646
        %4327 = vmatpush.bf16.msra.mxu0 %v3642
        %4328 = vmatpush.bf16.msra.mxu0 %v3638
        %4329 = vmatpush.bf16.msra.mxu0 %v3634
        %4330 = vmatmul.bf16.gmra.mxu0 %v2382
        %v4331 = vpop.f32.mrf.mxu0
        %v4332 = vadd.f32 %v4319, %v4331
        %v4333 = vpop.f32.mrf.mxu0
        %4334 = vdwg.mxu0
        %v4335 = vadd.f32 %v2371, %v4020
        %v4336 = vadd.f32 %v2372, %v4124
        %v4337 = vadd.f32 %v2373, %v4228
        %v4338 = vadd.f32 %v2374, %v4332
        %4339 = vst [vmem:[#allocation2] sm:$0xff] %v4335
        %4340 = vst [vmem:[#allocation2 + $0x8] sm:$0xff] %v4336
        %4341 = vst [vmem:[#allocation2 + $0x10] sm:$0xff] %v4337
        %4342 = vst [vmem:[#allocation2 + $0x18] sm:$0xff] %v4338
        %p4343 = scmp.eq.s32.totalorder %s29, 3
        // Predicated region
        $region65: #{tpu_custom_call.1} parent=39 // pred_check
          %p4344 = pneg %p4343
        $region66: #{tpu_custom_call.1} parent=39 // pred_check_branch
          %4346 = sbr.rel (%p4344) target = $region68
        $region67: #{tpu_custom_call.1} parent=39 // pred_region
          %v4347 = vld [vmem:[#allocation2] sm:$0xff]
          %v4348 = vld [vmem:[#allocation2 + $0x8] sm:$0xff]
          %v4349 = vld [vmem:[#allocation2 + $0x10] sm:$0xff]
          %v4350 = vld [vmem:[#allocation2 + $0x18] sm:$0xff]
          %v4351 = vld [vmem:[#allocation11] sm:$0xf]
          %v4353 = vperm.slane %v4351, 0
          %v4354 = vperm.slane %v4351, 1
          %v4355 = vperm.slane %v4351, 2
          %v4356 = vperm.slane %v4351, 3
          %v4361 = vadd.f32 %v4347, %v4353
          %v4362 = vadd.f32 %v4348, %v4354
          %v4363 = vadd.f32 %v4349, %v4355
          %v4364 = vadd.f32 %v4350, %v4356
          %4365 = vst [vmem:[#allocation12] sm:$0xff] %v4361
          %4366 = vst [vmem:[#allocation12 + $0x8] sm:$0xff] %v4362
          %4367 = vst [vmem:[#allocation12 + $0x10] sm:$0xff] %v4363
          %4368 = vst [vmem:[#allocation12 + $0x18] sm:$0xff] %v4364
        $region68: #{tpu_custom_call.1} parent=39 // pred_fallthru
          _
        // Predicated region
        $region69: #{tpu_custom_call.1} parent=39 // pred_check
          %p4369 = pneg %p179
        $region70: #{tpu_custom_call.1} parent=39 // pred_check_branch
          %4371 = sbr.rel (%p4369) target = $region72
        $region71: #{tpu_custom_call.1} parent=39 // pred_region
          %4373 = vsyncadd [#allocation5], 0
          %s4374 = smul.addr %s28, 4
          %s4375 = smul.addr %s4374, 8
          %s4376 = scalar_lea.hbm %s5, %s4375
          %s4378 = sshll.u32 [#allocation12], 4
          %s4379 = int_to_ptr.vmem [resolvable:$true] %s4378
          %s4380 = sshll.u32 %s4376, 4
          %s4381 = int_to_ptr.hbm [resolvable:$true] %s4380
          %4383 = dma.vmem_to_hbm [thread:$0]  %s4379, 512, %s4381, [#allocation5]
        $region72: #{tpu_custom_call.1} parent=39 // pred_fallthru
          _
        // Predicated region
        $region73: #{tpu_custom_call.1} parent=39 // pred_check
          %p4384 = pneg %p179
        $region74: #{tpu_custom_call.1} parent=39 // pred_check_branch
          %4386 = sbr.rel (%p4384) target = $region76
        $region75: #{tpu_custom_call.1} parent=39 // pred_region
          %4388 = dma.done [#allocation5], 512
        $region76: #{tpu_custom_call.1} parent=39 // pred_fallthru
          _
      $region40: #{tpu_custom_call.1} parent=5 // pred_fallthru
        _
      %p4389 = scmp.le.s32.totalorder 2, %s19
      // Predicated region
      $region77: #{tpu_custom_call.1} parent=5 // pred_check
        %p4390 = pneg %p4389
      $region78: #{tpu_custom_call.1} parent=5 // pred_check_branch
        %4392 = sbr.rel (%p4390) target = $region80
      $region79: #{tpu_custom_call.1} parent=5 // pred_region
        %s4393 = ssub.s32 %s19, 2
      $region80: #{tpu_custom_call.1} parent=5 // pred_fallthru
        _
    $region6: #{tpu_custom_call.1} parent=1 // loop_footer
      %s23 = sadd.s32 1, %s19
    $region7: #{tpu_custom_call.1} parent=1 // loop_footer_branch
      %18 = sbr.rel target = $region3
    $region8: #{tpu_custom_call.1} parent=1 // loop_exit
      _
    %4394 = vsyncpa [#allocation4], 1
    %s4395 = scalar_lea.sflag [#allocation4], 1
    %4396 = vsyncpa %s4395, 1
    %4397 = vsyncpa [#allocation7], 1
    %s4398 = scalar_lea.sflag [#allocation7], 1
    %4399 = vsyncpa %s4398, 1
    %4400 = vsyncpa [#allocation10], 1
    %s4401 = scalar_lea.sflag [#allocation10], 1
    %4402 = vsyncpa %s4401, 1
    %4403 = vsyncpa [#allocation5], 1
    %s4404 = scalar_lea.sflag [#allocation5], 1
    %4405 = vsyncpa %s4404, 1

</llo_original>
